<compile_context>
chip_gen: v5e
topology: v5e:2x2
jax: 0.10.0
libtpu: 0.0.40
codegen_flags: <defaults>
</compile_context>

<pallas_src>
import math

import jax
import jax.numpy as jnp
from jax import lax
from jax.experimental import pallas as pl
from jax.experimental.pallas import tpu as pltpu

EPS_BN = 1e-5          # nn.BatchNorm3d default eps
TILL = 24              # spatial resolution the extractor stops at: 96 -> 48 -> 24
D_MODEL = 512          # unused by the torch module's __init__ (kept for fidelity)
ACC_BUDGET_BYTES = 128 * 1024   # per-tile f32 accumulator budget (<= ~32 vregs)


# --------------------------- layer configuration ---------------------------

def build_config(till):
    cfg = [dict(cin=3,   cout=64,  kt=5, k=5, stride=2, pad=2, residual=False)]
    if till <= 24:
        cfg += [dict(cin=64,  cout=128, kt=1, k=3, stride=2, pad=1, residual=False),
                dict(cin=128, cout=128, kt=1, k=3, stride=1, pad=1, residual=True)]
    if till <= 12:
        cfg += [dict(cin=128, cout=256, kt=1, k=3, stride=2, pad=1, residual=False),
                dict(cin=256, cout=256, kt=1, k=3, stride=1, pad=1, residual=True),
                dict(cin=256, cout=256, kt=1, k=3, stride=1, pad=1, residual=True)]
    if till == 6:
        cfg += [dict(cin=256, cout=512, kt=1, k=3, stride=2, pad=1, residual=False),
                dict(cin=512, cout=512, kt=1, k=3, stride=1, pad=1, residual=True),
                dict(cin=512, cout=512, kt=1, k=3, stride=1, pad=1, residual=True)]
    return cfg


# ------------------------------ Pallas kernel -------------------------------

def _make_conv_block_kernel(taps, w_out, tm, c_out, residual, pad, cin):
    """Fused Conv3d block for one (frame, row-tile) grid step:
    conv as `taps` bf16 MXU matmuls (dx folded into K) + folded bias/BN
    scale-shift + optional residual + ReLU, with a register-resident f32 acc."""

    def kernel(x_ref, w_ref, scale_ref, shift_ref, o_ref):
        # x_ref:       (tm + (taps-1)*w_out, taps*cin)  row-tile slab incl. dy halo
        # w_ref:       (taps, taps*cin, c_out)          bf16, VMEM resident
        # scale/shift: (1, c_out) f32                   conv bias + BatchNorm folded
        # o_ref:       (tm, c_out) bf16
        acc = jnp.zeros((tm, c_out), jnp.float32)
        for dy in range(taps):
            # static, tile-aligned row offsets (multiples of w_out)
            lhs = x_ref[pl.ds(dy * w_out, tm), :].astype(jnp.bfloat16)
            acc += jnp.dot(lhs, w_ref[dy], preferred_element_type=jnp.float32)
        y = acc * scale_ref[...] + shift_ref[...]
        if residual:   # residual is added after BN, before ReLU (as in Conv3d.forward)
            res = x_ref[pl.ds(pad * w_out, tm), pl.ds(pad * cin, c_out)]
            y = y + res.astype(jnp.float32)
        o_ref[...] = jnp.maximum(y, 0.0).astype(o_ref.dtype)

    return kernel


def _conv_block_call(xt, wp, scale, shift, *, w_out, rows_per_tile, taps,
                     residual, pad, cin, c_out):
    n, num_tiles, slab_rows, kdim = xt.shape
    tm = rows_per_tile * w_out
    hw = num_tiles * tm
    kernel = _make_conv_block_kernel(taps, w_out, tm, c_out, residual, pad, cin)
    return pl.pallas_call(
        kernel,
        out_shape=jax.ShapeDtypeStruct((n, hw, c_out), jnp.bfloat16),
        grid=(n, num_tiles),
        in_specs=[
            # one row-tile slab (with dy halo) per grid step; leading dims squeezed
            pl.BlockSpec((None, None, slab_rows, kdim), lambda i, j: (i, j, 0, 0)),
            # weights / scale / shift: constant index -> fetched once, VMEM resident
            pl.BlockSpec((taps, kdim, c_out), lambda i, j: (0, 0, 0)),
            pl.BlockSpec((1, c_out), lambda i, j: (0, 0)),
            pl.BlockSpec((1, c_out), lambda i, j: (0, 0)),
        ],
        out_specs=pl.BlockSpec((None, tm, c_out), lambda i, j: (i, j, 0)),
        compiler_params=pltpu.CompilerParams(
            dimension_semantics=("parallel", "parallel"),   # frames x row-tiles
            vmem_limit_bytes=32 * 1024 * 1024,
        ),
    )(xt, wp, scale, shift)


# --------------------------- wrapper-side re-layout --------------------------

def _space_to_depth(x):
    """(N, H, W, C) -> (N, H//2, W//2, 4*C); channel order (ry, rx, c)."""
    n, h, w, c = x.shape
    x = x.reshape(n, h // 2, 2, w // 2, 2, c)
    x = x.transpose(0, 1, 3, 2, 4, 5)
    return x.reshape(n, h // 2, w // 2, 4 * c)


def _fold_and_tile(x, w_out, taps, rows_per_tile, dtype):
    """(N, H_in, W_in, C) padded input ->
       (N, num_tiles, (rows_per_tile + taps - 1) * w_out, taps * C)

    Width (dx) taps are folded into channels (order (dx, c)), rows are grouped
    into per-tile slabs including a (taps-1)-image-row halo, so every in-kernel
    slice is a static, aligned, contiguous row range of the slab."""
    n, h_in, _, c = x.shape
    h_out = h_in - taps + 1
    num_tiles = h_out // rows_per_tile
    assert num_tiles * rows_per_tile == h_out
    xf = jnp.concatenate([x[:, :, dx:dx + w_out, :] for dx in range(taps)], axis=-1)
    slab_rows = rows_per_tile + taps - 1
    slabs = [xf[:, j * rows_per_tile: j * rows_per_tile + slab_rows]
             for j in range(num_tiles)]
    xt = jnp.stack(slabs, axis=1)                 # (N, J, slab_rows, w_out, taps*C)
    return xt.reshape(n, num_tiles, slab_rows * w_out, taps * c).astype(dtype)


def _pick_rows_per_tile(h_out, w_out, c_out):
    """Largest divisor of h_out keeping the per-tile f32 acc within budget."""
    cap = max(1, ACC_BUDGET_BYTES // (4 * c_out * w_out))
    rpt = 1
    for r in range(1, min(cap, h_out) + 1):
        if h_out % r == 0:
            rpt = r
    return rpt


def conv3d_block_forward(x, cfg, pk):
    """x: (B, T, H, W, Cin) channels-last (bf16) -> (B, T, H_out, W_out, Cout) bf16."""
    b, t, h, _, _ = x.shape
    kt, k, stride, pad, residual = (cfg["kt"], cfg["k"], cfg["stride"],
                                    cfg["pad"], cfg["residual"])
    if residual:
        assert stride == 1 and cfg["cin"] == cfg["cout"], \
            "residual path assumes stride 1 and cin == cout"

    if kt > 1:  # fold the temporal window into channels (temporal stride is always 1)
        tp = (kt - 1) // 2
        xt = jnp.pad(x, ((0, 0), (tp, tp), (0, 0), (0, 0), (0, 0)))
        x = jnp.concatenate([xt[:, dt:dt + t] for dt in range(kt)], axis=-1)

    n = b * t
    x = x.reshape(n, x.shape[2], x.shape[3], x.shape[4])
    x = jnp.pad(x, ((0, 0), (pad, pad), (pad, pad), (0, 0)))
    if stride == 2:
        # stride-2 kxk conv -> stride-1 ceil(k/2)-tap conv over space-to-depth input
        x = _space_to_depth(x)
        h_out = (h + 2 * pad - k) // 2 + 1
        taps = (k + 1) // 2
    else:
        h_out = h + 2 * pad - k + 1
        taps = k
    w_out = h_out                       # square frames throughout
    cin_fold = x.shape[-1]              # per-dx channels entering the width fold

    rpt = _pick_rows_per_tile(h_out, w_out, cfg["cout"])
    # In-kernel row offsets are dy * w_out.  bf16 activations need 16-row
    # (packed-tile) aligned offsets; otherwise keep the folded input in f32
    # (the MXU operands are still cast to bf16 inside the kernel).
    act_dtype = jnp.bfloat16 if (w_out % 16 == 0) else jnp.float32
    xt = _fold_and_tile(x, w_out, taps, rpt, act_dtype)

    y = _conv_block_call(xt, pk["w"], pk["scale"], pk["shift"],
                         w_out=w_out, rows_per_tile=rpt, taps=taps,
                         residual=residual, pad=pad, cin=cin_fold,
                         c_out=cfg["cout"])
    return y.reshape(b, t, h_out, w_out, cfg["cout"])


def cnn3d_forward(faces, cfg, packed):
    """CNN_3d_featextractor.forward: faces (B, 3, T, 96, 96) -> (B, Cout, T, h, h)."""
    _, _, _, h, w = faces.shape
    assert h == 96 and w == 96          # module asserts faces.size(3)==96, size(-1)==96
    x = jnp.transpose(faces, (0, 2, 3, 4, 1)).astype(jnp.bfloat16)   # (B,T,H,W,C)
    for c, pk in zip(cfg, packed):
        x = conv3d_block_forward(x, c, pk)
    return jnp.transpose(x, (0, 4, 1, 2, 3)).astype(jnp.float32)     # back to NCDHW


# ------------------------------ parameter prep -------------------------------

def _conv_bn_init(key, cin, cout, kt, k):
    ks = jax.random.split(key, 6)
    fan_in = cin * kt * k * k
    return dict(
        w=jax.random.normal(ks[0], (cout, cin, kt, k, k), jnp.float32) / math.sqrt(fan_in),
        b=0.1 * jax.random.normal(ks[1], (cout,), jnp.float32),
        gamma=1.0 + 0.1 * jax.random.normal(ks[2], (cout,), jnp.float32),
        beta=0.1 * jax.random.normal(ks[3], (cout,), jnp.float32),
        mean=0.1 * jax.random.normal(ks[4], (cout,), jnp.float32),
        var=0.5 + jnp.abs(jax.random.normal(ks[5], (cout,), jnp.float32)),
    )


def _pack_weight(w, stride):
    """torch (Cout, Cin, kT, kH, kW) -> (taps_dy, K, Cout) bf16 matrices whose
    contraction order matches the data channel packing built by the wrapper:
      stride 1 : (dx, ci)
      stride 2 : (dx, ry, rx, dt, ci)   (space-to-depth + temporal fold)"""
    co, ci, kt, kh, kw = w.shape
    if stride == 1:
        wp = jnp.transpose(w[:, :, 0], (2, 3, 1, 0))          # (kh, kw, ci, co)
        wp = wp.reshape(kh, kw * ci, co)
    else:
        ah, aw = (kh + 1) // 2, (kw + 1) // 2
        wp = jnp.pad(w, ((0, 0), (0, 0), (0, 0), (0, 2 * ah - kh), (0, 2 * aw - kw)))
        wp = wp.reshape(co, ci, kt, ah, 2, aw, 2)              # (co,ci,dt,ay,ry,ax,rx)
        wp = jnp.transpose(wp, (3, 5, 4, 6, 2, 1, 0))          # (ay,ax,ry,rx,dt,ci,co)
        wp = wp.reshape(ah, aw * 4 * kt * ci, co)
    return wp.astype(jnp.bfloat16)


def _fold_bn(p):
    scale = p["gamma"] / jnp.sqrt(p["var"] + EPS_BN)
    shift = p["beta"] + (p["b"] - p["mean"]) * scale
    return scale.reshape(1, -1), shift.reshape(1, -1)


def init_params(key, cfg):
    raw, packed = [], []
    for c in cfg:
        key, sub = jax.random.split(key)
        p = _conv_bn_init(sub, c["cin"], c["cout"], c["kt"], c["k"])
        scale, shift = _fold_bn(p)
        raw.append(p)
        packed.append(dict(w=_pack_weight(p["w"], c["stride"]), scale=scale, shift=shift))
    return raw, packed


# ------------------------------ pure-JAX reference ---------------------------

def ref_forward(faces, cfg, raw):
    x = faces
    for c, p in zip(cfg, raw):
        tp = (c["kt"] - 1) // 2
        z = lax.conv_general_dilated(
            x, p["w"],
            window_strides=(1, c["stride"], c["stride"]),
            padding=[(tp, tp), (c["pad"], c["pad"]), (c["pad"], c["pad"])],
            dimension_numbers=("NCDHW", "OIDHW", "NCDHW"))
        z = z + p["b"][None, :, None, None, None]
        inv = (p["gamma"] / jnp.sqrt(p["var"] + EPS_BN))[None, :, None, None, None]
        z = (z - p["mean"][None, :, None, None, None]) * inv \
            + p["beta"][None, :, None, None, None]
        if c["residual"]:
            z = z + x
        x = jnp.maximum(z, 0.0)
    return x


# ----------------------------------- main ------------------------------------

if __name__ == "__main__":
    key = jax.random.PRNGKey(0)
    k_x, k_p = jax.random.split(key)

    B, T = 2, 2
    faces = jax.random.normal(k_x, (B, 3, T, 96, 96), jnp.float32)   # (N, C, D, 96, 96)

    cfg = build_config(TILL)
    raw, packed = init_params(k_p, cfg)

    fwd = jax.jit(lambda f: cnn3d_forward(f, cfg, packed))
    out = jax.block_until_ready(fwd(faces))
    assert out.shape == (B, cfg[-1]["cout"], T, 24, 24), out.shape

    ref = jax.block_until_ready(ref_forward(faces, cfg, raw))
    ref_max = float(jnp.max(jnp.abs(ref)))
    ref_mean = float(jnp.mean(jnp.abs(ref)))
    max_err = float(jnp.max(jnp.abs(out - ref)))
    mean_err = float(jnp.mean(jnp.abs(out - ref)))
    # bf16 matmul operands / bf16 inter-block activations vs the f32 reference.
    assert max_err <= 0.05 * ref_max + 1e-2, (max_err, ref_max)
    assert mean_err <= 0.03 * ref_mean + 1e-3, (mean_err, ref_mean)

    print("KERNEL_OK")
</pallas_src>

<mosaic_0001>
module attributes {stable_mosaic.version = 11 : i64} {
  func.func @kernel(%arg0: i32, %arg1: i32, %arg2: memref<1x1x480x180xbf16, #tpu.memory_space<vmem>>, %arg3: memref<3x180x64xbf16, #tpu.memory_space<vmem>>, %arg4: memref<1x64xf32, #tpu.memory_space<vmem>>, %arg5: memref<1x64xf32, #tpu.memory_space<vmem>>, %arg6: memref<1x384x64xbf16, #tpu.memory_space<vmem>>) attributes {dimension_semantics = [#tpu.dimension_semantics<parallel>, #tpu.dimension_semantics<parallel>], iteration_bounds = array<i64: 4, 6>, scalar_prefetch = 0 : i64, scratch_operands = 0 : i64, tpu.core_type = #tpu.core_type<tc>, window_params = [{transform_indices = @transform_0, window_bounds = array<i64: 1, 1, 480, 180>}, {pipeline_mode = #tpu.pipeline_mode<synchronous>, transform_indices = @transform_1, window_bounds = array<i64: 3, 180, 64>}, {pipeline_mode = #tpu.pipeline_mode<synchronous>, transform_indices = @transform_2, window_bounds = array<i64: 1, 64>}, {pipeline_mode = #tpu.pipeline_mode<synchronous>, transform_indices = @transform_3, window_bounds = array<i64: 1, 64>}, {transform_indices = @transform_4, window_bounds = array<i64: 1, 384, 64>}]} {
    %cst = arith.constant 0.000000e+00 : f32
    %0 = vector.broadcast %cst : f32 to vector<384x64xf32>
    %c0 = arith.constant 0 : index
    %c0_0 = arith.constant 0 : index
    %c0_1 = arith.constant 0 : index
    %c0_2 = arith.constant 0 : index
    %1 = vector.load %arg2[%c0, %c0_0, %c0_1, %c0_2] : memref<1x1x480x180xbf16, #tpu.memory_space<vmem>>, vector<1x1x384x180xbf16>
    %2 = vector.shape_cast %1 : vector<1x1x384x180xbf16> to vector<384x180xbf16>
    %c0_3 = arith.constant 0 : index
    %c0_4 = arith.constant 0 : index
    %c0_5 = arith.constant 0 : index
    %3 = vector.load %arg3[%c0_3, %c0_4, %c0_5] : memref<3x180x64xbf16, #tpu.memory_space<vmem>>, vector<1x180x64xbf16>
    %4 = vector.shape_cast %3 : vector<1x180x64xbf16> to vector<180x64xbf16>
    %cst_6 = arith.constant dense<0.000000e+00> : vector<384x64xf32>
    %5 = tpu.matmul %2, %4, %cst_6 {dimension_numbers = #tpu.dot_dimension_numbers<[1], [0], [0], [1], [0, 0, 1, 1], [], []>} : vector<384x180xbf16>, vector<180x64xbf16>, vector<384x64xf32> -> vector<384x64xf32>
    %6 = arith.addf %0, %5 : vector<384x64xf32>
    %c0_7 = arith.constant 0 : index
    %c0_8 = arith.constant 0 : index
    %c48 = arith.constant 48 : index
    %c0_9 = arith.constant 0 : index
    %7 = vector.load %arg2[%c0_7, %c0_8, %c48, %c0_9] : memref<1x1x480x180xbf16, #tpu.memory_space<vmem>>, vector<1x1x384x180xbf16>
    %8 = vector.shape_cast %7 : vector<1x1x384x180xbf16> to vector<384x180xbf16>
    %c1 = arith.constant 1 : index
    %c0_10 = arith.constant 0 : index
    %c0_11 = arith.constant 0 : index
    %9 = vector.load %arg3[%c1, %c0_10, %c0_11] : memref<3x180x64xbf16, #tpu.memory_space<vmem>>, vector<1x180x64xbf16>
    %10 = vector.shape_cast %9 : vector<1x180x64xbf16> to vector<180x64xbf16>
    %cst_12 = arith.constant dense<0.000000e+00> : vector<384x64xf32>
    %11 = tpu.matmul %8, %10, %cst_12 {dimension_numbers = #tpu.dot_dimension_numbers<[1], [0], [0], [1], [0, 0, 1, 1], [], []>} : vector<384x180xbf16>, vector<180x64xbf16>, vector<384x64xf32> -> vector<384x64xf32>
    %12 = arith.addf %6, %11 : vector<384x64xf32>
    %c0_13 = arith.constant 0 : index
    %c0_14 = arith.constant 0 : index
    %c96 = arith.constant 96 : index
    %c0_15 = arith.constant 0 : index
    %13 = vector.load %arg2[%c0_13, %c0_14, %c96, %c0_15] : memref<1x1x480x180xbf16, #tpu.memory_space<vmem>>, vector<1x1x384x180xbf16>
    %14 = vector.shape_cast %13 : vector<1x1x384x180xbf16> to vector<384x180xbf16>
    %c2 = arith.constant 2 : index
    %c0_16 = arith.constant 0 : index
    %c0_17 = arith.constant 0 : index
    %15 = vector.load %arg3[%c2, %c0_16, %c0_17] : memref<3x180x64xbf16, #tpu.memory_space<vmem>>, vector<1x180x64xbf16>
    %16 = vector.shape_cast %15 : vector<1x180x64xbf16> to vector<180x64xbf16>
    %cst_18 = arith.constant dense<0.000000e+00> : vector<384x64xf32>
    %17 = tpu.matmul %14, %16, %cst_18 {dimension_numbers = #tpu.dot_dimension_numbers<[1], [0], [0], [1], [0, 0, 1, 1], [], []>} : vector<384x180xbf16>, vector<180x64xbf16>, vector<384x64xf32> -> vector<384x64xf32>
    %18 = arith.addf %12, %17 : vector<384x64xf32>
    %c0_19 = arith.constant 0 : index
    %c0_20 = arith.constant 0 : index
    %19 = vector.load %arg4[%c0_19, %c0_20] : memref<1x64xf32, #tpu.memory_space<vmem>>, vector<1x64xf32>
    %20 = vector.broadcast %19 : vector<1x64xf32> to vector<384x64xf32>
    %21 = arith.mulf %18, %20 : vector<384x64xf32>
    %c0_21 = arith.constant 0 : index
    %c0_22 = arith.constant 0 : index
    %22 = vector.load %arg5[%c0_21, %c0_22] : memref<1x64xf32, #tpu.memory_space<vmem>>, vector<1x64xf32>
    %23 = vector.broadcast %22 : vector<1x64xf32> to vector<384x64xf32>
    %24 = arith.addf %21, %23 : vector<384x64xf32>
    %cst_23 = arith.constant 0.000000e+00 : f32
    %25 = vector.broadcast %cst_23 : f32 to vector<384x64xf32>
    %26 = arith.maximumf %24, %25 : vector<384x64xf32>
    %27 = arith.truncf %26 : vector<384x64xf32> to vector<384x64xbf16>
    %c0_24 = arith.constant 0 : index
    %c0_25 = arith.constant 0 : index
    %c0_26 = arith.constant 0 : index
    %28 = vector.load %arg6[%c0_24, %c0_25, %c0_26] : memref<1x384x64xbf16, #tpu.memory_space<vmem>>, vector<1x384x64xbf16>
    %29 = vector.shape_cast %28 : vector<1x384x64xbf16> to vector<384x64xbf16>
    %30 = vector.shape_cast %27 : vector<384x64xbf16> to vector<1x384x64xbf16>
    tpu.vector_store %arg6[%c0_24, %c0_25, %c0_26], %30 {strides = array<i32>} : memref<1x384x64xbf16, #tpu.memory_space<vmem>>, vector<1x384x64xbf16>,
    return
  }
  func.func @transform_0(%arg0: i32, %arg1: i32) -> (i32, i32, i32, i32) {
    %c0_i32 = arith.constant 0 : i32
    %c0_i32_0 = arith.constant 0 : i32
    %c0_i32_1 = arith.constant 0 : i32
    return %arg0, %arg1, %c0_i32, %c0_i32_0 : i32, i32, i32, i32
  }
  func.func @transform_1(%arg0: i32, %arg1: i32) -> (i32, i32, i32) {
    %c0_i32 = arith.constant 0 : i32
    %c0_i32_0 = arith.constant 0 : i32
    %c0_i32_1 = arith.constant 0 : i32
    %c0_i32_2 = arith.constant 0 : i32
    return %c0_i32, %c0_i32_0, %c0_i32_1 : i32, i32, i32
  }
  func.func @transform_2(%arg0: i32, %arg1: i32) -> (i32, i32) {
    %c0_i32 = arith.constant 0 : i32
    %c0_i32_0 = arith.constant 0 : i32
    %c0_i32_1 = arith.constant 0 : i32
    return %c0_i32, %c0_i32_0 : i32, i32
  }
  func.func @transform_3(%arg0: i32, %arg1: i32) -> (i32, i32) {
    %c0_i32 = arith.constant 0 : i32
    %c0_i32_0 = arith.constant 0 : i32
    %c0_i32_1 = arith.constant 0 : i32
    return %c0_i32, %c0_i32_0 : i32, i32
  }
  func.func @transform_4(%arg0: i32, %arg1: i32) -> (i32, i32, i32) {
    %c0_i32 = arith.constant 0 : i32
    %c0_i32_0 = arith.constant 0 : i32
    return %arg0, %arg1, %c0_i32 : i32, i32, i32
  }
}

module attributes {stable_mosaic.version = 11 : i64} {
  func.func @kernel(%arg0: i32, %arg1: i32, %arg2: memref<1x1x216x512xf32, #tpu.memory_space<vmem>>, %arg3: memref<2x512x128xbf16, #tpu.memory_space<vmem>>, %arg4: memref<1x128xf32, #tpu.memory_space<vmem>>, %arg5: memref<1x128xf32, #tpu.memory_space<vmem>>, %arg6: memref<1x192x128xbf16, #tpu.memory_space<vmem>>) attributes {dimension_semantics = [#tpu.dimension_semantics<parallel>, #tpu.dimension_semantics<parallel>], iteration_bounds = array<i64: 4, 3>, scalar_prefetch = 0 : i64, scratch_operands = 0 : i64, tpu.core_type = #tpu.core_type<tc>, window_params = [{transform_indices = @transform_0, window_bounds = array<i64: 1, 1, 216, 512>}, {pipeline_mode = #tpu.pipeline_mode<synchronous>, transform_indices = @transform_1, window_bounds = array<i64: 2, 512, 128>}, {pipeline_mode = #tpu.pipeline_mode<synchronous>, transform_indices = @transform_2, window_bounds = array<i64: 1, 128>}, {pipeline_mode = #tpu.pipeline_mode<synchronous>, transform_indices = @transform_3, window_bounds = array<i64: 1, 128>}, {transform_indices = @transform_4, window_bounds = array<i64: 1, 192, 128>}]} {
    %cst = arith.constant 0.000000e+00 : f32
    %0 = vector.broadcast %cst : f32 to vector<192x128xf32>
    %c0 = arith.constant 0 : index
    %c0_0 = arith.constant 0 : index
    %c0_1 = arith.constant 0 : index
    %c0_2 = arith.constant 0 : index
    %1 = vector.load %arg2[%c0, %c0_0, %c0_1, %c0_2] : memref<1x1x216x512xf32, #tpu.memory_space<vmem>>, vector<1x1x192x512xf32>
    %2 = vector.shape_cast %1 : vector<1x1x192x512xf32> to vector<192x512xf32>
    %3 = arith.truncf %2 : vector<192x512xf32> to vector<192x512xbf16>
    %c0_3 = arith.constant 0 : index
    %c0_4 = arith.constant 0 : index
    %c0_5 = arith.constant 0 : index
    %4 = vector.load %arg3[%c0_3, %c0_4, %c0_5] : memref<2x512x128xbf16, #tpu.memory_space<vmem>>, vector<1x512x128xbf16>
    %5 = vector.shape_cast %4 : vector<1x512x128xbf16> to vector<512x128xbf16>
    %cst_6 = arith.constant dense<0.000000e+00> : vector<192x128xf32>
    %6 = tpu.matmul %3, %5, %cst_6 {dimension_numbers = #tpu.dot_dimension_numbers<[1], [0], [0], [1], [0, 0, 1, 1], [], []>} : vector<192x512xbf16>, vector<512x128xbf16>, vector<192x128xf32> -> vector<192x128xf32>
    %7 = arith.addf %0, %6 : vector<192x128xf32>
    %c0_7 = arith.constant 0 : index
    %c0_8 = arith.constant 0 : index
    %c24 = arith.constant 24 : index
    %c0_9 = arith.constant 0 : index
    %8 = vector.load %arg2[%c0_7, %c0_8, %c24, %c0_9] : memref<1x1x216x512xf32, #tpu.memory_space<vmem>>, vector<1x1x192x512xf32>
    %9 = vector.shape_cast %8 : vector<1x1x192x512xf32> to vector<192x512xf32>
    %10 = arith.truncf %9 : vector<192x512xf32> to vector<192x512xbf16>
    %c1 = arith.constant 1 : index
    %c0_10 = arith.constant 0 : index
    %c0_11 = arith.constant 0 : index
    %11 = vector.load %arg3[%c1, %c0_10, %c0_11] : memref<2x512x128xbf16, #tpu.memory_space<vmem>>, vector<1x512x128xbf16>
    %12 = vector.shape_cast %11 : vector<1x512x128xbf16> to vector<512x128xbf16>
    %cst_12 = arith.constant dense<0.000000e+00> : vector<192x128xf32>
    %13 = tpu.matmul %10, %12, %cst_12 {dimension_numbers = #tpu.dot_dimension_numbers<[1], [0], [0], [1], [0, 0, 1, 1], [], []>} : vector<192x512xbf16>, vector<512x128xbf16>, vector<192x128xf32> -> vector<192x128xf32>
    %14 = arith.addf %7, %13 : vector<192x128xf32>
    %c0_13 = arith.constant 0 : index
    %c0_14 = arith.constant 0 : index
    %15 = vector.load %arg4[%c0_13, %c0_14] : memref<1x128xf32, #tpu.memory_space<vmem>>, vector<1x128xf32>
    %16 = vector.broadcast %15 : vector<1x128xf32> to vector<192x128xf32>
    %17 = arith.mulf %14, %16 : vector<192x128xf32>
    %c0_15 = arith.constant 0 : index
    %c0_16 = arith.constant 0 : index
    %18 = vector.load %arg5[%c0_15, %c0_16] : memref<1x128xf32, #tpu.memory_space<vmem>>, vector<1x128xf32>
    %19 = vector.broadcast %18 : vector<1x128xf32> to vector<192x128xf32>
    %20 = arith.addf %17, %19 : vector<192x128xf32>
    %cst_17 = arith.constant 0.000000e+00 : f32
    %21 = vector.broadcast %cst_17 : f32 to vector<192x128xf32>
    %22 = arith.maximumf %20, %21 : vector<192x128xf32>
    %23 = arith.truncf %22 : vector<192x128xf32> to vector<192x128xbf16>
    %c0_18 = arith.constant 0 : index
    %c0_19 = arith.constant 0 : index
    %c0_20 = arith.constant 0 : index
    %24 = vector.load %arg6[%c0_18, %c0_19, %c0_20] : memref<1x192x128xbf16, #tpu.memory_space<vmem>>, vector<1x192x128xbf16>
    %25 = vector.shape_cast %24 : vector<1x192x128xbf16> to vector<192x128xbf16>
    %26 = vector.shape_cast %23 : vector<192x128xbf16> to vector<1x192x128xbf16>
    tpu.vector_store %arg6[%c0_18, %c0_19, %c0_20], %26 {strides = array<i32>} : memref<1x192x128xbf16, #tpu.memory_space<vmem>>, vector<1x192x128xbf16>,
    return
  }
  func.func @transform_0(%arg0: i32, %arg1: i32) -> (i32, i32, i32, i32) {
    %c0_i32 = arith.constant 0 : i32
    %c0_i32_0 = arith.constant 0 : i32
    %c0_i32_1 = arith.constant 0 : i32
    return %arg0, %arg1, %c0_i32, %c0_i32_0 : i32, i32, i32, i32
  }
  func.func @transform_1(%arg0: i32, %arg1: i32) -> (i32, i32, i32) {
    %c0_i32 = arith.constant 0 : i32
    %c0_i32_0 = arith.constant 0 : i32
    %c0_i32_1 = arith.constant 0 : i32
    %c0_i32_2 = arith.constant 0 : i32
    return %c0_i32, %c0_i32_0, %c0_i32_1 : i32, i32, i32
  }
  func.func @transform_2(%arg0: i32, %arg1: i32) -> (i32, i32) {
    %c0_i32 = arith.constant 0 : i32
    %c0_i32_0 = arith.constant 0 : i32
    %c0_i32_1 = arith.constant 0 : i32
    return %c0_i32, %c0_i32_0 : i32, i32
  }
  func.func @transform_3(%arg0: i32, %arg1: i32) -> (i32, i32) {
    %c0_i32 = arith.constant 0 : i32
    %c0_i32_0 = arith.constant 0 : i32
    %c0_i32_1 = arith.constant 0 : i32
    return %c0_i32, %c0_i32_0 : i32, i32
  }
  func.func @transform_4(%arg0: i32, %arg1: i32) -> (i32, i32, i32) {
    %c0_i32 = arith.constant 0 : i32
    %c0_i32_0 = arith.constant 0 : i32
    return %arg0, %arg1, %c0_i32 : i32, i32, i32
  }
}

module attributes {stable_mosaic.version = 11 : i64} {
  func.func @kernel(%arg0: i32, %arg1: i32, %arg2: memref<1x1x240x384xf32, #tpu.memory_space<vmem>>, %arg3: memref<3x384x128xbf16, #tpu.memory_space<vmem>>, %arg4: memref<1x128xf32, #tpu.memory_space<vmem>>, %arg5: memref<1x128xf32, #tpu.memory_space<vmem>>, %arg6: memref<1x192x128xbf16, #tpu.memory_space<vmem>>) attributes {dimension_semantics = [#tpu.dimension_semantics<parallel>, #tpu.dimension_semantics<parallel>], iteration_bounds = array<i64: 4, 3>, scalar_prefetch = 0 : i64, scratch_operands = 0 : i64, tpu.core_type = #tpu.core_type<tc>, window_params = [{transform_indices = @transform_0, window_bounds = array<i64: 1, 1, 240, 384>}, {pipeline_mode = #tpu.pipeline_mode<synchronous>, transform_indices = @transform_1, window_bounds = array<i64: 3, 384, 128>}, {pipeline_mode = #tpu.pipeline_mode<synchronous>, transform_indices = @transform_2, window_bounds = array<i64: 1, 128>}, {pipeline_mode = #tpu.pipeline_mode<synchronous>, transform_indices = @transform_3, window_bounds = array<i64: 1, 128>}, {transform_indices = @transform_4, window_bounds = array<i64: 1, 192, 128>}]} {
    %cst = arith.constant 0.000000e+00 : f32
    %0 = vector.broadcast %cst : f32 to vector<192x128xf32>
    %c0 = arith.constant 0 : index
    %c0_0 = arith.constant 0 : index
    %c0_1 = arith.constant 0 : index
    %c0_2 = arith.constant 0 : index
    %1 = vector.load %arg2[%c0, %c0_0, %c0_1, %c0_2] : memref<1x1x240x384xf32, #tpu.memory_space<vmem>>, vector<1x1x192x384xf32>
    %2 = vector.shape_cast %1 : vector<1x1x192x384xf32> to vector<192x384xf32>
    %3 = arith.truncf %2 : vector<192x384xf32> to vector<192x384xbf16>
    %c0_3 = arith.constant 0 : index
    %c0_4 = arith.constant 0 : index
    %c0_5 = arith.constant 0 : index
    %4 = vector.load %arg3[%c0_3, %c0_4, %c0_5] : memref<3x384x128xbf16, #tpu.memory_space<vmem>>, vector<1x384x128xbf16>
    %5 = vector.shape_cast %4 : vector<1x384x128xbf16> to vector<384x128xbf16>
    %cst_6 = arith.constant dense<0.000000e+00> : vector<192x128xf32>
    %6 = tpu.matmul %3, %5, %cst_6 {dimension_numbers = #tpu.dot_dimension_numbers<[1], [0], [0], [1], [0, 0, 1, 1], [], []>} : vector<192x384xbf16>, vector<384x128xbf16>, vector<192x128xf32> -> vector<192x128xf32>
    %7 = arith.addf %0, %6 : vector<192x128xf32>
    %c0_7 = arith.constant 0 : index
    %c0_8 = arith.constant 0 : index
    %c24 = arith.constant 24 : index
    %c0_9 = arith.constant 0 : index
    %8 = vector.load %arg2[%c0_7, %c0_8, %c24, %c0_9] : memref<1x1x240x384xf32, #tpu.memory_space<vmem>>, vector<1x1x192x384xf32>
    %9 = vector.shape_cast %8 : vector<1x1x192x384xf32> to vector<192x384xf32>
    %10 = arith.truncf %9 : vector<192x384xf32> to vector<192x384xbf16>
    %c1 = arith.constant 1 : index
    %c0_10 = arith.constant 0 : index
    %c0_11 = arith.constant 0 : index
    %11 = vector.load %arg3[%c1, %c0_10, %c0_11] : memref<3x384x128xbf16, #tpu.memory_space<vmem>>, vector<1x384x128xbf16>
    %12 = vector.shape_cast %11 : vector<1x384x128xbf16> to vector<384x128xbf16>
    %cst_12 = arith.constant dense<0.000000e+00> : vector<192x128xf32>
    %13 = tpu.matmul %10, %12, %cst_12 {dimension_numbers = #tpu.dot_dimension_numbers<[1], [0], [0], [1], [0, 0, 1, 1], [], []>} : vector<192x384xbf16>, vector<384x128xbf16>, vector<192x128xf32> -> vector<192x128xf32>
    %14 = arith.addf %7, %13 : vector<192x128xf32>
    %c0_13 = arith.constant 0 : index
    %c0_14 = arith.constant 0 : index
    %c48 = arith.constant 48 : index
    %c0_15 = arith.constant 0 : index
    %15 = vector.load %arg2[%c0_13, %c0_14, %c48, %c0_15] : memref<1x1x240x384xf32, #tpu.memory_space<vmem>>, vector<1x1x192x384xf32>
    %16 = vector.shape_cast %15 : vector<1x1x192x384xf32> to vector<192x384xf32>
    %17 = arith.truncf %16 : vector<192x384xf32> to vector<192x384xbf16>
    %c2 = arith.constant 2 : index
    %c0_16 = arith.constant 0 : index
    %c0_17 = arith.constant 0 : index
    %18 = vector.load %arg3[%c2, %c0_16, %c0_17] : memref<3x384x128xbf16, #tpu.memory_space<vmem>>, vector<1x384x128xbf16>
    %19 = vector.shape_cast %18 : vector<1x384x128xbf16> to vector<384x128xbf16>
    %cst_18 = arith.constant dense<0.000000e+00> : vector<192x128xf32>
    %20 = tpu.matmul %17, %19, %cst_18 {dimension_numbers = #tpu.dot_dimension_numbers<[1], [0], [0], [1], [0, 0, 1, 1], [], []>} : vector<192x384xbf16>, vector<384x128xbf16>, vector<192x128xf32> -> vector<192x128xf32>
    %21 = arith.addf %14, %20 : vector<192x128xf32>
    %c0_19 = arith.constant 0 : index
    %c0_20 = arith.constant 0 : index
    %22 = vector.load %arg4[%c0_19, %c0_20] : memref<1x128xf32, #tpu.memory_space<vmem>>, vector<1x128xf32>
    %23 = vector.broadcast %22 : vector<1x128xf32> to vector<192x128xf32>
    %24 = arith.mulf %21, %23 : vector<192x128xf32>
    %c0_21 = arith.constant 0 : index
    %c0_22 = arith.constant 0 : index
    %25 = vector.load %arg5[%c0_21, %c0_22] : memref<1x128xf32, #tpu.memory_space<vmem>>, vector<1x128xf32>
    %26 = vector.broadcast %25 : vector<1x128xf32> to vector<192x128xf32>
    %27 = arith.addf %24, %26 : vector<192x128xf32>
    %c0_23 = arith.constant 0 : index
    %c0_24 = arith.constant 0 : index
    %c24_25 = arith.constant 24 : index
    %c128 = arith.constant 128 : index
    %28 = vector.load %arg2[%c0_23, %c0_24, %c24_25, %c128] : memref<1x1x240x384xf32, #tpu.memory_space<vmem>>, vector<1x1x192x128xf32>
    %29 = vector.shape_cast %28 : vector<1x1x192x128xf32> to vector<192x128xf32>
    %30 = arith.addf %27, %29 : vector<192x128xf32>
    %cst_26 = arith.constant 0.000000e+00 : f32
    %31 = vector.broadcast %cst_26 : f32 to vector<192x128xf32>
    %32 = arith.maximumf %30, %31 : vector<192x128xf32>
    %33 = arith.truncf %32 : vector<192x128xf32> to vector<192x128xbf16>
    %c0_27 = arith.constant 0 : index
    %c0_28 = arith.constant 0 : index
    %c0_29 = arith.constant 0 : index
    %34 = vector.load %arg6[%c0_27, %c0_28, %c0_29] : memref<1x192x128xbf16, #tpu.memory_space<vmem>>, vector<1x192x128xbf16>
    %35 = vector.shape_cast %34 : vector<1x192x128xbf16> to vector<192x128xbf16>
    %36 = vector.shape_cast %33 : vector<192x128xbf16> to vector<1x192x128xbf16>
    tpu.vector_store %arg6[%c0_27, %c0_28, %c0_29], %36 {strides = array<i32>} : memref<1x192x128xbf16, #tpu.memory_space<vmem>>, vector<1x192x128xbf16>,
    return
  }
  func.func @transform_0(%arg0: i32, %arg1: i32) -> (i32, i32, i32, i32) {
    %c0_i32 = arith.constant 0 : i32
    %c0_i32_0 = arith.constant 0 : i32
    %c0_i32_1 = arith.constant 0 : i32
    return %arg0, %arg1, %c0_i32, %c0_i32_0 : i32, i32, i32, i32
  }
  func.func @transform_1(%arg0: i32, %arg1: i32) -> (i32, i32, i32) {
    %c0_i32 = arith.constant 0 : i32
    %c0_i32_0 = arith.constant 0 : i32
    %c0_i32_1 = arith.constant 0 : i32
    %c0_i32_2 = arith.constant 0 : i32
    return %c0_i32, %c0_i32_0, %c0_i32_1 : i32, i32, i32
  }
  func.func @transform_2(%arg0: i32, %arg1: i32) -> (i32, i32) {
    %c0_i32 = arith.constant 0 : i32
    %c0_i32_0 = arith.constant 0 : i32
    %c0_i32_1 = arith.constant 0 : i32
    return %c0_i32, %c0_i32_0 : i32, i32
  }
  func.func @transform_3(%arg0: i32, %arg1: i32) -> (i32, i32) {
    %c0_i32 = arith.constant 0 : i32
    %c0_i32_0 = arith.constant 0 : i32
    %c0_i32_1 = arith.constant 0 : i32
    return %c0_i32, %c0_i32_0 : i32, i32
  }
  func.func @transform_4(%arg0: i32, %arg1: i32) -> (i32, i32, i32) {
    %c0_i32 = arith.constant 0 : i32
    %c0_i32_0 = arith.constant 0 : i32
    return %arg0, %arg1, %c0_i32 : i32, i32, i32
  }
}

</mosaic_0001>

<llo_original>
// kernel: _lambda_.3
$region0: #{_lambda_.3}
  #allocation0 [shape = 'u32[]', space=smem, size = 0x4, offset = 0x4, fixed_abs, tag = 'smem constant byte address 0x4 - core index']
  #allocation1 [shape = 'u32[72,128]{1,0:T(1,128)}', space=vmem, size = 0x9000, scoped, tag = 'internal scratch']
  %s0 = inlined_call_operand.vmem [shape: bf16[4,6,480,180], index: 0, kind: input, shape index: {}]
  %s1 = inlined_call_operand.vmem [shape: bf16[3,180,64], index: 1, kind: input, shape index: {}]
  %s2 = inlined_call_operand.vmem [shape: f32[1,64], index: 2, kind: input, shape index: {}]
  %s3 = inlined_call_operand.vmem [shape: f32[1,64], index: 3, kind: input, shape index: {}]
  %s4 = inlined_call_operand.vmem [shape: bf16[4,2304,64], index: 4, kind: output, shape index: {}]
  %s5 = sld [smem:[#allocation0]]
  $region49: #{_lambda_.3} parent=0
    _
  %s7 = ssub.s32 1, %s5
  %s8 = scalar_select 0, %s7, %s5
  loop: start=0, step=1, limit=26
  $region2: #{_lambda_.3} parent=0 // loop_pre_header
    _
  $region3: #{_lambda_.3} parent=0 // loop_header
    %s10 = sphi 0, %s14
    %p11 = scmp.ge.s32.totalorder %s10, 26
    %s17 = sphi 0, %s29
    %s18 = sphi 0, %s25
    %s19 = sphi 0, %s17
    %s20 = sphi 0, %s18
    %s21 = sphi 0, %s19
    %s22 = sphi 0, %s20
    %s34 = sphi 0, %s36
    %s37 = sphi 0, %s34
    %s38 = sphi 0, %s37
    %s54 = sphi 0, %s38
    %s58 = sphi 0, %s58
    %s60 = sphi 0, %s58
    %s61 = sphi 0, %s60
    %s75 = sphi 0, %s61
    %s79 = sphi 0, %s79
    %s81 = sphi 0, %s79
    %s82 = sphi 0, %s81
    %s96 = sphi 0, %s82
    %s100 = sphi 0, %s100
    %s102 = sphi 0, %s100
    %s103 = sphi 0, %s102
    %s117 = sphi 0, %s103
    %s125 = sphi 0, %s127
    %s128 = sphi 0, %s125
    %s129 = sphi 0, %s128
    %s145 = sphi 0, %s129
  $region4: #{_lambda_.3} parent=0 // loop_header_branch
    %13 = sbr.rel (%p11) target = $region8
  $region5: #{_lambda_.3} parent=0 // loop_body
    %s15 = ssub.s32 %s10, 1
    %s16 = ssub.s32 %s10, 2
    %s23 = sadd.s32 1, %s18
    %p24 = scmp.ge.s32.totalorder %s23, 6
    %s25 = scalar_select %p24, 0, %s23
    %s26 = sadd.s32 1, %s17
    %s27 = scalar_select %p24, %s26, %s17
    %p28 = scmp.ge.s32.totalorder %s27, 4
    %s29 = scalar_select %p28, 0, %s27
    %s30 = ssub.s32 %s17, %s29
    %s31 = ssub.s32 %s18, %s25
    %s32 = sor.u32 %s30, %s31
    %p33 = scmp.eq.s32.totalorder %s32, 0
    %s35 = sadd.s32 %s34, 1
    %s36 = scalar_select %p33, %s34, %s35
    %p39 = pneg %p33
    %p40 = scmp.eq.s32.totalorder %s10, 23
    %p41 = por %p39, %p40
    %p42 = scmp.ne.s32.totalorder %s34, %s37
    %p43 = scmp.eq.s32.totalorder %s10, 0
    %p44 = por %p42, %p43
    %p45 = scmp.ne.s32.totalorder %s34, %s37
    %p46 = scmp.eq.s32.totalorder %s15, 23
    %p47 = por %p45, %p46
    %p48 = scmp.ne.s32.totalorder %s37, %s38
    %p49 = scmp.eq.s32.totalorder %s15, 0
    %p50 = por %p48, %p49
    %p51 = scmp.ne.s32.totalorder %s37, %s38
    %p52 = scmp.eq.s32.totalorder %s16, 23
    %p53 = por %p51, %p52
    %p55 = scmp.ne.s32.totalorder %s38, %s54
    %p56 = scmp.eq.s32.totalorder %s16, 0
    %p57 = por %p55, %p56
    %s59 = sadd.s32 %s58, 1
    %p62 = scmp.eq.s32.totalorder %s10, 23
    %p63 = scmp.ne.s32.totalorder %s58, %s60
    %p64 = scmp.eq.s32.totalorder %s10, 0
    %p65 = por %p63, %p64
    %p66 = scmp.ne.s32.totalorder %s58, %s60
    %p67 = scmp.eq.s32.totalorder %s15, 23
    %p68 = por %p66, %p67
    %p69 = scmp.ne.s32.totalorder %s60, %s61
    %p70 = scmp.eq.s32.totalorder %s15, 0
    %p71 = por %p69, %p70
    %p72 = scmp.ne.s32.totalorder %s60, %s61
    %p73 = scmp.eq.s32.totalorder %s16, 23
    %p74 = por %p72, %p73
    %p76 = scmp.ne.s32.totalorder %s61, %s75
    %p77 = scmp.eq.s32.totalorder %s16, 0
    %p78 = por %p76, %p77
    %s80 = sadd.s32 %s79, 1
    %p83 = scmp.eq.s32.totalorder %s10, 23
    %p84 = scmp.ne.s32.totalorder %s79, %s81
    %p85 = scmp.eq.s32.totalorder %s10, 0
    %p86 = por %p84, %p85
    %p87 = scmp.ne.s32.totalorder %s79, %s81
    %p88 = scmp.eq.s32.totalorder %s15, 23
    %p89 = por %p87, %p88
    %p90 = scmp.ne.s32.totalorder %s81, %s82
    %p91 = scmp.eq.s32.totalorder %s15, 0
    %p92 = por %p90, %p91
    %p93 = scmp.ne.s32.totalorder %s81, %s82
    %p94 = scmp.eq.s32.totalorder %s16, 23
    %p95 = por %p93, %p94
    %p97 = scmp.ne.s32.totalorder %s82, %s96
    %p98 = scmp.eq.s32.totalorder %s16, 0
    %p99 = por %p97, %p98
    %s101 = sadd.s32 %s100, 1
    %p104 = scmp.eq.s32.totalorder %s10, 23
    %p105 = scmp.ne.s32.totalorder %s100, %s102
    %p106 = scmp.eq.s32.totalorder %s10, 0
    %p107 = por %p105, %p106
    %p108 = scmp.ne.s32.totalorder %s100, %s102
    %p109 = scmp.eq.s32.totalorder %s15, 23
    %p110 = por %p108, %p109
    %p111 = scmp.ne.s32.totalorder %s102, %s103
    %p112 = scmp.eq.s32.totalorder %s15, 0
    %p113 = por %p111, %p112
    %p114 = scmp.ne.s32.totalorder %s102, %s103
    %p115 = scmp.eq.s32.totalorder %s16, 23
    %p116 = por %p114, %p115
    %p118 = scmp.ne.s32.totalorder %s103, %s117
    %p119 = scmp.eq.s32.totalorder %s16, 0
    %p120 = por %p118, %p119
    %s121 = ssub.s32 %s17, %s29
    %s122 = ssub.s32 %s18, %s25
    %s123 = sor.u32 %s121, %s122
    %p124 = scmp.eq.s32.totalorder %s123, 0
    %s126 = sadd.s32 %s125, 1
    %s127 = scalar_select %p124, %s125, %s126
    %p130 = pneg %p124
    %p131 = scmp.eq.s32.totalorder %s10, 23
    %p132 = por %p130, %p131
    %p133 = scmp.ne.s32.totalorder %s125, %s128
    %p134 = scmp.eq.s32.totalorder %s10, 0
    %p135 = por %p133, %p134
    %p136 = scmp.ne.s32.totalorder %s125, %s128
    %p137 = scmp.eq.s32.totalorder %s15, 23
    %p138 = por %p136, %p137
    %p139 = scmp.ne.s32.totalorder %s128, %s129
    %p140 = scmp.eq.s32.totalorder %s15, 0
    %p141 = por %p139, %p140
    %p142 = scmp.ne.s32.totalorder %s128, %s129
    %p143 = scmp.eq.s32.totalorder %s16, 23
    %p144 = por %p142, %p143
    %p146 = scmp.ne.s32.totalorder %s129, %s145
    %p147 = scmp.eq.s32.totalorder %s16, 0
    %p148 = por %p146, %p147
    %p149 = scmp.le.s32.totalorder 1, %s10
    %p150 = scmp.lt.s32.totalorder %s10, 25
    %p151 = pnand %p149, %p150
    %p152 = pneg %p151
    // Predicated region
    $region9: #{_lambda_.3} parent=5 // pred_check
      _
    $region10: #{_lambda_.3} parent=5 // pred_check_branch
      %154 = sbr.rel (%p151) target = $region12
    $region11: #{_lambda_.3} parent=5 // pred_region
      %s155 = ssub.s32 %s10, 1
      // Predicated region
      $region13: #{_lambda_.3} parent=11 // pred_check
        %p156 = pneg %p71
      $region14: #{_lambda_.3} parent=11 // pred_check_branch
        %158 = sbr.rel (%p156) target = $region16
      $region15: #{_lambda_.3} parent=11 // pred_region
        _
      $region16: #{_lambda_.3} parent=11 // pred_fallthru
        _
      // Predicated region
      $region17: #{_lambda_.3} parent=11 // pred_check
        %p159 = pneg %p92
      $region18: #{_lambda_.3} parent=11 // pred_check_branch
        %161 = sbr.rel (%p159) target = $region20
      $region19: #{_lambda_.3} parent=11 // pred_region
        _
      $region20: #{_lambda_.3} parent=11 // pred_fallthru
        _
      // Predicated region
      $region21: #{_lambda_.3} parent=11 // pred_check
        %p162 = pneg %p113
      $region22: #{_lambda_.3} parent=11 // pred_check_branch
        %164 = sbr.rel (%p162) target = $region24
      $region23: #{_lambda_.3} parent=11 // pred_region
        _
      $region24: #{_lambda_.3} parent=11 // pred_fallthru
        _
    $region12: #{_lambda_.3} parent=5 // pred_fallthru
      _
    %p165 = scmp.lt.s32.totalorder %s10, 24
    // Predicated region
    $region25: #{_lambda_.3} parent=5 // pred_check
      %p166 = pneg %p165
    $region26: #{_lambda_.3} parent=5 // pred_check_branch
      %168 = sbr.rel (%p166) target = $region28
    $region27: #{_lambda_.3} parent=5 // pred_region
      // Predicated region
      $region29: #{_lambda_.3} parent=27 // pred_check
        %p169 = pneg %p44
      $region30: #{_lambda_.3} parent=27 // pred_check_branch
        %171 = sbr.rel (%p169) target = $region32
      $region31: #{_lambda_.3} parent=27 // pred_region
        %p172 = scmp.lt.s32.totalorder %s17, 3
        %s173 = scalar_select %p172, %s17, 3
        %p174 = scmp.lt.s32.totalorder %s18, 5
        %s175 = scalar_select %p174, %s18, 5
        %s176 = smul.addr %s175, 120
        %s177 = smul.addr %s173, 720
        %s178 = sadd.s32 %s176, %s177
        %s179 = smul.addr %s178, 4
        %s180 = scalar_lea.vmem %s0, %s179
      $region32: #{_lambda_.3} parent=27 // pred_fallthru
        _
    $region28: #{_lambda_.3} parent=5 // pred_fallthru
      _
    %p181 = scmp.le.s32.totalorder 1, %s10
    %p182 = scmp.lt.s32.totalorder %s10, 25
    %p183 = pnand %p181, %p182
    %p184 = pneg %p183
    // Predicated region
    $region33: #{_lambda_.3} parent=5 // pred_check
      _
    $region34: #{_lambda_.3} parent=5 // pred_check_branch
      %186 = sbr.rel (%p183) target = $region36
    $region35: #{_lambda_.3} parent=5 // pred_region
      %s187 = ssub.s32 %s10, 1
      %p188 = scmp.lt.s32.totalorder %s19, 3
      %s189 = scalar_select %p188, %s19, 3
      %p190 = scmp.lt.s32.totalorder %s20, 5
      %s191 = scalar_select %p190, %s20, 5
      %s192 = smul.addr %s191, 120
      %s193 = smul.addr %s189, 720
      %s194 = sadd.s32 %s192, %s193
      %s195 = smul.addr %s194, 4
      %s196 = scalar_lea.vmem %s0, %s195
      %p197 = pneg %p50
      %p198 = pneg %p47
      %p199 = pneg %p71
      %p200 = pneg %p68
      %p201 = pneg %p92
      %p202 = pneg %p89
      %p203 = pneg %p113
      %p204 = pneg %p110
      %p205 = pneg %p141
      %p206 = pneg %p138
      %s207 = smul.u32 48, %s20
      %p208 = scmp.lt.s32.totalorder %s19, 3
      %s209 = scalar_select %p208, %s19, 3
      %p210 = scmp.lt.s32.totalorder %s207, 287
      %s211 = scalar_select %p210, %s207, 287
      %s212 = smul.addr %s209, 288
      %s213 = sadd.s32 %s211, %s212
      %s214 = smul.addr %s213, 4
      %s215 = scalar_lea.vmem %s4, %s214
      %p216 = scmp.lt.s32.totalorder %s19, 3
      %s217 = scalar_select %p216, %s19, 3
      %p218 = scmp.lt.s32.totalorder %s20, 5
      %s219 = scalar_select %p218, %s20, 5
      %s220 = smul.addr %s219, 120
      %s221 = smul.addr %s217, 720
      %s222 = sadd.s32 %s220, %s221
      %s223 = smul.addr %s222, 4
      %s224 = scalar_lea.vmem %s0, %s223
      %s225 = smul.u32 48, %s20
      %p226 = scmp.lt.s32.totalorder %s19, 3
      %s227 = scalar_select %p226, %s19, 3
      %p228 = scmp.lt.s32.totalorder %s225, 287
      %s229 = scalar_select %p228, %s225, 287
      %s230 = smul.addr %s227, 288
      %s231 = sadd.s32 %s229, %s230
      %s232 = smul.addr %s231, 4
      %s233 = scalar_lea.vmem %s4, %s232
      %s234 = smul.u32 48, %s20
      %v236 = vld [vmem:[%s224] sm:$0xff]
      %v237 = vld [vmem:[%s224 + $0x8] sm:$0xff]
      %v238 = vld [vmem:[%s224 + $0x10] sm:$0xff]
      %v239 = vld [vmem:[%s224 + $0x18] sm:$0xff]
      %v240 = vld [vmem:[%s224 + $0x20] sm:$0xff]
      %v241 = vld [vmem:[%s224 + $0x28] sm:$0xff]
      %v242 = vld [vmem:[%s224 + $0x30] sm:$0xff]
      %v243 = vld [vmem:[%s224 + $0x38] sm:$0xff]
      %v244 = vld [vmem:[%s224 + $0x40] sm:$0xff]
      %v245 = vld [vmem:[%s224 + $0x48] sm:$0xff]
      %v246 = vld [vmem:[%s224 + $0x50] sm:$0xff]
      %v247 = vld [vmem:[%s224 + $0x58] sm:$0xff]
      %v248 = vld [vmem:[%s224 + $0x60] sm:$0xff]
      %v249 = vld [vmem:[%s224 + $0x68] sm:$0xff]
      %v250 = vld [vmem:[%s224 + $0x70] sm:$0xff]
      %v251 = vld [vmem:[%s224 + $0x78] sm:$0xff]
      %v252 = vld [vmem:[%s224 + $0x80] sm:$0xff]
      %v253 = vld [vmem:[%s224 + $0x88] sm:$0xff]
      %v254 = vld [vmem:[%s224 + $0x90] sm:$0xff]
      %v255 = vld [vmem:[%s224 + $0x98] sm:$0xff]
      %v256 = vld [vmem:[%s224 + $0xa0] sm:$0xff]
      %v257 = vld [vmem:[%s224 + $0xa8] sm:$0xff]
      %v258 = vld [vmem:[%s224 + $0xb0] sm:$0xff]
      %v259 = vld [vmem:[%s224 + $0xb8] sm:$0xff]
      %v260 = vld [vmem:[%s224 + $0xc0] sm:$0xff]
      %v261 = vld [vmem:[%s224 + $0xc8] sm:$0xff]
      %v262 = vld [vmem:[%s224 + $0xd0] sm:$0xff]
      %v263 = vld [vmem:[%s224 + $0xd8] sm:$0xff]
      %v264 = vld [vmem:[%s224 + $0xe0] sm:$0xff]
      %v265 = vld [vmem:[%s224 + $0xe8] sm:$0xff]
      %v266 = vld [vmem:[%s224 + $0xf0] sm:$0xff]
      %v267 = vld [vmem:[%s224 + $0xf8] sm:$0xff]
      %v268 = vld [vmem:[%s224 + $0x100] sm:$0xff]
      %v269 = vld [vmem:[%s224 + $0x108] sm:$0xff]
      %v270 = vld [vmem:[%s224 + $0x110] sm:$0xff]
      %v271 = vld [vmem:[%s224 + $0x118] sm:$0xff]
      %v272 = vld [vmem:[%s224 + $0x120] sm:$0xff]
      %v273 = vld [vmem:[%s224 + $0x128] sm:$0xff]
      %v274 = vld [vmem:[%s224 + $0x130] sm:$0xff]
      %v275 = vld [vmem:[%s224 + $0x138] sm:$0xff]
      %v276 = vld [vmem:[%s224 + $0x140] sm:$0xff]
      %v277 = vld [vmem:[%s224 + $0x148] sm:$0xff]
      %v278 = vld [vmem:[%s224 + $0x150] sm:$0xff]
      %v279 = vld [vmem:[%s224 + $0x158] sm:$0xff]
      %v280 = vld [vmem:[%s224 + $0x160] sm:$0xff]
      %v281 = vld [vmem:[%s224 + $0x168] sm:$0xff]
      %v282 = vld [vmem:[%s224 + $0x170] sm:$0xff]
      %v283 = vld [vmem:[%s224 + $0x178] sm:$0xff]
      %v284 = vld [vmem:[%s1] sm:$0xf]
      %v285 = vld [vmem:[%s1 + $0x4] sm:$0xf]
      %v286 = vld [vmem:[%s1 + $0x8] sm:$0xf]
      %v287 = vld [vmem:[%s1 + $0xc] sm:$0xf]
      %v288 = vld [vmem:[%s1 + $0x10] sm:$0xf]
      %v289 = vld [vmem:[%s1 + $0x14] sm:$0xf]
      %v290 = vld [vmem:[%s1 + $0x18] sm:$0xf]
      %v291 = vld [vmem:[%s1 + $0x1c] sm:$0xf]
      %v292 = vld [vmem:[%s1 + $0x20] sm:$0xf]
      %v293 = vld [vmem:[%s1 + $0x24] sm:$0xf]
      %v294 = vld [vmem:[%s1 + $0x28] sm:$0xf]
      %v295 = vld [vmem:[%s1 + $0x2c] sm:$0xf]
      %v296 = vld [vmem:[%s1 + $0x30] sm:$0xf]
      %v297 = vld [vmem:[%s1 + $0x34] sm:$0xf]
      %v298 = vld [vmem:[%s1 + $0x38] sm:$0xf]
      %v299 = vld [vmem:[%s1 + $0x3c] sm:$0xf]
      %v300 = vld [vmem:[%s1 + $0x40] sm:$0xf]
      %v301 = vld [vmem:[%s1 + $0x44] sm:$0xf]
      %v302 = vld [vmem:[%s1 + $0x48] sm:$0xf]
      %v303 = vld [vmem:[%s1 + $0x4c] sm:$0xf]
      %v304 = vld [vmem:[%s1 + $0x50] sm:$0xf]
      %v305 = vld [vmem:[%s1 + $0x54] sm:$0xf]
      %v306 = vld [vmem:[%s1 + $0x58] sm:$0x3]
      %v307 = vld [vmem:[%s224 + $0x180] sm:$0xff]
      %v308 = vld [vmem:[%s224 + $0x188] sm:$0xff]
      %v309 = vld [vmem:[%s224 + $0x190] sm:$0xff]
      %v310 = vld [vmem:[%s224 + $0x198] sm:$0xff]
      %v311 = vld [vmem:[%s224 + $0x1a0] sm:$0xff]
      %v312 = vld [vmem:[%s224 + $0x1a8] sm:$0xff]
      %s313 = scalar_lea.vmem %s1, 92
      %v314 = vld [vmem:[%s313] sm:$0xf]
      %v315 = vld [vmem:[%s313 + $0x4] sm:$0xf]
      %v316 = vld [vmem:[%s313 + $0x8] sm:$0xf]
      %v317 = vld [vmem:[%s313 + $0xc] sm:$0xf]
      %v318 = vld [vmem:[%s313 + $0x10] sm:$0xf]
      %v319 = vld [vmem:[%s313 + $0x14] sm:$0xf]
      %v320 = vld [vmem:[%s313 + $0x18] sm:$0xf]
      %v321 = vld [vmem:[%s313 + $0x1c] sm:$0xf]
      %v322 = vld [vmem:[%s313 + $0x20] sm:$0xf]
      %v323 = vld [vmem:[%s313 + $0x24] sm:$0xf]
      %v324 = vld [vmem:[%s313 + $0x28] sm:$0xf]
      %v325 = vld [vmem:[%s313 + $0x2c] sm:$0xf]
      %v326 = vld [vmem:[%s313 + $0x30] sm:$0xf]
      %v327 = vld [vmem:[%s313 + $0x34] sm:$0xf]
      %v328 = vld [vmem:[%s313 + $0x38] sm:$0xf]
      %v329 = vld [vmem:[%s313 + $0x3c] sm:$0xf]
      %v330 = vld [vmem:[%s313 + $0x40] sm:$0xf]
      %v331 = vld [vmem:[%s313 + $0x44] sm:$0xf]
      %v332 = vld [vmem:[%s313 + $0x48] sm:$0xf]
      %v333 = vld [vmem:[%s313 + $0x4c] sm:$0xf]
      %v334 = vld [vmem:[%s313 + $0x50] sm:$0xf]
      %v335 = vld [vmem:[%s313 + $0x54] sm:$0xf]
      %v336 = vld [vmem:[%s313 + $0x58] sm:$0x3]
      %v385 = vunpack.c.l.b16 %v242
      %v386 = vunpack.c.h.b16 %v242
      %v387 = vunpack.c.l.b16 %v243
      %v388 = vunpack.c.h.b16 %v243
      %v389 = vunpack.c.l.b16 %v244
      %v390 = vunpack.c.h.b16 %v244
      %v391 = vunpack.c.l.b16 %v245
      %v392 = vunpack.c.h.b16 %v245
      %v393 = vunpack.c.l.b16 %v246
      %v394 = vunpack.c.h.b16 %v246
      %v395 = vunpack.c.l.b16 %v247
      %v396 = vunpack.c.h.b16 %v247
      %v397 = vunpack.c.l.b16 %v248
      %v398 = vunpack.c.h.b16 %v248
      %v399 = vunpack.c.l.b16 %v249
      %v400 = vunpack.c.h.b16 %v249
      %v401 = vunpack.c.l.b16 %v250
      %v402 = vunpack.c.h.b16 %v250
      %v403 = vunpack.c.l.b16 %v251
      %v404 = vunpack.c.h.b16 %v251
      %v405 = vunpack.c.l.b16 %v252
      %v406 = vunpack.c.h.b16 %v252
      %v407 = vunpack.c.l.b16 %v253
      %v408 = vunpack.c.h.b16 %v253
      %v409 = vunpack.c.l.b16 %v254
      %v410 = vunpack.c.h.b16 %v254
      %v411 = vunpack.c.l.b16 %v255
      %v412 = vunpack.c.h.b16 %v255
      %v413 = vunpack.c.l.b16 %v256
      %v414 = vunpack.c.h.b16 %v256
      %v415 = vunpack.c.l.b16 %v257
      %v416 = vunpack.c.h.b16 %v257
      %v417 = vunpack.c.l.b16 %v258
      %v418 = vunpack.c.h.b16 %v258
      %v419 = vunpack.c.l.b16 %v259
      %v420 = vunpack.c.h.b16 %v259
      %v421 = vunpack.c.l.b16 %v260
      %v422 = vunpack.c.h.b16 %v260
      %v423 = vunpack.c.l.b16 %v261
      %v424 = vunpack.c.h.b16 %v261
      %v425 = vunpack.c.l.b16 %v262
      %v426 = vunpack.c.h.b16 %v262
      %v427 = vunpack.c.l.b16 %v263
      %v428 = vunpack.c.h.b16 %v263
      %v429 = vunpack.c.l.b16 %v264
      %v430 = vunpack.c.h.b16 %v264
      %v431 = vunpack.c.l.b16 %v265
      %v432 = vunpack.c.h.b16 %v265
      %v433 = vunpack.c.l.b16 %v266
      %v434 = vunpack.c.h.b16 %v266
      %v435 = vunpack.c.l.b16 %v267
      %v436 = vunpack.c.h.b16 %v267
      %v437 = vunpack.c.l.b16 %v268
      %v438 = vunpack.c.h.b16 %v268
      %v439 = vunpack.c.l.b16 %v269
      %v440 = vunpack.c.h.b16 %v269
      %v441 = vunpack.c.l.b16 %v270
      %v442 = vunpack.c.h.b16 %v270
      %v443 = vunpack.c.l.b16 %v271
      %v444 = vunpack.c.h.b16 %v271
      %v445 = vunpack.c.l.b16 %v272
      %v446 = vunpack.c.h.b16 %v272
      %v447 = vunpack.c.l.b16 %v273
      %v448 = vunpack.c.h.b16 %v273
      %v449 = vunpack.c.l.b16 %v274
      %v450 = vunpack.c.h.b16 %v274
      %v451 = vunpack.c.l.b16 %v275
      %v452 = vunpack.c.h.b16 %v275
      %v453 = vunpack.c.l.b16 %v276
      %v454 = vunpack.c.h.b16 %v276
      %v455 = vunpack.c.l.b16 %v277
      %v456 = vunpack.c.h.b16 %v277
      %v457 = vunpack.c.l.b16 %v278
      %v458 = vunpack.c.h.b16 %v278
      %v459 = vunpack.c.l.b16 %v279
      %v460 = vunpack.c.h.b16 %v279
      %v461 = vunpack.c.l.b16 %v280
      %v462 = vunpack.c.h.b16 %v280
      %v463 = vunpack.c.l.b16 %v281
      %v464 = vunpack.c.h.b16 %v281
      %v465 = vunpack.c.l.b16 %v282
      %v466 = vunpack.c.h.b16 %v282
      %v467 = vunpack.c.l.b16 %v283
      %v468 = vunpack.c.h.b16 %v283
      %v469 = vunpack.c.l.b16 %v307
      %v470 = vunpack.c.h.b16 %v307
      %v471 = vunpack.c.l.b16 %v308
      %v472 = vunpack.c.h.b16 %v308
      %v473 = vunpack.c.l.b16 %v309
      %v474 = vunpack.c.h.b16 %v309
      %v475 = vunpack.c.l.b16 %v310
      %v476 = vunpack.c.h.b16 %v310
      %v477 = vunpack.c.l.b16 %v311
      %v478 = vunpack.c.h.b16 %v311
      %v479 = vunpack.c.l.b16 %v312
      %v480 = vunpack.c.h.b16 %v312
      %v481 = vpack.c.b16 %v387, %v385
      %v482 = vpack.c.b16 %v388, %v386
      %v483 = vpack.c.b16 %v391, %v389
      %v484 = vpack.c.b16 %v392, %v390
      %v485 = vpack.c.b16 %v395, %v393
      %v486 = vpack.c.b16 %v396, %v394
      %v487 = vpack.c.b16 %v399, %v397
      %v488 = vpack.c.b16 %v400, %v398
      %v489 = vpack.c.b16 %v403, %v401
      %v490 = vpack.c.b16 %v404, %v402
      %v491 = vpack.c.b16 %v407, %v405
      %v492 = vpack.c.b16 %v408, %v406
      %v493 = vpack.c.b16 %v411, %v409
      %v494 = vpack.c.b16 %v412, %v410
      %v495 = vpack.c.b16 %v415, %v413
      %v496 = vpack.c.b16 %v416, %v414
      %v497 = vpack.c.b16 %v419, %v417
      %v498 = vpack.c.b16 %v420, %v418
      %v499 = vpack.c.b16 %v423, %v421
      %v500 = vpack.c.b16 %v424, %v422
      %v501 = vpack.c.b16 %v427, %v425
      %v502 = vpack.c.b16 %v428, %v426
      %v503 = vpack.c.b16 %v431, %v429
      %v504 = vpack.c.b16 %v432, %v430
      %v505 = vpack.c.b16 %v435, %v433
      %v506 = vpack.c.b16 %v436, %v434
      %v507 = vpack.c.b16 %v439, %v437
      %v508 = vpack.c.b16 %v440, %v438
      %v509 = vpack.c.b16 %v443, %v441
      %v510 = vpack.c.b16 %v444, %v442
      %v511 = vpack.c.b16 %v447, %v445
      %v512 = vpack.c.b16 %v448, %v446
      %v513 = vpack.c.b16 %v451, %v449
      %v514 = vpack.c.b16 %v452, %v450
      %v515 = vpack.c.b16 %v455, %v453
      %v516 = vpack.c.b16 %v456, %v454
      %v517 = vpack.c.b16 %v459, %v457
      %v518 = vpack.c.b16 %v460, %v458
      %v519 = vpack.c.b16 %v463, %v461
      %v520 = vpack.c.b16 %v464, %v462
      %v521 = vpack.c.b16 %v467, %v465
      %v522 = vpack.c.b16 %v468, %v466
      %v523 = vpack.c.b16 %v471, %v469
      %v524 = vpack.c.b16 %v472, %v470
      %v525 = vpack.c.b16 %v475, %v473
      %v526 = vpack.c.b16 %v476, %v474
      %v527 = vpack.c.b16 %v479, %v477
      %v528 = vpack.c.b16 %v480, %v478
      %v576 = vunpack.c.l.b16 %v314
      %v577 = vunpack.c.l.b16 %v315
      %v578 = vunpack.c.l.b16 %v316
      %v579 = vunpack.c.l.b16 %v317
      %v580 = vunpack.c.l.b16 %v318
      %v581 = vunpack.c.l.b16 %v319
      %v582 = vunpack.c.l.b16 %v320
      %v583 = vunpack.c.l.b16 %v321
      %v584 = vunpack.c.l.b16 %v322
      %v585 = vunpack.c.l.b16 %v323
      %v586 = vunpack.c.l.b16 %v324
      %v587 = vunpack.c.l.b16 %v325
      %v588 = vunpack.c.l.b16 %v326
      %v589 = vunpack.c.l.b16 %v327
      %v590 = vunpack.c.l.b16 %v328
      %v591 = vunpack.c.l.b16 %v329
      %v592 = vunpack.c.l.b16 %v330
      %v593 = vunpack.c.l.b16 %v331
      %v594 = vunpack.c.l.b16 %v332
      %v595 = vunpack.c.l.b16 %v333
      %v596 = vunpack.c.l.b16 %v334
      %v597 = vunpack.c.l.b16 %v335
      %v598 = vunpack.c.l.b16 %v336
      %v599 = vpack.c.b16 %v577, %v576
      %v600 = vpack.c.b16 %v579, %v578
      %v601 = vpack.c.b16 %v581, %v580
      %v602 = vpack.c.b16 %v583, %v582
      %v603 = vpack.c.b16 %v585, %v584
      %v604 = vpack.c.b16 %v587, %v586
      %v605 = vpack.c.b16 %v589, %v588
      %v606 = vpack.c.b16 %v591, %v590
      %v607 = vpack.c.b16 %v593, %v592
      %v608 = vpack.c.b16 %v595, %v594
      %v609 = vpack.c.b16 %v597, %v596
      %v610 = vpack.c.b16 %v598, %v598
      %vm622 = vcmask 424960
      %v624 = vsel %vm622, %v482, 0
      %v627 = vsel %vm622, %v484, 0
      %v630 = vsel %vm622, %v486, 0
      %v633 = vsel %vm622, %v488, 0
      %v636 = vsel %vm622, %v490, 0
      %v639 = vsel %vm622, %v492, 0
      %v642 = vsel %vm622, %v494, 0
      %v645 = vsel %vm622, %v496, 0
      %v648 = vsel %vm622, %v498, 0
      %v651 = vsel %vm622, %v500, 0
      %v654 = vsel %vm622, %v502, 0
      %v657 = vsel %vm622, %v504, 0
      %v660 = vsel %vm622, %v506, 0
      %v663 = vsel %vm622, %v508, 0
      %v666 = vsel %vm622, %v510, 0
      %v669 = vsel %vm622, %v512, 0
      %v672 = vsel %vm622, %v514, 0
      %v675 = vsel %vm622, %v516, 0
      %v678 = vsel %vm622, %v518, 0
      %v681 = vsel %vm622, %v520, 0
      %v684 = vsel %vm622, %v522, 0
      %v687 = vsel %vm622, %v524, 0
      %v690 = vsel %vm622, %v526, 0
      %v693 = vsel %vm622, %v528, 0
      %vm695 = vcmask 1041408
      %v697 = vsel %vm695, %v610, 0
      %699 = vmatpush.bf16.msra.mxu0 %v606
      %700 = vmatpush.bf16.msra.mxu0 %v605
      %701 = vmatpush.bf16.msra.mxu0 %v604
      %702 = vmatpush.bf16.msra.mxu0 %v603
      %703 = vmatpush.bf16.msra.mxu0 %v602
      %704 = vmatpush.bf16.msra.mxu0 %v601
      %705 = vmatpush.bf16.msra.mxu0 %v600
      %706 = vmatpush.bf16.msra.mxu0 %v599
      %707 = vmatmul.bf16.gmra.mxu0 %v481
      %v708 = vpop.f32.mrf.mxu0
      %v709 = vadd.f32 0.0, %v708
      %v710 = vpop.f32.mrf.mxu0
      %v711 = vadd.f32 0.0, %v710
      %712 = vmatmul.bf16.gmra.mxu0 %v483
      %v713 = vpop.f32.mrf.mxu0
      %v714 = vadd.f32 0.0, %v713
      %v715 = vpop.f32.mrf.mxu0
      %v716 = vadd.f32 0.0, %v715
      %717 = vmatmul.bf16.gmra.mxu0 %v485
      %v718 = vpop.f32.mrf.mxu0
      %v719 = vadd.f32 0.0, %v718
      %v720 = vpop.f32.mrf.mxu0
      %v721 = vadd.f32 0.0, %v720
      %722 = vmatmul.bf16.gmra.mxu0 %v487
      %v723 = vpop.f32.mrf.mxu0
      %v724 = vadd.f32 0.0, %v723
      %v725 = vpop.f32.mrf.mxu0
      %v726 = vadd.f32 0.0, %v725
      %727 = vmatmul.bf16.gmra.mxu0 %v489
      %v728 = vpop.f32.mrf.mxu0
      %v729 = vadd.f32 0.0, %v728
      %v730 = vpop.f32.mrf.mxu0
      %v731 = vadd.f32 0.0, %v730
      %732 = vmatmul.bf16.gmra.mxu0 %v491
      %v733 = vpop.f32.mrf.mxu0
      %v734 = vadd.f32 0.0, %v733
      %v735 = vpop.f32.mrf.mxu0
      %v736 = vadd.f32 0.0, %v735
      %737 = vmatmul.bf16.gmra.mxu0 %v493
      %v738 = vpop.f32.mrf.mxu0
      %v739 = vadd.f32 0.0, %v738
      %v740 = vpop.f32.mrf.mxu0
      %v741 = vadd.f32 0.0, %v740
      %742 = vmatmul.bf16.gmra.mxu0 %v495
      %v743 = vpop.f32.mrf.mxu0
      %v744 = vadd.f32 0.0, %v743
      %v745 = vpop.f32.mrf.mxu0
      %v746 = vadd.f32 0.0, %v745
      %747 = vmatmul.bf16.gmra.mxu0 %v497
      %v748 = vpop.f32.mrf.mxu0
      %v749 = vadd.f32 0.0, %v748
      %v750 = vpop.f32.mrf.mxu0
      %v751 = vadd.f32 0.0, %v750
      %752 = vmatmul.bf16.gmra.mxu0 %v499
      %v753 = vpop.f32.mrf.mxu0
      %v754 = vadd.f32 0.0, %v753
      %v755 = vpop.f32.mrf.mxu0
      %v756 = vadd.f32 0.0, %v755
      %757 = vmatmul.bf16.gmra.mxu0 %v501
      %v758 = vpop.f32.mrf.mxu0
      %v759 = vadd.f32 0.0, %v758
      %v760 = vpop.f32.mrf.mxu0
      %v761 = vadd.f32 0.0, %v760
      %762 = vmatmul.bf16.gmra.mxu0 %v503
      %v763 = vpop.f32.mrf.mxu0
      %v764 = vadd.f32 0.0, %v763
      %v765 = vpop.f32.mrf.mxu0
      %v766 = vadd.f32 0.0, %v765
      %767 = vmatmul.bf16.gmra.mxu0 %v505
      %v768 = vpop.f32.mrf.mxu0
      %v769 = vadd.f32 0.0, %v768
      %v770 = vpop.f32.mrf.mxu0
      %v771 = vadd.f32 0.0, %v770
      %772 = vmatmul.bf16.gmra.mxu0 %v507
      %v773 = vpop.f32.mrf.mxu0
      %v774 = vadd.f32 0.0, %v773
      %v775 = vpop.f32.mrf.mxu0
      %v776 = vadd.f32 0.0, %v775
      %777 = vmatmul.bf16.gmra.mxu0 %v509
      %v778 = vpop.f32.mrf.mxu0
      %v779 = vadd.f32 0.0, %v778
      %v780 = vpop.f32.mrf.mxu0
      %v781 = vadd.f32 0.0, %v780
      %782 = vmatmul.bf16.gmra.mxu0 %v511
      %v783 = vpop.f32.mrf.mxu0
      %v784 = vadd.f32 0.0, %v783
      %v785 = vpop.f32.mrf.mxu0
      %v786 = vadd.f32 0.0, %v785
      %787 = vmatmul.bf16.gmra.mxu0 %v513
      %v788 = vpop.f32.mrf.mxu0
      %v789 = vadd.f32 0.0, %v788
      %v790 = vpop.f32.mrf.mxu0
      %v791 = vadd.f32 0.0, %v790
      %792 = vmatmul.bf16.gmra.mxu0 %v515
      %v793 = vpop.f32.mrf.mxu0
      %v794 = vadd.f32 0.0, %v793
      %v795 = vpop.f32.mrf.mxu0
      %v796 = vadd.f32 0.0, %v795
      %797 = vmatmul.bf16.gmra.mxu0 %v517
      %v798 = vpop.f32.mrf.mxu0
      %v799 = vadd.f32 0.0, %v798
      %v800 = vpop.f32.mrf.mxu0
      %v801 = vadd.f32 0.0, %v800
      %802 = vmatmul.bf16.gmra.mxu0 %v519
      %v803 = vpop.f32.mrf.mxu0
      %v804 = vadd.f32 0.0, %v803
      %v805 = vpop.f32.mrf.mxu0
      %v806 = vadd.f32 0.0, %v805
      %807 = vmatmul.bf16.gmra.mxu0 %v521
      %v808 = vpop.f32.mrf.mxu0
      %v809 = vadd.f32 0.0, %v808
      %v810 = vpop.f32.mrf.mxu0
      %v811 = vadd.f32 0.0, %v810
      %812 = vmatmul.bf16.gmra.mxu0 %v523
      %v813 = vpop.f32.mrf.mxu0
      %v814 = vadd.f32 0.0, %v813
      %v815 = vpop.f32.mrf.mxu0
      %v816 = vadd.f32 0.0, %v815
      %817 = vmatmul.bf16.gmra.mxu0 %v525
      %v818 = vpop.f32.mrf.mxu0
      %v819 = vadd.f32 0.0, %v818
      %v820 = vpop.f32.mrf.mxu0
      %v821 = vadd.f32 0.0, %v820
      %822 = vmatmul.bf16.gmra.mxu0 %v527
      %v823 = vpop.f32.mrf.mxu0
      %v824 = vadd.f32 0.0, %v823
      %v825 = vpop.f32.mrf.mxu0
      %v826 = vadd.f32 0.0, %v825
      %827 = vdwg.mxu0
      %828 = vmatpush.bf16.msra.mxu0 0
      %829 = vmatpush.bf16.msra.mxu0 0
      %830 = vmatpush.bf16.msra.mxu0 0
      %831 = vmatpush.bf16.msra.mxu0 0
      %832 = vmatpush.bf16.msra.mxu0 %v697
      %833 = vmatpush.bf16.msra.mxu0 %v609
      %834 = vmatpush.bf16.msra.mxu0 %v608
      %835 = vmatpush.bf16.msra.mxu0 %v607
      %836 = vmatmul.bf16.gmra.mxu0 %v624
      %v837 = vpop.f32.mrf.mxu0
      %v838 = vadd.f32 %v709, %v837
      %v839 = vpop.f32.mrf.mxu0
      %v840 = vadd.f32 %v711, %v839
      %841 = vmatmul.bf16.gmra.mxu0 %v627
      %v842 = vpop.f32.mrf.mxu0
      %v843 = vadd.f32 %v714, %v842
      %v844 = vpop.f32.mrf.mxu0
      %v845 = vadd.f32 %v716, %v844
      %846 = vmatmul.bf16.gmra.mxu0 %v630
      %v847 = vpop.f32.mrf.mxu0
      %v848 = vadd.f32 %v719, %v847
      %v849 = vpop.f32.mrf.mxu0
      %v850 = vadd.f32 %v721, %v849
      %851 = vmatmul.bf16.gmra.mxu0 %v633
      %v852 = vpop.f32.mrf.mxu0
      %v853 = vadd.f32 %v724, %v852
      %v854 = vpop.f32.mrf.mxu0
      %v855 = vadd.f32 %v726, %v854
      %856 = vmatmul.bf16.gmra.mxu0 %v636
      %v857 = vpop.f32.mrf.mxu0
      %v858 = vadd.f32 %v729, %v857
      %v859 = vpop.f32.mrf.mxu0
      %v860 = vadd.f32 %v731, %v859
      %861 = vmatmul.bf16.gmra.mxu0 %v639
      %v862 = vpop.f32.mrf.mxu0
      %v863 = vadd.f32 %v734, %v862
      %v864 = vpop.f32.mrf.mxu0
      %v865 = vadd.f32 %v736, %v864
      %866 = vmatmul.bf16.gmra.mxu0 %v642
      %v867 = vpop.f32.mrf.mxu0
      %v868 = vadd.f32 %v739, %v867
      %v869 = vpop.f32.mrf.mxu0
      %v870 = vadd.f32 %v741, %v869
      %871 = vmatmul.bf16.gmra.mxu0 %v645
      %v872 = vpop.f32.mrf.mxu0
      %v873 = vadd.f32 %v744, %v872
      %v874 = vpop.f32.mrf.mxu0
      %v875 = vadd.f32 %v746, %v874
      %876 = vmatmul.bf16.gmra.mxu0 %v648
      %v877 = vpop.f32.mrf.mxu0
      %v878 = vadd.f32 %v749, %v877
      %v879 = vpop.f32.mrf.mxu0
      %v880 = vadd.f32 %v751, %v879
      %881 = vmatmul.bf16.gmra.mxu0 %v651
      %v882 = vpop.f32.mrf.mxu0
      %v883 = vadd.f32 %v754, %v882
      %v884 = vpop.f32.mrf.mxu0
      %v885 = vadd.f32 %v756, %v884
      %886 = vmatmul.bf16.gmra.mxu0 %v654
      %v887 = vpop.f32.mrf.mxu0
      %v888 = vadd.f32 %v759, %v887
      %v889 = vpop.f32.mrf.mxu0
      %v890 = vadd.f32 %v761, %v889
      %891 = vmatmul.bf16.gmra.mxu0 %v657
      %v892 = vpop.f32.mrf.mxu0
      %v893 = vadd.f32 %v764, %v892
      %v894 = vpop.f32.mrf.mxu0
      %v895 = vadd.f32 %v766, %v894
      %896 = vmatmul.bf16.gmra.mxu0 %v660
      %v897 = vpop.f32.mrf.mxu0
      %v898 = vadd.f32 %v769, %v897
      %v899 = vpop.f32.mrf.mxu0
      %v900 = vadd.f32 %v771, %v899
      %901 = vmatmul.bf16.gmra.mxu0 %v663
      %v902 = vpop.f32.mrf.mxu0
      %v903 = vadd.f32 %v774, %v902
      %v904 = vpop.f32.mrf.mxu0
      %v905 = vadd.f32 %v776, %v904
      %906 = vmatmul.bf16.gmra.mxu0 %v666
      %v907 = vpop.f32.mrf.mxu0
      %v908 = vadd.f32 %v779, %v907
      %v909 = vpop.f32.mrf.mxu0
      %v910 = vadd.f32 %v781, %v909
      %911 = vmatmul.bf16.gmra.mxu0 %v669
      %v912 = vpop.f32.mrf.mxu0
      %v913 = vadd.f32 %v784, %v912
      %v914 = vpop.f32.mrf.mxu0
      %v915 = vadd.f32 %v786, %v914
      %916 = vmatmul.bf16.gmra.mxu0 %v672
      %v917 = vpop.f32.mrf.mxu0
      %v918 = vadd.f32 %v789, %v917
      %v919 = vpop.f32.mrf.mxu0
      %v920 = vadd.f32 %v791, %v919
      %921 = vmatmul.bf16.gmra.mxu0 %v675
      %v922 = vpop.f32.mrf.mxu0
      %v923 = vadd.f32 %v794, %v922
      %v924 = vpop.f32.mrf.mxu0
      %v925 = vadd.f32 %v796, %v924
      %926 = vmatmul.bf16.gmra.mxu0 %v678
      %v927 = vpop.f32.mrf.mxu0
      %v928 = vadd.f32 %v799, %v927
      %v929 = vpop.f32.mrf.mxu0
      %v930 = vadd.f32 %v801, %v929
      %931 = vmatmul.bf16.gmra.mxu0 %v681
      %v932 = vpop.f32.mrf.mxu0
      %v933 = vadd.f32 %v804, %v932
      %v934 = vpop.f32.mrf.mxu0
      %v935 = vadd.f32 %v806, %v934
      %936 = vmatmul.bf16.gmra.mxu0 %v684
      %v937 = vpop.f32.mrf.mxu0
      %v938 = vadd.f32 %v809, %v937
      %v939 = vpop.f32.mrf.mxu0
      %v940 = vadd.f32 %v811, %v939
      %941 = vmatmul.bf16.gmra.mxu0 %v687
      %v942 = vpop.f32.mrf.mxu0
      %v943 = vadd.f32 %v814, %v942
      %v944 = vpop.f32.mrf.mxu0
      %v945 = vadd.f32 %v816, %v944
      %946 = vmatmul.bf16.gmra.mxu0 %v690
      %v947 = vpop.f32.mrf.mxu0
      %v948 = vadd.f32 %v819, %v947
      %v949 = vpop.f32.mrf.mxu0
      %v950 = vadd.f32 %v821, %v949
      %951 = vmatmul.bf16.gmra.mxu0 %v693
      %v952 = vpop.f32.mrf.mxu0
      %v953 = vadd.f32 %v824, %v952
      %v954 = vpop.f32.mrf.mxu0
      %v955 = vadd.f32 %v826, %v954
      %956 = vdwg.mxu0
      %v963 = vunpack.c.l.b16 %v236
      %v964 = vunpack.c.h.b16 %v236
      %v965 = vunpack.c.l.b16 %v237
      %v966 = vunpack.c.h.b16 %v237
      %v967 = vunpack.c.l.b16 %v238
      %v968 = vunpack.c.h.b16 %v238
      %v969 = vunpack.c.l.b16 %v239
      %v970 = vunpack.c.h.b16 %v239
      %v971 = vunpack.c.l.b16 %v240
      %v972 = vunpack.c.h.b16 %v240
      %v973 = vunpack.c.l.b16 %v241
      %v974 = vunpack.c.h.b16 %v241
      %v975 = vpack.c.b16 %v965, %v963
      %v976 = vpack.c.b16 %v966, %v964
      %v977 = vpack.c.b16 %v969, %v967
      %v978 = vpack.c.b16 %v970, %v968
      %v979 = vpack.c.b16 %v973, %v971
      %v980 = vpack.c.b16 %v974, %v972
      %v1007 = vunpack.c.l.b16 %v284
      %v1008 = vunpack.c.l.b16 %v285
      %v1009 = vunpack.c.l.b16 %v286
      %v1010 = vunpack.c.l.b16 %v287
      %v1011 = vunpack.c.l.b16 %v288
      %v1012 = vunpack.c.l.b16 %v289
      %v1013 = vunpack.c.l.b16 %v290
      %v1014 = vunpack.c.l.b16 %v291
      %v1015 = vunpack.c.l.b16 %v292
      %v1016 = vunpack.c.l.b16 %v293
      %v1017 = vunpack.c.l.b16 %v294
      %v1018 = vunpack.c.l.b16 %v295
      %v1019 = vunpack.c.l.b16 %v296
      %v1020 = vunpack.c.l.b16 %v297
      %v1021 = vunpack.c.l.b16 %v298
      %v1022 = vunpack.c.l.b16 %v299
      %v1023 = vunpack.c.l.b16 %v300
      %v1024 = vunpack.c.l.b16 %v301
      %v1025 = vunpack.c.l.b16 %v302
      %v1026 = vunpack.c.l.b16 %v303
      %v1027 = vunpack.c.l.b16 %v304
      %v1028 = vunpack.c.l.b16 %v305
      %v1029 = vunpack.c.l.b16 %v306
      %v1030 = vpack.c.b16 %v1008, %v1007
      %v1031 = vpack.c.b16 %v1010, %v1009
      %v1032 = vpack.c.b16 %v1012, %v1011
      %v1033 = vpack.c.b16 %v1014, %v1013
      %v1034 = vpack.c.b16 %v1016, %v1015
      %v1035 = vpack.c.b16 %v1018, %v1017
      %v1036 = vpack.c.b16 %v1020, %v1019
      %v1037 = vpack.c.b16 %v1022, %v1021
      %v1038 = vpack.c.b16 %v1024, %v1023
      %v1039 = vpack.c.b16 %v1026, %v1025
      %v1040 = vpack.c.b16 %v1028, %v1027
      %v1041 = vpack.c.b16 %v1029, %v1029
      %v1054 = vsel %vm622, %v976, 0
      %v1057 = vsel %vm622, %v978, 0
      %v1060 = vsel %vm622, %v980, 0
      %v1063 = vsel %vm695, %v1041, 0
      %1065 = vmatpush.bf16.msra.mxu0 %v1037
      %1066 = vmatpush.bf16.msra.mxu0 %v1036
      %1067 = vmatpush.bf16.msra.mxu0 %v1035
      %1068 = vmatpush.bf16.msra.mxu0 %v1034
      %1069 = vmatpush.bf16.msra.mxu0 %v1033
      %1070 = vmatpush.bf16.msra.mxu0 %v1032
      %1071 = vmatpush.bf16.msra.mxu0 %v1031
      %1072 = vmatpush.bf16.msra.mxu0 %v1030
      %1073 = vmatmul.bf16.gmra.mxu0 %v975
      %v1074 = vpop.f32.mrf.mxu0
      %v1075 = vadd.f32 %v838, %v1074
      %v1076 = vpop.f32.mrf.mxu0
      %v1077 = vadd.f32 %v840, %v1076
      %1078 = vmatmul.bf16.gmra.mxu0 %v977
      %v1079 = vpop.f32.mrf.mxu0
      %v1080 = vadd.f32 %v843, %v1079
      %v1081 = vpop.f32.mrf.mxu0
      %v1082 = vadd.f32 %v845, %v1081
      %1083 = vmatmul.bf16.gmra.mxu0 %v979
      %v1084 = vpop.f32.mrf.mxu0
      %v1085 = vadd.f32 %v848, %v1084
      %v1086 = vpop.f32.mrf.mxu0
      %v1087 = vadd.f32 %v850, %v1086
      %1088 = vmatmul.bf16.gmra.mxu0 %v481
      %v1089 = vpop.f32.mrf.mxu0
      %v1090 = vadd.f32 %v853, %v1089
      %v1091 = vpop.f32.mrf.mxu0
      %v1092 = vadd.f32 %v855, %v1091
      %1093 = vmatmul.bf16.gmra.mxu0 %v483
      %v1094 = vpop.f32.mrf.mxu0
      %v1095 = vadd.f32 %v858, %v1094
      %v1096 = vpop.f32.mrf.mxu0
      %v1097 = vadd.f32 %v860, %v1096
      %1098 = vmatmul.bf16.gmra.mxu0 %v485
      %v1099 = vpop.f32.mrf.mxu0
      %v1100 = vadd.f32 %v863, %v1099
      %v1101 = vpop.f32.mrf.mxu0
      %v1102 = vadd.f32 %v865, %v1101
      %1103 = vmatmul.bf16.gmra.mxu0 %v487
      %v1104 = vpop.f32.mrf.mxu0
      %v1105 = vadd.f32 %v868, %v1104
      %v1106 = vpop.f32.mrf.mxu0
      %v1107 = vadd.f32 %v870, %v1106
      %1108 = vmatmul.bf16.gmra.mxu0 %v489
      %v1109 = vpop.f32.mrf.mxu0
      %v1110 = vadd.f32 %v873, %v1109
      %v1111 = vpop.f32.mrf.mxu0
      %v1112 = vadd.f32 %v875, %v1111
      %1113 = vmatmul.bf16.gmra.mxu0 %v491
      %v1114 = vpop.f32.mrf.mxu0
      %v1115 = vadd.f32 %v878, %v1114
      %v1116 = vpop.f32.mrf.mxu0
      %v1117 = vadd.f32 %v880, %v1116
      %1118 = vmatmul.bf16.gmra.mxu0 %v493
      %v1119 = vpop.f32.mrf.mxu0
      %v1120 = vadd.f32 %v883, %v1119
      %v1121 = vpop.f32.mrf.mxu0
      %v1122 = vadd.f32 %v885, %v1121
      %1123 = vmatmul.bf16.gmra.mxu0 %v495
      %v1124 = vpop.f32.mrf.mxu0
      %v1125 = vadd.f32 %v888, %v1124
      %v1126 = vpop.f32.mrf.mxu0
      %v1127 = vadd.f32 %v890, %v1126
      %1128 = vmatmul.bf16.gmra.mxu0 %v497
      %v1129 = vpop.f32.mrf.mxu0
      %v1130 = vadd.f32 %v893, %v1129
      %v1131 = vpop.f32.mrf.mxu0
      %v1132 = vadd.f32 %v895, %v1131
      %1133 = vmatmul.bf16.gmra.mxu0 %v499
      %v1134 = vpop.f32.mrf.mxu0
      %v1135 = vadd.f32 %v898, %v1134
      %v1136 = vpop.f32.mrf.mxu0
      %v1137 = vadd.f32 %v900, %v1136
      %1138 = vmatmul.bf16.gmra.mxu0 %v501
      %v1139 = vpop.f32.mrf.mxu0
      %v1140 = vadd.f32 %v903, %v1139
      %v1141 = vpop.f32.mrf.mxu0
      %v1142 = vadd.f32 %v905, %v1141
      %1143 = vmatmul.bf16.gmra.mxu0 %v503
      %v1144 = vpop.f32.mrf.mxu0
      %v1145 = vadd.f32 %v908, %v1144
      %v1146 = vpop.f32.mrf.mxu0
      %v1147 = vadd.f32 %v910, %v1146
      %1148 = vmatmul.bf16.gmra.mxu0 %v505
      %v1149 = vpop.f32.mrf.mxu0
      %v1150 = vadd.f32 %v913, %v1149
      %v1151 = vpop.f32.mrf.mxu0
      %v1152 = vadd.f32 %v915, %v1151
      %1153 = vmatmul.bf16.gmra.mxu0 %v507
      %v1154 = vpop.f32.mrf.mxu0
      %v1155 = vadd.f32 %v918, %v1154
      %v1156 = vpop.f32.mrf.mxu0
      %v1157 = vadd.f32 %v920, %v1156
      %1158 = vmatmul.bf16.gmra.mxu0 %v509
      %v1159 = vpop.f32.mrf.mxu0
      %v1160 = vadd.f32 %v923, %v1159
      %v1161 = vpop.f32.mrf.mxu0
      %v1162 = vadd.f32 %v925, %v1161
      %1163 = vmatmul.bf16.gmra.mxu0 %v511
      %v1164 = vpop.f32.mrf.mxu0
      %v1165 = vadd.f32 %v928, %v1164
      %v1166 = vpop.f32.mrf.mxu0
      %v1167 = vadd.f32 %v930, %v1166
      %1168 = vmatmul.bf16.gmra.mxu0 %v513
      %v1169 = vpop.f32.mrf.mxu0
      %v1170 = vadd.f32 %v933, %v1169
      %v1171 = vpop.f32.mrf.mxu0
      %v1172 = vadd.f32 %v935, %v1171
      %1173 = vmatmul.bf16.gmra.mxu0 %v515
      %v1174 = vpop.f32.mrf.mxu0
      %v1175 = vadd.f32 %v938, %v1174
      %v1176 = vpop.f32.mrf.mxu0
      %v1177 = vadd.f32 %v940, %v1176
      %1178 = vmatmul.bf16.gmra.mxu0 %v517
      %v1179 = vpop.f32.mrf.mxu0
      %v1180 = vadd.f32 %v943, %v1179
      %v1181 = vpop.f32.mrf.mxu0
      %v1182 = vadd.f32 %v945, %v1181
      %1183 = vmatmul.bf16.gmra.mxu0 %v519
      %v1184 = vpop.f32.mrf.mxu0
      %v1185 = vadd.f32 %v948, %v1184
      %v1186 = vpop.f32.mrf.mxu0
      %v1187 = vadd.f32 %v950, %v1186
      %1188 = vmatmul.bf16.gmra.mxu0 %v521
      %v1189 = vpop.f32.mrf.mxu0
      %v1190 = vadd.f32 %v953, %v1189
      %v1191 = vpop.f32.mrf.mxu0
      %v1192 = vadd.f32 %v955, %v1191
      %1193 = vdwg.mxu0
      %1194 = vmatpush.bf16.msra.mxu0 0
      %1195 = vmatpush.bf16.msra.mxu0 0
      %1196 = vmatpush.bf16.msra.mxu0 0
      %1197 = vmatpush.bf16.msra.mxu0 0
      %1198 = vmatpush.bf16.msra.mxu0 %v1063
      %1199 = vmatpush.bf16.msra.mxu0 %v1040
      %1200 = vmatpush.bf16.msra.mxu0 %v1039
      %1201 = vmatpush.bf16.msra.mxu0 %v1038
      %1202 = vmatmul.bf16.gmra.mxu0 %v1054
      %v1203 = vpop.f32.mrf.mxu0
      %v1204 = vadd.f32 %v1075, %v1203
      %v1205 = vpop.f32.mrf.mxu0
      %v1206 = vadd.f32 %v1077, %v1205
      %1207 = vmatmul.bf16.gmra.mxu0 %v1057
      %v1208 = vpop.f32.mrf.mxu0
      %v1209 = vadd.f32 %v1080, %v1208
      %v1210 = vpop.f32.mrf.mxu0
      %v1211 = vadd.f32 %v1082, %v1210
      %1212 = vmatmul.bf16.gmra.mxu0 %v1060
      %v1213 = vpop.f32.mrf.mxu0
      %v1214 = vadd.f32 %v1085, %v1213
      %v1215 = vpop.f32.mrf.mxu0
      %v1216 = vadd.f32 %v1087, %v1215
      %1217 = vmatmul.bf16.gmra.mxu0 %v624
      %v1218 = vpop.f32.mrf.mxu0
      %v1219 = vadd.f32 %v1090, %v1218
      %v1220 = vpop.f32.mrf.mxu0
      %v1221 = vadd.f32 %v1092, %v1220
      %1222 = vmatmul.bf16.gmra.mxu0 %v627
      %v1223 = vpop.f32.mrf.mxu0
      %v1224 = vadd.f32 %v1095, %v1223
      %v1225 = vpop.f32.mrf.mxu0
      %v1226 = vadd.f32 %v1097, %v1225
      %1227 = vmatmul.bf16.gmra.mxu0 %v630
      %v1228 = vpop.f32.mrf.mxu0
      %v1229 = vadd.f32 %v1100, %v1228
      %v1230 = vpop.f32.mrf.mxu0
      %v1231 = vadd.f32 %v1102, %v1230
      %1232 = vmatmul.bf16.gmra.mxu0 %v633
      %v1233 = vpop.f32.mrf.mxu0
      %v1234 = vadd.f32 %v1105, %v1233
      %v1235 = vpop.f32.mrf.mxu0
      %v1236 = vadd.f32 %v1107, %v1235
      %1237 = vmatmul.bf16.gmra.mxu0 %v636
      %v1238 = vpop.f32.mrf.mxu0
      %v1239 = vadd.f32 %v1110, %v1238
      %v1240 = vpop.f32.mrf.mxu0
      %v1241 = vadd.f32 %v1112, %v1240
      %1242 = vmatmul.bf16.gmra.mxu0 %v639
      %v1243 = vpop.f32.mrf.mxu0
      %v1244 = vadd.f32 %v1115, %v1243
      %v1245 = vpop.f32.mrf.mxu0
      %v1246 = vadd.f32 %v1117, %v1245
      %1247 = vmatmul.bf16.gmra.mxu0 %v642
      %v1248 = vpop.f32.mrf.mxu0
      %v1249 = vadd.f32 %v1120, %v1248
      %v1250 = vpop.f32.mrf.mxu0
      %v1251 = vadd.f32 %v1122, %v1250
      %1252 = vmatmul.bf16.gmra.mxu0 %v645
      %v1253 = vpop.f32.mrf.mxu0
      %v1254 = vadd.f32 %v1125, %v1253
      %v1255 = vpop.f32.mrf.mxu0
      %v1256 = vadd.f32 %v1127, %v1255
      %1257 = vmatmul.bf16.gmra.mxu0 %v648
      %v1258 = vpop.f32.mrf.mxu0
      %v1259 = vadd.f32 %v1130, %v1258
      %v1260 = vpop.f32.mrf.mxu0
      %v1261 = vadd.f32 %v1132, %v1260
      %1262 = vmatmul.bf16.gmra.mxu0 %v651
      %v1263 = vpop.f32.mrf.mxu0
      %v1264 = vadd.f32 %v1135, %v1263
      %v1265 = vpop.f32.mrf.mxu0
      %v1266 = vadd.f32 %v1137, %v1265
      %1267 = vmatmul.bf16.gmra.mxu0 %v654
      %v1268 = vpop.f32.mrf.mxu0
      %v1269 = vadd.f32 %v1140, %v1268
      %v1270 = vpop.f32.mrf.mxu0
      %v1271 = vadd.f32 %v1142, %v1270
      %1272 = vmatmul.bf16.gmra.mxu0 %v657
      %v1273 = vpop.f32.mrf.mxu0
      %v1274 = vadd.f32 %v1145, %v1273
      %v1275 = vpop.f32.mrf.mxu0
      %v1276 = vadd.f32 %v1147, %v1275
      %1277 = vmatmul.bf16.gmra.mxu0 %v660
      %v1278 = vpop.f32.mrf.mxu0
      %v1279 = vadd.f32 %v1150, %v1278
      %v1280 = vpop.f32.mrf.mxu0
      %v1281 = vadd.f32 %v1152, %v1280
      %1282 = vmatmul.bf16.gmra.mxu0 %v663
      %v1283 = vpop.f32.mrf.mxu0
      %v1284 = vadd.f32 %v1155, %v1283
      %v1285 = vpop.f32.mrf.mxu0
      %v1286 = vadd.f32 %v1157, %v1285
      %1287 = vmatmul.bf16.gmra.mxu0 %v666
      %v1288 = vpop.f32.mrf.mxu0
      %v1289 = vadd.f32 %v1160, %v1288
      %v1290 = vpop.f32.mrf.mxu0
      %v1291 = vadd.f32 %v1162, %v1290
      %1292 = vmatmul.bf16.gmra.mxu0 %v669
      %v1293 = vpop.f32.mrf.mxu0
      %v1294 = vadd.f32 %v1165, %v1293
      %v1295 = vpop.f32.mrf.mxu0
      %v1296 = vadd.f32 %v1167, %v1295
      %1297 = vmatmul.bf16.gmra.mxu0 %v672
      %v1298 = vpop.f32.mrf.mxu0
      %v1299 = vadd.f32 %v1170, %v1298
      %v1300 = vpop.f32.mrf.mxu0
      %v1301 = vadd.f32 %v1172, %v1300
      %1302 = vmatmul.bf16.gmra.mxu0 %v675
      %v1303 = vpop.f32.mrf.mxu0
      %v1304 = vadd.f32 %v1175, %v1303
      %v1305 = vpop.f32.mrf.mxu0
      %v1306 = vadd.f32 %v1177, %v1305
      %1307 = vmatmul.bf16.gmra.mxu0 %v678
      %v1308 = vpop.f32.mrf.mxu0
      %v1309 = vadd.f32 %v1180, %v1308
      %v1310 = vpop.f32.mrf.mxu0
      %v1311 = vadd.f32 %v1182, %v1310
      %1312 = vmatmul.bf16.gmra.mxu0 %v681
      %v1313 = vpop.f32.mrf.mxu0
      %v1314 = vadd.f32 %v1185, %v1313
      %v1315 = vpop.f32.mrf.mxu0
      %v1316 = vadd.f32 %v1187, %v1315
      %1317 = vmatmul.bf16.gmra.mxu0 %v684
      %v1318 = vpop.f32.mrf.mxu0
      %v1319 = vadd.f32 %v1190, %v1318
      %v1320 = vpop.f32.mrf.mxu0
      %v1321 = vadd.f32 %v1192, %v1320
      %1322 = vdwg.mxu0
      %v1323 = vld [vmem:[%s224 + $0x60] sm:$0xff]
      %v1324 = vld [vmem:[%s224 + $0x68] sm:$0xff]
      %v1325 = vld [vmem:[%s224 + $0x70] sm:$0xff]
      %v1326 = vld [vmem:[%s224 + $0x78] sm:$0xff]
      %v1327 = vld [vmem:[%s224 + $0x80] sm:$0xff]
      %v1328 = vld [vmem:[%s224 + $0x88] sm:$0xff]
      %v1329 = vld [vmem:[%s224 + $0x90] sm:$0xff]
      %v1330 = vld [vmem:[%s224 + $0x98] sm:$0xff]
      %v1331 = vld [vmem:[%s224 + $0xa0] sm:$0xff]
      %v1332 = vld [vmem:[%s224 + $0xa8] sm:$0xff]
      %v1333 = vld [vmem:[%s224 + $0xb0] sm:$0xff]
      %v1334 = vld [vmem:[%s224 + $0xb8] sm:$0xff]
      %v1335 = vld [vmem:[%s224 + $0xc0] sm:$0xff]
      %v1336 = vld [vmem:[%s224 + $0xc8] sm:$0xff]
      %v1337 = vld [vmem:[%s224 + $0xd0] sm:$0xff]
      %v1338 = vld [vmem:[%s224 + $0xd8] sm:$0xff]
      %v1339 = vld [vmem:[%s224 + $0xe0] sm:$0xff]
      %v1340 = vld [vmem:[%s224 + $0xe8] sm:$0xff]
      %v1341 = vld [vmem:[%s224 + $0xf0] sm:$0xff]
      %v1342 = vld [vmem:[%s224 + $0xf8] sm:$0xff]
      %v1343 = vld [vmem:[%s224 + $0x100] sm:$0xff]
      %v1344 = vld [vmem:[%s224 + $0x108] sm:$0xff]
      %v1345 = vld [vmem:[%s224 + $0x110] sm:$0xff]
      %v1346 = vld [vmem:[%s224 + $0x118] sm:$0xff]
      %v1347 = vld [vmem:[%s224 + $0x120] sm:$0xff]
      %v1348 = vld [vmem:[%s224 + $0x128] sm:$0xff]
      %v1349 = vld [vmem:[%s224 + $0x130] sm:$0xff]
      %v1350 = vld [vmem:[%s224 + $0x138] sm:$0xff]
      %v1351 = vld [vmem:[%s224 + $0x140] sm:$0xff]
      %v1352 = vld [vmem:[%s224 + $0x148] sm:$0xff]
      %v1353 = vld [vmem:[%s224 + $0x150] sm:$0xff]
      %v1354 = vld [vmem:[%s224 + $0x158] sm:$0xff]
      %v1355 = vld [vmem:[%s224 + $0x160] sm:$0xff]
      %v1356 = vld [vmem:[%s224 + $0x168] sm:$0xff]
      %v1357 = vld [vmem:[%s224 + $0x170] sm:$0xff]
      %v1358 = vld [vmem:[%s224 + $0x178] sm:$0xff]
      %v1359 = vld [vmem:[%s224 + $0x180] sm:$0xff]
      %v1360 = vld [vmem:[%s224 + $0x188] sm:$0xff]
      %v1361 = vld [vmem:[%s224 + $0x190] sm:$0xff]
      %v1362 = vld [vmem:[%s224 + $0x198] sm:$0xff]
      %v1363 = vld [vmem:[%s224 + $0x1a0] sm:$0xff]
      %v1364 = vld [vmem:[%s224 + $0x1a8] sm:$0xff]
      %v1365 = vld [vmem:[%s224 + $0x1b0] sm:$0xff]
      %v1366 = vld [vmem:[%s224 + $0x1b8] sm:$0xff]
      %v1367 = vld [vmem:[%s224 + $0x1c0] sm:$0xff]
      %v1368 = vld [vmem:[%s224 + $0x1c8] sm:$0xff]
      %v1369 = vld [vmem:[%s224 + $0x1d0] sm:$0xff]
      %v1370 = vld [vmem:[%s224 + $0x1d8] sm:$0xff]
      %s1371 = scalar_lea.vmem %s1, 184
      %v1372 = vld [vmem:[%s1371] sm:$0xf]
      %v1373 = vld [vmem:[%s1371 + $0x4] sm:$0xf]
      %v1374 = vld [vmem:[%s1371 + $0x8] sm:$0xf]
      %v1375 = vld [vmem:[%s1371 + $0xc] sm:$0xf]
      %v1376 = vld [vmem:[%s1371 + $0x10] sm:$0xf]
      %v1377 = vld [vmem:[%s1371 + $0x14] sm:$0xf]
      %v1378 = vld [vmem:[%s1371 + $0x18] sm:$0xf]
      %v1379 = vld [vmem:[%s1371 + $0x1c] sm:$0xf]
      %v1380 = vld [vmem:[%s1371 + $0x20] sm:$0xf]
      %v1381 = vld [vmem:[%s1371 + $0x24] sm:$0xf]
      %v1382 = vld [vmem:[%s1371 + $0x28] sm:$0xf]
      %v1383 = vld [vmem:[%s1371 + $0x2c] sm:$0xf]
      %v1384 = vld [vmem:[%s1371 + $0x30] sm:$0xf]
      %v1385 = vld [vmem:[%s1371 + $0x34] sm:$0xf]
      %v1386 = vld [vmem:[%s1371 + $0x38] sm:$0xf]
      %v1387 = vld [vmem:[%s1371 + $0x3c] sm:$0xf]
      %v1388 = vld [vmem:[%s1371 + $0x40] sm:$0xf]
      %v1389 = vld [vmem:[%s1371 + $0x44] sm:$0xf]
      %v1390 = vld [vmem:[%s1371 + $0x48] sm:$0xf]
      %v1391 = vld [vmem:[%s1371 + $0x4c] sm:$0xf]
      %v1392 = vld [vmem:[%s1371 + $0x50] sm:$0xf]
      %v1393 = vld [vmem:[%s1371 + $0x54] sm:$0xf]
      %v1394 = vld [vmem:[%s1371 + $0x58] sm:$0x3]
      %v1443 = vunpack.c.l.b16 %v1323
      %v1444 = vunpack.c.h.b16 %v1323
      %v1445 = vunpack.c.l.b16 %v1324
      %v1446 = vunpack.c.h.b16 %v1324
      %v1447 = vunpack.c.l.b16 %v1325
      %v1448 = vunpack.c.h.b16 %v1325
      %v1449 = vunpack.c.l.b16 %v1326
      %v1450 = vunpack.c.h.b16 %v1326
      %v1451 = vunpack.c.l.b16 %v1327
      %v1452 = vunpack.c.h.b16 %v1327
      %v1453 = vunpack.c.l.b16 %v1328
      %v1454 = vunpack.c.h.b16 %v1328
      %v1455 = vunpack.c.l.b16 %v1329
      %v1456 = vunpack.c.h.b16 %v1329
      %v1457 = vunpack.c.l.b16 %v1330
      %v1458 = vunpack.c.h.b16 %v1330
      %v1459 = vunpack.c.l.b16 %v1331
      %v1460 = vunpack.c.h.b16 %v1331
      %v1461 = vunpack.c.l.b16 %v1332
      %v1462 = vunpack.c.h.b16 %v1332
      %v1463 = vunpack.c.l.b16 %v1333
      %v1464 = vunpack.c.h.b16 %v1333
      %v1465 = vunpack.c.l.b16 %v1334
      %v1466 = vunpack.c.h.b16 %v1334
      %v1467 = vunpack.c.l.b16 %v1335
      %v1468 = vunpack.c.h.b16 %v1335
      %v1469 = vunpack.c.l.b16 %v1336
      %v1470 = vunpack.c.h.b16 %v1336
      %v1471 = vunpack.c.l.b16 %v1337
      %v1472 = vunpack.c.h.b16 %v1337
      %v1473 = vunpack.c.l.b16 %v1338
      %v1474 = vunpack.c.h.b16 %v1338
      %v1475 = vunpack.c.l.b16 %v1339
      %v1476 = vunpack.c.h.b16 %v1339
      %v1477 = vunpack.c.l.b16 %v1340
      %v1478 = vunpack.c.h.b16 %v1340
      %v1479 = vunpack.c.l.b16 %v1341
      %v1480 = vunpack.c.h.b16 %v1341
      %v1481 = vunpack.c.l.b16 %v1342
      %v1482 = vunpack.c.h.b16 %v1342
      %v1483 = vunpack.c.l.b16 %v1343
      %v1484 = vunpack.c.h.b16 %v1343
      %v1485 = vunpack.c.l.b16 %v1344
      %v1486 = vunpack.c.h.b16 %v1344
      %v1487 = vunpack.c.l.b16 %v1345
      %v1488 = vunpack.c.h.b16 %v1345
      %v1489 = vunpack.c.l.b16 %v1346
      %v1490 = vunpack.c.h.b16 %v1346
      %v1491 = vunpack.c.l.b16 %v1347
      %v1492 = vunpack.c.h.b16 %v1347
      %v1493 = vunpack.c.l.b16 %v1348
      %v1494 = vunpack.c.h.b16 %v1348
      %v1495 = vunpack.c.l.b16 %v1349
      %v1496 = vunpack.c.h.b16 %v1349
      %v1497 = vunpack.c.l.b16 %v1350
      %v1498 = vunpack.c.h.b16 %v1350
      %v1499 = vunpack.c.l.b16 %v1351
      %v1500 = vunpack.c.h.b16 %v1351
      %v1501 = vunpack.c.l.b16 %v1352
      %v1502 = vunpack.c.h.b16 %v1352
      %v1503 = vunpack.c.l.b16 %v1353
      %v1504 = vunpack.c.h.b16 %v1353
      %v1505 = vunpack.c.l.b16 %v1354
      %v1506 = vunpack.c.h.b16 %v1354
      %v1507 = vunpack.c.l.b16 %v1355
      %v1508 = vunpack.c.h.b16 %v1355
      %v1509 = vunpack.c.l.b16 %v1356
      %v1510 = vunpack.c.h.b16 %v1356
      %v1511 = vunpack.c.l.b16 %v1357
      %v1512 = vunpack.c.h.b16 %v1357
      %v1513 = vunpack.c.l.b16 %v1358
      %v1514 = vunpack.c.h.b16 %v1358
      %v1515 = vunpack.c.l.b16 %v1359
      %v1516 = vunpack.c.h.b16 %v1359
      %v1517 = vunpack.c.l.b16 %v1360
      %v1518 = vunpack.c.h.b16 %v1360
      %v1519 = vunpack.c.l.b16 %v1361
      %v1520 = vunpack.c.h.b16 %v1361
      %v1521 = vunpack.c.l.b16 %v1362
      %v1522 = vunpack.c.h.b16 %v1362
      %v1523 = vunpack.c.l.b16 %v1363
      %v1524 = vunpack.c.h.b16 %v1363
      %v1525 = vunpack.c.l.b16 %v1364
      %v1526 = vunpack.c.h.b16 %v1364
      %v1527 = vunpack.c.l.b16 %v1365
      %v1528 = vunpack.c.h.b16 %v1365
      %v1529 = vunpack.c.l.b16 %v1366
      %v1530 = vunpack.c.h.b16 %v1366
      %v1531 = vunpack.c.l.b16 %v1367
      %v1532 = vunpack.c.h.b16 %v1367
      %v1533 = vunpack.c.l.b16 %v1368
      %v1534 = vunpack.c.h.b16 %v1368
      %v1535 = vunpack.c.l.b16 %v1369
      %v1536 = vunpack.c.h.b16 %v1369
      %v1537 = vunpack.c.l.b16 %v1370
      %v1538 = vunpack.c.h.b16 %v1370
      %v1539 = vpack.c.b16 %v1445, %v1443
      %v1540 = vpack.c.b16 %v1446, %v1444
      %v1541 = vpack.c.b16 %v1449, %v1447
      %v1542 = vpack.c.b16 %v1450, %v1448
      %v1543 = vpack.c.b16 %v1453, %v1451
      %v1544 = vpack.c.b16 %v1454, %v1452
      %v1545 = vpack.c.b16 %v1457, %v1455
      %v1546 = vpack.c.b16 %v1458, %v1456
      %v1547 = vpack.c.b16 %v1461, %v1459
      %v1548 = vpack.c.b16 %v1462, %v1460
      %v1549 = vpack.c.b16 %v1465, %v1463
      %v1550 = vpack.c.b16 %v1466, %v1464
      %v1551 = vpack.c.b16 %v1469, %v1467
      %v1552 = vpack.c.b16 %v1470, %v1468
      %v1553 = vpack.c.b16 %v1473, %v1471
      %v1554 = vpack.c.b16 %v1474, %v1472
      %v1555 = vpack.c.b16 %v1477, %v1475
      %v1556 = vpack.c.b16 %v1478, %v1476
      %v1557 = vpack.c.b16 %v1481, %v1479
      %v1558 = vpack.c.b16 %v1482, %v1480
      %v1559 = vpack.c.b16 %v1485, %v1483
      %v1560 = vpack.c.b16 %v1486, %v1484
      %v1561 = vpack.c.b16 %v1489, %v1487
      %v1562 = vpack.c.b16 %v1490, %v1488
      %v1563 = vpack.c.b16 %v1493, %v1491
      %v1564 = vpack.c.b16 %v1494, %v1492
      %v1565 = vpack.c.b16 %v1497, %v1495
      %v1566 = vpack.c.b16 %v1498, %v1496
      %v1567 = vpack.c.b16 %v1501, %v1499
      %v1568 = vpack.c.b16 %v1502, %v1500
      %v1569 = vpack.c.b16 %v1505, %v1503
      %v1570 = vpack.c.b16 %v1506, %v1504
      %v1571 = vpack.c.b16 %v1509, %v1507
      %v1572 = vpack.c.b16 %v1510, %v1508
      %v1573 = vpack.c.b16 %v1513, %v1511
      %v1574 = vpack.c.b16 %v1514, %v1512
      %v1575 = vpack.c.b16 %v1517, %v1515
      %v1576 = vpack.c.b16 %v1518, %v1516
      %v1577 = vpack.c.b16 %v1521, %v1519
      %v1578 = vpack.c.b16 %v1522, %v1520
      %v1579 = vpack.c.b16 %v1525, %v1523
      %v1580 = vpack.c.b16 %v1526, %v1524
      %v1581 = vpack.c.b16 %v1529, %v1527
      %v1582 = vpack.c.b16 %v1530, %v1528
      %v1583 = vpack.c.b16 %v1533, %v1531
      %v1584 = vpack.c.b16 %v1534, %v1532
      %v1585 = vpack.c.b16 %v1537, %v1535
      %v1586 = vpack.c.b16 %v1538, %v1536
      %v1634 = vunpack.c.l.b16 %v1372
      %v1635 = vunpack.c.l.b16 %v1373
      %v1636 = vunpack.c.l.b16 %v1374
      %v1637 = vunpack.c.l.b16 %v1375
      %v1638 = vunpack.c.l.b16 %v1376
      %v1639 = vunpack.c.l.b16 %v1377
      %v1640 = vunpack.c.l.b16 %v1378
      %v1641 = vunpack.c.l.b16 %v1379
      %v1642 = vunpack.c.l.b16 %v1380
      %v1643 = vunpack.c.l.b16 %v1381
      %v1644 = vunpack.c.l.b16 %v1382
      %v1645 = vunpack.c.l.b16 %v1383
      %v1646 = vunpack.c.l.b16 %v1384
      %v1647 = vunpack.c.l.b16 %v1385
      %v1648 = vunpack.c.l.b16 %v1386
      %v1649 = vunpack.c.l.b16 %v1387
      %v1650 = vunpack.c.l.b16 %v1388
      %v1651 = vunpack.c.l.b16 %v1389
      %v1652 = vunpack.c.l.b16 %v1390
      %v1653 = vunpack.c.l.b16 %v1391
      %v1654 = vunpack.c.l.b16 %v1392
      %v1655 = vunpack.c.l.b16 %v1393
      %v1656 = vunpack.c.l.b16 %v1394
      %v1657 = vpack.c.b16 %v1635, %v1634
      %v1658 = vpack.c.b16 %v1637, %v1636
      %v1659 = vpack.c.b16 %v1639, %v1638
      %v1660 = vpack.c.b16 %v1641, %v1640
      %v1661 = vpack.c.b16 %v1643, %v1642
      %v1662 = vpack.c.b16 %v1645, %v1644
      %v1663 = vpack.c.b16 %v1647, %v1646
      %v1664 = vpack.c.b16 %v1649, %v1648
      %v1665 = vpack.c.b16 %v1651, %v1650
      %v1666 = vpack.c.b16 %v1653, %v1652
      %v1667 = vpack.c.b16 %v1655, %v1654
      %v1668 = vpack.c.b16 %v1656, %v1656
      %v1681 = vsel %vm622, %v1540, 0
      %v1684 = vsel %vm622, %v1542, 0
      %v1687 = vsel %vm622, %v1544, 0
      %v1690 = vsel %vm622, %v1546, 0
      %v1693 = vsel %vm622, %v1548, 0
      %v1696 = vsel %vm622, %v1550, 0
      %v1699 = vsel %vm622, %v1552, 0
      %v1702 = vsel %vm622, %v1554, 0
      %v1705 = vsel %vm622, %v1556, 0
      %v1708 = vsel %vm622, %v1558, 0
      %v1711 = vsel %vm622, %v1560, 0
      %v1714 = vsel %vm622, %v1562, 0
      %v1717 = vsel %vm622, %v1564, 0
      %v1720 = vsel %vm622, %v1566, 0
      %v1723 = vsel %vm622, %v1568, 0
      %v1726 = vsel %vm622, %v1570, 0
      %v1729 = vsel %vm622, %v1572, 0
      %v1732 = vsel %vm622, %v1574, 0
      %v1735 = vsel %vm622, %v1576, 0
      %v1738 = vsel %vm622, %v1578, 0
      %v1741 = vsel %vm622, %v1580, 0
      %v1744 = vsel %vm622, %v1582, 0
      %v1747 = vsel %vm622, %v1584, 0
      %v1750 = vsel %vm622, %v1586, 0
      %v1753 = vsel %vm695, %v1668, 0
      %1755 = vmatpush.bf16.msra.mxu0 %v1664
      %1756 = vmatpush.bf16.msra.mxu0 %v1663
      %1757 = vmatpush.bf16.msra.mxu0 %v1662
      %1758 = vmatpush.bf16.msra.mxu0 %v1661
      %1759 = vmatpush.bf16.msra.mxu0 %v1660
      %1760 = vmatpush.bf16.msra.mxu0 %v1659
      %1761 = vmatpush.bf16.msra.mxu0 %v1658
      %1762 = vmatpush.bf16.msra.mxu0 %v1657
      %1763 = vmatmul.bf16.gmra.mxu0 %v1539
      %v1764 = vpop.f32.mrf.mxu0
      %v1765 = vadd.f32 0.0, %v1764
      %v1766 = vpop.f32.mrf.mxu0
      %v1767 = vadd.f32 0.0, %v1766
      %1768 = vmatmul.bf16.gmra.mxu0 %v1541
      %v1769 = vpop.f32.mrf.mxu0
      %v1770 = vadd.f32 0.0, %v1769
      %v1771 = vpop.f32.mrf.mxu0
      %v1772 = vadd.f32 0.0, %v1771
      %1773 = vmatmul.bf16.gmra.mxu0 %v1543
      %v1774 = vpop.f32.mrf.mxu0
      %v1775 = vadd.f32 0.0, %v1774
      %v1776 = vpop.f32.mrf.mxu0
      %v1777 = vadd.f32 0.0, %v1776
      %1778 = vmatmul.bf16.gmra.mxu0 %v1545
      %v1779 = vpop.f32.mrf.mxu0
      %v1780 = vadd.f32 0.0, %v1779
      %v1781 = vpop.f32.mrf.mxu0
      %v1782 = vadd.f32 0.0, %v1781
      %1783 = vmatmul.bf16.gmra.mxu0 %v1547
      %v1784 = vpop.f32.mrf.mxu0
      %v1785 = vadd.f32 0.0, %v1784
      %v1786 = vpop.f32.mrf.mxu0
      %v1787 = vadd.f32 0.0, %v1786
      %1788 = vmatmul.bf16.gmra.mxu0 %v1549
      %v1789 = vpop.f32.mrf.mxu0
      %v1790 = vadd.f32 0.0, %v1789
      %v1791 = vpop.f32.mrf.mxu0
      %v1792 = vadd.f32 0.0, %v1791
      %1793 = vmatmul.bf16.gmra.mxu0 %v1551
      %v1794 = vpop.f32.mrf.mxu0
      %v1795 = vadd.f32 0.0, %v1794
      %v1796 = vpop.f32.mrf.mxu0
      %v1797 = vadd.f32 0.0, %v1796
      %1798 = vmatmul.bf16.gmra.mxu0 %v1553
      %v1799 = vpop.f32.mrf.mxu0
      %v1800 = vadd.f32 0.0, %v1799
      %v1801 = vpop.f32.mrf.mxu0
      %v1802 = vadd.f32 0.0, %v1801
      %1803 = vmatmul.bf16.gmra.mxu0 %v1555
      %v1804 = vpop.f32.mrf.mxu0
      %v1805 = vadd.f32 0.0, %v1804
      %v1806 = vpop.f32.mrf.mxu0
      %v1807 = vadd.f32 0.0, %v1806
      %1808 = vmatmul.bf16.gmra.mxu0 %v1557
      %v1809 = vpop.f32.mrf.mxu0
      %v1810 = vadd.f32 0.0, %v1809
      %v1811 = vpop.f32.mrf.mxu0
      %v1812 = vadd.f32 0.0, %v1811
      %1813 = vmatmul.bf16.gmra.mxu0 %v1559
      %v1814 = vpop.f32.mrf.mxu0
      %v1815 = vadd.f32 0.0, %v1814
      %v1816 = vpop.f32.mrf.mxu0
      %v1817 = vadd.f32 0.0, %v1816
      %1818 = vmatmul.bf16.gmra.mxu0 %v1561
      %v1819 = vpop.f32.mrf.mxu0
      %v1820 = vadd.f32 0.0, %v1819
      %v1821 = vpop.f32.mrf.mxu0
      %v1822 = vadd.f32 0.0, %v1821
      %1823 = vmatmul.bf16.gmra.mxu0 %v1563
      %v1824 = vpop.f32.mrf.mxu0
      %v1825 = vadd.f32 0.0, %v1824
      %v1826 = vpop.f32.mrf.mxu0
      %v1827 = vadd.f32 0.0, %v1826
      %1828 = vmatmul.bf16.gmra.mxu0 %v1565
      %v1829 = vpop.f32.mrf.mxu0
      %v1830 = vadd.f32 0.0, %v1829
      %v1831 = vpop.f32.mrf.mxu0
      %v1832 = vadd.f32 0.0, %v1831
      %1833 = vmatmul.bf16.gmra.mxu0 %v1567
      %v1834 = vpop.f32.mrf.mxu0
      %v1835 = vadd.f32 0.0, %v1834
      %v1836 = vpop.f32.mrf.mxu0
      %v1837 = vadd.f32 0.0, %v1836
      %1838 = vmatmul.bf16.gmra.mxu0 %v1569
      %v1839 = vpop.f32.mrf.mxu0
      %v1840 = vadd.f32 0.0, %v1839
      %v1841 = vpop.f32.mrf.mxu0
      %v1842 = vadd.f32 0.0, %v1841
      %1843 = vmatmul.bf16.gmra.mxu0 %v1571
      %v1844 = vpop.f32.mrf.mxu0
      %v1845 = vadd.f32 0.0, %v1844
      %v1846 = vpop.f32.mrf.mxu0
      %v1847 = vadd.f32 0.0, %v1846
      %1848 = vmatmul.bf16.gmra.mxu0 %v1573
      %v1849 = vpop.f32.mrf.mxu0
      %v1850 = vadd.f32 0.0, %v1849
      %v1851 = vpop.f32.mrf.mxu0
      %v1852 = vadd.f32 0.0, %v1851
      %1853 = vmatmul.bf16.gmra.mxu0 %v1575
      %v1854 = vpop.f32.mrf.mxu0
      %v1855 = vadd.f32 0.0, %v1854
      %v1856 = vpop.f32.mrf.mxu0
      %v1857 = vadd.f32 0.0, %v1856
      %1858 = vmatmul.bf16.gmra.mxu0 %v1577
      %v1859 = vpop.f32.mrf.mxu0
      %v1860 = vadd.f32 0.0, %v1859
      %v1861 = vpop.f32.mrf.mxu0
      %v1862 = vadd.f32 0.0, %v1861
      %1863 = vmatmul.bf16.gmra.mxu0 %v1579
      %v1864 = vpop.f32.mrf.mxu0
      %v1865 = vadd.f32 0.0, %v1864
      %v1866 = vpop.f32.mrf.mxu0
      %v1867 = vadd.f32 0.0, %v1866
      %1868 = vmatmul.bf16.gmra.mxu0 %v1581
      %v1869 = vpop.f32.mrf.mxu0
      %v1870 = vadd.f32 0.0, %v1869
      %v1871 = vpop.f32.mrf.mxu0
      %v1872 = vadd.f32 0.0, %v1871
      %1873 = vmatmul.bf16.gmra.mxu0 %v1583
      %v1874 = vpop.f32.mrf.mxu0
      %v1875 = vadd.f32 0.0, %v1874
      %v1876 = vpop.f32.mrf.mxu0
      %v1877 = vadd.f32 0.0, %v1876
      %1878 = vmatmul.bf16.gmra.mxu0 %v1585
      %v1879 = vpop.f32.mrf.mxu0
      %v1880 = vadd.f32 0.0, %v1879
      %v1881 = vpop.f32.mrf.mxu0
      %v1882 = vadd.f32 0.0, %v1881
      %1883 = vdwg.mxu0
      %1884 = vmatpush.bf16.msra.mxu0 0
      %1885 = vmatpush.bf16.msra.mxu0 0
      %1886 = vmatpush.bf16.msra.mxu0 0
      %1887 = vmatpush.bf16.msra.mxu0 0
      %1888 = vmatpush.bf16.msra.mxu0 %v1753
      %1889 = vmatpush.bf16.msra.mxu0 %v1667
      %1890 = vmatpush.bf16.msra.mxu0 %v1666
      %1891 = vmatpush.bf16.msra.mxu0 %v1665
      %1892 = vmatmul.bf16.gmra.mxu0 %v1681
      %v1893 = vpop.f32.mrf.mxu0
      %v1894 = vadd.f32 %v1765, %v1893
      %v1895 = vpop.f32.mrf.mxu0
      %v1896 = vadd.f32 %v1767, %v1895
      %1897 = vmatmul.bf16.gmra.mxu0 %v1684
      %v1898 = vpop.f32.mrf.mxu0
      %v1899 = vadd.f32 %v1770, %v1898
      %v1900 = vpop.f32.mrf.mxu0
      %v1901 = vadd.f32 %v1772, %v1900
      %1902 = vmatmul.bf16.gmra.mxu0 %v1687
      %v1903 = vpop.f32.mrf.mxu0
      %v1904 = vadd.f32 %v1775, %v1903
      %v1905 = vpop.f32.mrf.mxu0
      %v1906 = vadd.f32 %v1777, %v1905
      %1907 = vmatmul.bf16.gmra.mxu0 %v1690
      %v1908 = vpop.f32.mrf.mxu0
      %v1909 = vadd.f32 %v1780, %v1908
      %v1910 = vpop.f32.mrf.mxu0
      %v1911 = vadd.f32 %v1782, %v1910
      %1912 = vmatmul.bf16.gmra.mxu0 %v1693
      %v1913 = vpop.f32.mrf.mxu0
      %v1914 = vadd.f32 %v1785, %v1913
      %v1915 = vpop.f32.mrf.mxu0
      %v1916 = vadd.f32 %v1787, %v1915
      %1917 = vmatmul.bf16.gmra.mxu0 %v1696
      %v1918 = vpop.f32.mrf.mxu0
      %v1919 = vadd.f32 %v1790, %v1918
      %v1920 = vpop.f32.mrf.mxu0
      %v1921 = vadd.f32 %v1792, %v1920
      %1922 = vmatmul.bf16.gmra.mxu0 %v1699
      %v1923 = vpop.f32.mrf.mxu0
      %v1924 = vadd.f32 %v1795, %v1923
      %v1925 = vpop.f32.mrf.mxu0
      %v1926 = vadd.f32 %v1797, %v1925
      %1927 = vmatmul.bf16.gmra.mxu0 %v1702
      %v1928 = vpop.f32.mrf.mxu0
      %v1929 = vadd.f32 %v1800, %v1928
      %v1930 = vpop.f32.mrf.mxu0
      %v1931 = vadd.f32 %v1802, %v1930
      %1932 = vmatmul.bf16.gmra.mxu0 %v1705
      %v1933 = vpop.f32.mrf.mxu0
      %v1934 = vadd.f32 %v1805, %v1933
      %v1935 = vpop.f32.mrf.mxu0
      %v1936 = vadd.f32 %v1807, %v1935
      %1937 = vmatmul.bf16.gmra.mxu0 %v1708
      %v1938 = vpop.f32.mrf.mxu0
      %v1939 = vadd.f32 %v1810, %v1938
      %v1940 = vpop.f32.mrf.mxu0
      %v1941 = vadd.f32 %v1812, %v1940
      %1942 = vmatmul.bf16.gmra.mxu0 %v1711
      %v1943 = vpop.f32.mrf.mxu0
      %v1944 = vadd.f32 %v1815, %v1943
      %v1945 = vpop.f32.mrf.mxu0
      %v1946 = vadd.f32 %v1817, %v1945
      %1947 = vmatmul.bf16.gmra.mxu0 %v1714
      %v1948 = vpop.f32.mrf.mxu0
      %v1949 = vadd.f32 %v1820, %v1948
      %v1950 = vpop.f32.mrf.mxu0
      %v1951 = vadd.f32 %v1822, %v1950
      %1952 = vmatmul.bf16.gmra.mxu0 %v1717
      %v1953 = vpop.f32.mrf.mxu0
      %v1954 = vadd.f32 %v1825, %v1953
      %v1955 = vpop.f32.mrf.mxu0
      %v1956 = vadd.f32 %v1827, %v1955
      %1957 = vmatmul.bf16.gmra.mxu0 %v1720
      %v1958 = vpop.f32.mrf.mxu0
      %v1959 = vadd.f32 %v1830, %v1958
      %v1960 = vpop.f32.mrf.mxu0
      %v1961 = vadd.f32 %v1832, %v1960
      %1962 = vmatmul.bf16.gmra.mxu0 %v1723
      %v1963 = vpop.f32.mrf.mxu0
      %v1964 = vadd.f32 %v1835, %v1963
      %v1965 = vpop.f32.mrf.mxu0
      %v1966 = vadd.f32 %v1837, %v1965
      %1967 = vmatmul.bf16.gmra.mxu0 %v1726
      %v1968 = vpop.f32.mrf.mxu0
      %v1969 = vadd.f32 %v1840, %v1968
      %v1970 = vpop.f32.mrf.mxu0
      %v1971 = vadd.f32 %v1842, %v1970
      %1972 = vmatmul.bf16.gmra.mxu0 %v1729
      %v1973 = vpop.f32.mrf.mxu0
      %v1974 = vadd.f32 %v1845, %v1973
      %v1975 = vpop.f32.mrf.mxu0
      %v1976 = vadd.f32 %v1847, %v1975
      %1977 = vmatmul.bf16.gmra.mxu0 %v1732
      %v1978 = vpop.f32.mrf.mxu0
      %v1979 = vadd.f32 %v1850, %v1978
      %v1980 = vpop.f32.mrf.mxu0
      %v1981 = vadd.f32 %v1852, %v1980
      %1982 = vmatmul.bf16.gmra.mxu0 %v1735
      %v1983 = vpop.f32.mrf.mxu0
      %v1984 = vadd.f32 %v1855, %v1983
      %v1985 = vpop.f32.mrf.mxu0
      %v1986 = vadd.f32 %v1857, %v1985
      %1987 = vmatmul.bf16.gmra.mxu0 %v1738
      %v1988 = vpop.f32.mrf.mxu0
      %v1989 = vadd.f32 %v1860, %v1988
      %v1990 = vpop.f32.mrf.mxu0
      %v1991 = vadd.f32 %v1862, %v1990
      %1992 = vmatmul.bf16.gmra.mxu0 %v1741
      %v1993 = vpop.f32.mrf.mxu0
      %v1994 = vadd.f32 %v1865, %v1993
      %v1995 = vpop.f32.mrf.mxu0
      %v1996 = vadd.f32 %v1867, %v1995
      %1997 = vmatmul.bf16.gmra.mxu0 %v1744
      %v1998 = vpop.f32.mrf.mxu0
      %v1999 = vadd.f32 %v1870, %v1998
      %v2000 = vpop.f32.mrf.mxu0
      %v2001 = vadd.f32 %v1872, %v2000
      %2002 = vmatmul.bf16.gmra.mxu0 %v1747
      %v2003 = vpop.f32.mrf.mxu0
      %v2004 = vadd.f32 %v1875, %v2003
      %v2005 = vpop.f32.mrf.mxu0
      %v2006 = vadd.f32 %v1877, %v2005
      %2007 = vmatmul.bf16.gmra.mxu0 %v1750
      %v2008 = vpop.f32.mrf.mxu0
      %v2009 = vadd.f32 %v1880, %v2008
      %v2010 = vpop.f32.mrf.mxu0
      %v2011 = vadd.f32 %v1882, %v2010
      %2012 = vdwg.mxu0
      %v2013 = vadd.f32 %v1204, %v1894
      %v2014 = vadd.f32 %v1206, %v1896
      %v2015 = vadd.f32 %v1209, %v1899
      %v2016 = vadd.f32 %v1211, %v1901
      %v2017 = vadd.f32 %v1214, %v1904
      %v2018 = vadd.f32 %v1216, %v1906
      %v2019 = vadd.f32 %v1219, %v1909
      %v2020 = vadd.f32 %v1221, %v1911
      %v2021 = vadd.f32 %v1224, %v1914
      %v2022 = vadd.f32 %v1226, %v1916
      %v2023 = vadd.f32 %v1229, %v1919
      %v2024 = vadd.f32 %v1231, %v1921
      %v2025 = vadd.f32 %v1234, %v1924
      %v2026 = vadd.f32 %v1236, %v1926
      %v2027 = vadd.f32 %v1239, %v1929
      %v2028 = vadd.f32 %v1241, %v1931
      %v2029 = vadd.f32 %v1244, %v1934
      %v2030 = vadd.f32 %v1246, %v1936
      %v2031 = vadd.f32 %v1249, %v1939
      %v2032 = vadd.f32 %v1251, %v1941
      %v2033 = vadd.f32 %v1254, %v1944
      %v2034 = vadd.f32 %v1256, %v1946
      %v2035 = vadd.f32 %v1259, %v1949
      %v2036 = vadd.f32 %v1261, %v1951
      %v2037 = vadd.f32 %v1264, %v1954
      %v2038 = vadd.f32 %v1266, %v1956
      %v2039 = vadd.f32 %v1269, %v1959
      %v2040 = vadd.f32 %v1271, %v1961
      %v2041 = vadd.f32 %v1274, %v1964
      %v2042 = vadd.f32 %v1276, %v1966
      %v2043 = vadd.f32 %v1279, %v1969
      %v2044 = vadd.f32 %v1281, %v1971
      %v2045 = vadd.f32 %v1284, %v1974
      %v2046 = vadd.f32 %v1286, %v1976
      %v2047 = vadd.f32 %v1289, %v1979
      %v2048 = vadd.f32 %v1291, %v1981
      %v2049 = vadd.f32 %v1294, %v1984
      %v2050 = vadd.f32 %v1296, %v1986
      %v2051 = vadd.f32 %v1299, %v1989
      %v2052 = vadd.f32 %v1301, %v1991
      %v2053 = vadd.f32 %v1304, %v1994
      %v2054 = vadd.f32 %v1306, %v1996
      %v2055 = vadd.f32 %v1309, %v1999
      %v2056 = vadd.f32 %v1311, %v2001
      %v2057 = vadd.f32 %v1314, %v2004
      %v2058 = vadd.f32 %v1316, %v2006
      %v2059 = vadd.f32 %v1319, %v2009
      %v2060 = vadd.f32 %v1321, %v2011
      %v2061 = vld [vmem:[%s2] sm:$0x1]
      %v2063 = vperm.slane %v2061, 0
      %v2065 = vmul.f32 %v2013, %v2063
      %v2066 = vmul.f32 %v2014, %v2063
      %v2067 = vmul.f32 %v2015, %v2063
      %v2068 = vmul.f32 %v2016, %v2063
      %v2069 = vmul.f32 %v2017, %v2063
      %v2070 = vmul.f32 %v2018, %v2063
      %v2071 = vmul.f32 %v2019, %v2063
      %v2072 = vmul.f32 %v2020, %v2063
      %v2073 = vmul.f32 %v2021, %v2063
      %v2074 = vmul.f32 %v2022, %v2063
      %v2075 = vmul.f32 %v2023, %v2063
      %v2076 = vmul.f32 %v2024, %v2063
      %v2077 = vmul.f32 %v2025, %v2063
      %v2078 = vmul.f32 %v2026, %v2063
      %v2079 = vmul.f32 %v2027, %v2063
      %v2080 = vmul.f32 %v2028, %v2063
      %v2081 = vmul.f32 %v2029, %v2063
      %v2082 = vmul.f32 %v2030, %v2063
      %v2083 = vmul.f32 %v2031, %v2063
      %v2084 = vmul.f32 %v2032, %v2063
      %v2085 = vmul.f32 %v2033, %v2063
      %v2086 = vmul.f32 %v2034, %v2063
      %v2087 = vmul.f32 %v2035, %v2063
      %v2088 = vmul.f32 %v2036, %v2063
      %v2089 = vmul.f32 %v2037, %v2063
      %v2090 = vmul.f32 %v2038, %v2063
      %v2091 = vmul.f32 %v2039, %v2063
      %v2092 = vmul.f32 %v2040, %v2063
      %v2093 = vmul.f32 %v2041, %v2063
      %v2094 = vmul.f32 %v2042, %v2063
      %v2095 = vmul.f32 %v2043, %v2063
      %v2096 = vmul.f32 %v2044, %v2063
      %v2097 = vmul.f32 %v2045, %v2063
      %v2098 = vmul.f32 %v2046, %v2063
      %v2099 = vmul.f32 %v2047, %v2063
      %v2100 = vmul.f32 %v2048, %v2063
      %v2101 = vmul.f32 %v2049, %v2063
      %v2102 = vmul.f32 %v2050, %v2063
      %v2103 = vmul.f32 %v2051, %v2063
      %v2104 = vmul.f32 %v2052, %v2063
      %v2105 = vmul.f32 %v2053, %v2063
      %v2106 = vmul.f32 %v2054, %v2063
      %v2107 = vmul.f32 %v2055, %v2063
      %v2108 = vmul.f32 %v2056, %v2063
      %v2109 = vmul.f32 %v2057, %v2063
      %v2110 = vmul.f32 %v2058, %v2063
      %v2111 = vmul.f32 %v2059, %v2063
      %v2112 = vmul.f32 %v2060, %v2063
      %v2113 = vld [vmem:[%s3] sm:$0x1]
      %v2115 = vperm.slane %v2113, 0
      %v2117 = vadd.f32 %v2065, %v2115
      %v2118 = vadd.f32 %v2066, %v2115
      %v2119 = vadd.f32 %v2067, %v2115
      %v2120 = vadd.f32 %v2068, %v2115
      %v2121 = vadd.f32 %v2069, %v2115
      %v2122 = vadd.f32 %v2070, %v2115
      %v2123 = vadd.f32 %v2071, %v2115
      %v2124 = vadd.f32 %v2072, %v2115
      %v2125 = vadd.f32 %v2073, %v2115
      %v2126 = vadd.f32 %v2074, %v2115
      %v2127 = vadd.f32 %v2075, %v2115
      %v2128 = vadd.f32 %v2076, %v2115
      %v2129 = vadd.f32 %v2077, %v2115
      %v2130 = vadd.f32 %v2078, %v2115
      %v2131 = vadd.f32 %v2079, %v2115
      %v2132 = vadd.f32 %v2080, %v2115
      %v2133 = vadd.f32 %v2081, %v2115
      %v2134 = vadd.f32 %v2082, %v2115
      %v2135 = vadd.f32 %v2083, %v2115
      %v2136 = vadd.f32 %v2084, %v2115
      %v2137 = vadd.f32 %v2085, %v2115
      %v2138 = vadd.f32 %v2086, %v2115
      %v2139 = vadd.f32 %v2087, %v2115
      %v2140 = vadd.f32 %v2088, %v2115
      %v2141 = vadd.f32 %v2089, %v2115
      %v2142 = vadd.f32 %v2090, %v2115
      %v2143 = vadd.f32 %v2091, %v2115
      %v2144 = vadd.f32 %v2092, %v2115
      %v2145 = vadd.f32 %v2093, %v2115
      %v2146 = vadd.f32 %v2094, %v2115
      %v2147 = vadd.f32 %v2095, %v2115
      %v2148 = vadd.f32 %v2096, %v2115
      %v2149 = vadd.f32 %v2097, %v2115
      %v2150 = vadd.f32 %v2098, %v2115
      %v2151 = vadd.f32 %v2099, %v2115
      %v2152 = vadd.f32 %v2100, %v2115
      %v2153 = vadd.f32 %v2101, %v2115
      %v2154 = vadd.f32 %v2102, %v2115
      %v2155 = vadd.f32 %v2103, %v2115
      %v2156 = vadd.f32 %v2104, %v2115
      %v2157 = vadd.f32 %v2105, %v2115
      %v2158 = vadd.f32 %v2106, %v2115
      %v2159 = vadd.f32 %v2107, %v2115
      %v2160 = vadd.f32 %v2108, %v2115
      %v2161 = vadd.f32 %v2109, %v2115
      %v2162 = vadd.f32 %v2110, %v2115
      %v2163 = vadd.f32 %v2111, %v2115
      %v2164 = vadd.f32 %v2112, %v2115
      %v2165 = vmax.f32 %v2117, 0.0
      %v2166 = vmax.f32 %v2118, 0.0
      %v2167 = vmax.f32 %v2119, 0.0
      %v2168 = vmax.f32 %v2120, 0.0
      %v2169 = vmax.f32 %v2121, 0.0
      %v2170 = vmax.f32 %v2122, 0.0
      %v2171 = vmax.f32 %v2123, 0.0
      %v2172 = vmax.f32 %v2124, 0.0
      %v2173 = vmax.f32 %v2125, 0.0
      %v2174 = vmax.f32 %v2126, 0.0
      %v2175 = vmax.f32 %v2127, 0.0
      %v2176 = vmax.f32 %v2128, 0.0
      %v2177 = vmax.f32 %v2129, 0.0
      %v2178 = vmax.f32 %v2130, 0.0
      %v2179 = vmax.f32 %v2131, 0.0
      %v2180 = vmax.f32 %v2132, 0.0
      %v2181 = vmax.f32 %v2133, 0.0
      %v2182 = vmax.f32 %v2134, 0.0
      %v2183 = vmax.f32 %v2135, 0.0
      %v2184 = vmax.f32 %v2136, 0.0
      %v2185 = vmax.f32 %v2137, 0.0
      %v2186 = vmax.f32 %v2138, 0.0
      %v2187 = vmax.f32 %v2139, 0.0
      %v2188 = vmax.f32 %v2140, 0.0
      %v2189 = vmax.f32 %v2141, 0.0
      %v2190 = vmax.f32 %v2142, 0.0
      %v2191 = vmax.f32 %v2143, 0.0
      %v2192 = vmax.f32 %v2144, 0.0
      %v2193 = vmax.f32 %v2145, 0.0
      %v2194 = vmax.f32 %v2146, 0.0
      %v2195 = vmax.f32 %v2147, 0.0
      %v2196 = vmax.f32 %v2148, 0.0
      %v2197 = vmax.f32 %v2149, 0.0
      %v2198 = vmax.f32 %v2150, 0.0
      %v2199 = vmax.f32 %v2151, 0.0
      %v2200 = vmax.f32 %v2152, 0.0
      %v2201 = vmax.f32 %v2153, 0.0
      %v2202 = vmax.f32 %v2154, 0.0
      %v2203 = vmax.f32 %v2155, 0.0
      %v2204 = vmax.f32 %v2156, 0.0
      %v2205 = vmax.f32 %v2157, 0.0
      %v2206 = vmax.f32 %v2158, 0.0
      %v2207 = vmax.f32 %v2159, 0.0
      %v2208 = vmax.f32 %v2160, 0.0
      %v2209 = vmax.f32 %v2161, 0.0
      %v2210 = vmax.f32 %v2162, 0.0
      %v2211 = vmax.f32 %v2163, 0.0
      %v2212 = vmax.f32 %v2164, 0.0
      %v2213 = vpack.c.bf16 %v2165, %v2165
      %v2214 = vpack.c.bf16 %v2166, %v2166
      %v2215 = vpack.c.bf16 %v2167, %v2167
      %v2216 = vpack.c.bf16 %v2168, %v2168
      %v2217 = vpack.c.bf16 %v2169, %v2169
      %v2218 = vpack.c.bf16 %v2170, %v2170
      %v2219 = vpack.c.bf16 %v2171, %v2171
      %v2220 = vpack.c.bf16 %v2172, %v2172
      %v2221 = vpack.c.bf16 %v2173, %v2173
      %v2222 = vpack.c.bf16 %v2174, %v2174
      %v2223 = vpack.c.bf16 %v2175, %v2175
      %v2224 = vpack.c.bf16 %v2176, %v2176
      %v2225 = vpack.c.bf16 %v2177, %v2177
      %v2226 = vpack.c.bf16 %v2178, %v2178
      %v2227 = vpack.c.bf16 %v2179, %v2179
      %v2228 = vpack.c.bf16 %v2180, %v2180
      %v2229 = vpack.c.bf16 %v2181, %v2181
      %v2230 = vpack.c.bf16 %v2182, %v2182
      %v2231 = vpack.c.bf16 %v2183, %v2183
      %v2232 = vpack.c.bf16 %v2184, %v2184
      %v2233 = vpack.c.bf16 %v2185, %v2185
      %v2234 = vpack.c.bf16 %v2186, %v2186
      %v2235 = vpack.c.bf16 %v2187, %v2187
      %v2236 = vpack.c.bf16 %v2188, %v2188
      %v2237 = vpack.c.bf16 %v2189, %v2189
      %v2238 = vpack.c.bf16 %v2190, %v2190
      %v2239 = vpack.c.bf16 %v2191, %v2191
      %v2240 = vpack.c.bf16 %v2192, %v2192
      %v2241 = vpack.c.bf16 %v2193, %v2193
      %v2242 = vpack.c.bf16 %v2194, %v2194
      %v2243 = vpack.c.bf16 %v2195, %v2195
      %v2244 = vpack.c.bf16 %v2196, %v2196
      %v2245 = vpack.c.bf16 %v2197, %v2197
      %v2246 = vpack.c.bf16 %v2198, %v2198
      %v2247 = vpack.c.bf16 %v2199, %v2199
      %v2248 = vpack.c.bf16 %v2200, %v2200
      %v2249 = vpack.c.bf16 %v2201, %v2201
      %v2250 = vpack.c.bf16 %v2202, %v2202
      %v2251 = vpack.c.bf16 %v2203, %v2203
      %v2252 = vpack.c.bf16 %v2204, %v2204
      %v2253 = vpack.c.bf16 %v2205, %v2205
      %v2254 = vpack.c.bf16 %v2206, %v2206
      %v2255 = vpack.c.bf16 %v2207, %v2207
      %v2256 = vpack.c.bf16 %v2208, %v2208
      %v2257 = vpack.c.bf16 %v2209, %v2209
      %v2258 = vpack.c.bf16 %v2210, %v2210
      %v2259 = vpack.c.bf16 %v2211, %v2211
      %v2260 = vpack.c.bf16 %v2212, %v2212
      %vm2261 = vcmask 519168
      %2262 = vst.msk [vmem:[%s233] sm:$0xf] %vm2261, %v2213
      %2263 = vst.msk [vmem:[%s233 + $0x4] sm:$0xf] %vm2261, %v2214
      %2264 = vst.msk [vmem:[%s233 + $0x8] sm:$0xf] %vm2261, %v2215
      %2265 = vst.msk [vmem:[%s233 + $0xc] sm:$0xf] %vm2261, %v2216
      %2266 = vst.msk [vmem:[%s233 + $0x10] sm:$0xf] %vm2261, %v2217
      %2267 = vst.msk [vmem:[%s233 + $0x14] sm:$0xf] %vm2261, %v2218
      %2268 = vst.msk [vmem:[%s233 + $0x18] sm:$0xf] %vm2261, %v2219
      %2269 = vst.msk [vmem:[%s233 + $0x1c] sm:$0xf] %vm2261, %v2220
      %2270 = vst.msk [vmem:[%s233 + $0x20] sm:$0xf] %vm2261, %v2221
      %2271 = vst.msk [vmem:[%s233 + $0x24] sm:$0xf] %vm2261, %v2222
      %2272 = vst.msk [vmem:[%s233 + $0x28] sm:$0xf] %vm2261, %v2223
      %2273 = vst.msk [vmem:[%s233 + $0x2c] sm:$0xf] %vm2261, %v2224
      %2274 = vst.msk [vmem:[%s233 + $0x30] sm:$0xf] %vm2261, %v2225
      %2275 = vst.msk [vmem:[%s233 + $0x34] sm:$0xf] %vm2261, %v2226
      %2276 = vst.msk [vmem:[%s233 + $0x38] sm:$0xf] %vm2261, %v2227
      %2277 = vst.msk [vmem:[%s233 + $0x3c] sm:$0xf] %vm2261, %v2228
      %2278 = vst.msk [vmem:[%s233 + $0x40] sm:$0xf] %vm2261, %v2229
      %2279 = vst.msk [vmem:[%s233 + $0x44] sm:$0xf] %vm2261, %v2230
      %2280 = vst.msk [vmem:[%s233 + $0x48] sm:$0xf] %vm2261, %v2231
      %2281 = vst.msk [vmem:[%s233 + $0x4c] sm:$0xf] %vm2261, %v2232
      %2282 = vst.msk [vmem:[%s233 + $0x50] sm:$0xf] %vm2261, %v2233
      %2283 = vst.msk [vmem:[%s233 + $0x54] sm:$0xf] %vm2261, %v2234
      %2284 = vst.msk [vmem:[%s233 + $0x58] sm:$0xf] %vm2261, %v2235
      %2285 = vst.msk [vmem:[%s233 + $0x5c] sm:$0xf] %vm2261, %v2236
      %2286 = vst.msk [vmem:[%s233 + $0x60] sm:$0xf] %vm2261, %v2237
      %2287 = vst.msk [vmem:[%s233 + $0x64] sm:$0xf] %vm2261, %v2238
      %2288 = vst.msk [vmem:[%s233 + $0x68] sm:$0xf] %vm2261, %v2239
      %2289 = vst.msk [vmem:[%s233 + $0x6c] sm:$0xf] %vm2261, %v2240
      %2290 = vst.msk [vmem:[%s233 + $0x70] sm:$0xf] %vm2261, %v2241
      %2291 = vst.msk [vmem:[%s233 + $0x74] sm:$0xf] %vm2261, %v2242
      %2292 = vst.msk [vmem:[%s233 + $0x78] sm:$0xf] %vm2261, %v2243
      %2293 = vst.msk [vmem:[%s233 + $0x7c] sm:$0xf] %vm2261, %v2244
      %2294 = vst.msk [vmem:[%s233 + $0x80] sm:$0xf] %vm2261, %v2245
      %2295 = vst.msk [vmem:[%s233 + $0x84] sm:$0xf] %vm2261, %v2246
      %2296 = vst.msk [vmem:[%s233 + $0x88] sm:$0xf] %vm2261, %v2247
      %2297 = vst.msk [vmem:[%s233 + $0x8c] sm:$0xf] %vm2261, %v2248
      %2298 = vst.msk [vmem:[%s233 + $0x90] sm:$0xf] %vm2261, %v2249
      %2299 = vst.msk [vmem:[%s233 + $0x94] sm:$0xf] %vm2261, %v2250
      %2300 = vst.msk [vmem:[%s233 + $0x98] sm:$0xf] %vm2261, %v2251
      %2301 = vst.msk [vmem:[%s233 + $0x9c] sm:$0xf] %vm2261, %v2252
      %2302 = vst.msk [vmem:[%s233 + $0xa0] sm:$0xf] %vm2261, %v2253
      %2303 = vst.msk [vmem:[%s233 + $0xa4] sm:$0xf] %vm2261, %v2254
      %2304 = vst.msk [vmem:[%s233 + $0xa8] sm:$0xf] %vm2261, %v2255
      %2305 = vst.msk [vmem:[%s233 + $0xac] sm:$0xf] %vm2261, %v2256
      %2306 = vst.msk [vmem:[%s233 + $0xb0] sm:$0xf] %vm2261, %v2257
      %2307 = vst.msk [vmem:[%s233 + $0xb4] sm:$0xf] %vm2261, %v2258
      %2308 = vst.msk [vmem:[%s233 + $0xb8] sm:$0xf] %vm2261, %v2259
      %2309 = vst.msk [vmem:[%s233 + $0xbc] sm:$0xf] %vm2261, %v2260
      %s2310 = smul.u32 48, %s20
      %p2311 = scmp.lt.s32.totalorder %s19, 3
      %s2312 = scalar_select %p2311, %s19, 3
      %p2313 = scmp.lt.s32.totalorder %s2310, 287
      %s2314 = scalar_select %p2313, %s2310, 287
      %s2315 = smul.addr %s2312, 288
      %s2316 = sadd.s32 %s2314, %s2315
      %s2317 = smul.addr %s2316, 4
      %s2318 = scalar_lea.vmem %s4, %s2317
      // Predicated region
      $region37: #{_lambda_.3} parent=35 // pred_check
        %p2319 = pneg %p138
      $region38: #{_lambda_.3} parent=35 // pred_check_branch
        %2321 = sbr.rel (%p2319) target = $region40
      $region39: #{_lambda_.3} parent=35 // pred_region
        %s2322 = smul.u32 48, %s20
      $region40: #{_lambda_.3} parent=35 // pred_fallthru
        _
    $region36: #{_lambda_.3} parent=5 // pred_fallthru
      _
    %p2323 = scmp.le.s32.totalorder 2, %s10
    // Predicated region
    $region41: #{_lambda_.3} parent=5 // pred_check
      %p2324 = pneg %p2323
    $region42: #{_lambda_.3} parent=5 // pred_check_branch
      %2326 = sbr.rel (%p2324) target = $region44
    $region43: #{_lambda_.3} parent=5 // pred_region
      %s2327 = ssub.s32 %s10, 2
      // Predicated region
      $region45: #{_lambda_.3} parent=43 // pred_check
        %p2328 = pneg %p144
      $region46: #{_lambda_.3} parent=43 // pred_check_branch
        %2330 = sbr.rel (%p2328) target = $region48
      $region47: #{_lambda_.3} parent=43 // pred_region
        %s2331 = smul.u32 48, %s22
        %p2332 = scmp.lt.s32.totalorder %s21, 3
        %s2333 = scalar_select %p2332, %s21, 3
        %p2334 = scmp.lt.s32.totalorder %s2331, 287
        %s2335 = scalar_select %p2334, %s2331, 287
        %s2336 = smul.addr %s2333, 288
        %s2337 = sadd.s32 %s2335, %s2336
        %s2338 = smul.addr %s2337, 4
        %s2339 = scalar_lea.vmem %s4, %s2338
      $region48: #{_lambda_.3} parent=43 // pred_fallthru
        _
    $region44: #{_lambda_.3} parent=5 // pred_fallthru
      _
  $region6: #{_lambda_.3} parent=0 // loop_footer
    %s14 = sadd.s32 1, %s10
  $region7: #{_lambda_.3} parent=0 // loop_footer_branch
    %9 = sbr.rel target = $region3
  $region8: #{_lambda_.3} parent=0 // loop_exit
    _

// kernel: _lambda_.4
$region0: #{_lambda_.4}
  #allocation0 [shape = 'u32[]', space=smem, size = 0x4, offset = 0x4, fixed_abs, tag = 'smem constant byte address 0x4 - core index']
  #allocation1 [shape = 'u32[72,128]{1,0:T(1,128)}', space=vmem, size = 0x9000, scoped, tag = 'internal scratch']
  %s0 = inlined_call_operand.vmem [shape: f32[4,3,216,512], index: 0, kind: input, shape index: {}]
  %s1 = inlined_call_operand.vmem [shape: bf16[2,512,128], index: 1, kind: input, shape index: {}]
  %s2 = inlined_call_operand.vmem [shape: f32[1,128], index: 2, kind: input, shape index: {}]
  %s3 = inlined_call_operand.vmem [shape: f32[1,128], index: 3, kind: input, shape index: {}]
  %s4 = inlined_call_operand.vmem [shape: bf16[4,576,128], index: 4, kind: output, shape index: {}]
  %s5 = sld [smem:[#allocation0]]
  $region49: #{_lambda_.4} parent=0
    _
  %s7 = ssub.s32 1, %s5
  %s8 = scalar_select 0, %s7, %s5
  loop: start=0, step=1, limit=14
  $region2: #{_lambda_.4} parent=0 // loop_pre_header
    _
  $region3: #{_lambda_.4} parent=0 // loop_header
    %s10 = sphi 0, %s14
    %p11 = scmp.ge.s32.totalorder %s10, 14
    %s17 = sphi 0, %s29
    %s18 = sphi 0, %s25
    %s19 = sphi 0, %s17
    %s20 = sphi 0, %s18
    %s21 = sphi 0, %s19
    %s22 = sphi 0, %s20
    %s34 = sphi 0, %s36
    %s37 = sphi 0, %s34
    %s38 = sphi 0, %s37
    %s54 = sphi 0, %s38
    %s58 = sphi 0, %s58
    %s60 = sphi 0, %s58
    %s61 = sphi 0, %s60
    %s75 = sphi 0, %s61
    %s79 = sphi 0, %s79
    %s81 = sphi 0, %s79
    %s82 = sphi 0, %s81
    %s96 = sphi 0, %s82
    %s100 = sphi 0, %s100
    %s102 = sphi 0, %s100
    %s103 = sphi 0, %s102
    %s117 = sphi 0, %s103
    %s125 = sphi 0, %s127
    %s128 = sphi 0, %s125
    %s129 = sphi 0, %s128
    %s145 = sphi 0, %s129
  $region4: #{_lambda_.4} parent=0 // loop_header_branch
    %13 = sbr.rel (%p11) target = $region8
  $region5: #{_lambda_.4} parent=0 // loop_body
    %s15 = ssub.s32 %s10, 1
    %s16 = ssub.s32 %s10, 2
    %s23 = sadd.s32 1, %s18
    %p24 = scmp.ge.s32.totalorder %s23, 3
    %s25 = scalar_select %p24, 0, %s23
    %s26 = sadd.s32 1, %s17
    %s27 = scalar_select %p24, %s26, %s17
    %p28 = scmp.ge.s32.totalorder %s27, 4
    %s29 = scalar_select %p28, 0, %s27
    %s30 = ssub.s32 %s17, %s29
    %s31 = ssub.s32 %s18, %s25
    %s32 = sor.u32 %s30, %s31
    %p33 = scmp.eq.s32.totalorder %s32, 0
    %s35 = sadd.s32 %s34, 1
    %s36 = scalar_select %p33, %s34, %s35
    %p39 = pneg %p33
    %p40 = scmp.eq.s32.totalorder %s10, 11
    %p41 = por %p39, %p40
    %p42 = scmp.ne.s32.totalorder %s34, %s37
    %p43 = scmp.eq.s32.totalorder %s10, 0
    %p44 = por %p42, %p43
    %p45 = scmp.ne.s32.totalorder %s34, %s37
    %p46 = scmp.eq.s32.totalorder %s15, 11
    %p47 = por %p45, %p46
    %p48 = scmp.ne.s32.totalorder %s37, %s38
    %p49 = scmp.eq.s32.totalorder %s15, 0
    %p50 = por %p48, %p49
    %p51 = scmp.ne.s32.totalorder %s37, %s38
    %p52 = scmp.eq.s32.totalorder %s16, 11
    %p53 = por %p51, %p52
    %p55 = scmp.ne.s32.totalorder %s38, %s54
    %p56 = scmp.eq.s32.totalorder %s16, 0
    %p57 = por %p55, %p56
    %s59 = sadd.s32 %s58, 1
    %p62 = scmp.eq.s32.totalorder %s10, 11
    %p63 = scmp.ne.s32.totalorder %s58, %s60
    %p64 = scmp.eq.s32.totalorder %s10, 0
    %p65 = por %p63, %p64
    %p66 = scmp.ne.s32.totalorder %s58, %s60
    %p67 = scmp.eq.s32.totalorder %s15, 11
    %p68 = por %p66, %p67
    %p69 = scmp.ne.s32.totalorder %s60, %s61
    %p70 = scmp.eq.s32.totalorder %s15, 0
    %p71 = por %p69, %p70
    %p72 = scmp.ne.s32.totalorder %s60, %s61
    %p73 = scmp.eq.s32.totalorder %s16, 11
    %p74 = por %p72, %p73
    %p76 = scmp.ne.s32.totalorder %s61, %s75
    %p77 = scmp.eq.s32.totalorder %s16, 0
    %p78 = por %p76, %p77
    %s80 = sadd.s32 %s79, 1
    %p83 = scmp.eq.s32.totalorder %s10, 11
    %p84 = scmp.ne.s32.totalorder %s79, %s81
    %p85 = scmp.eq.s32.totalorder %s10, 0
    %p86 = por %p84, %p85
    %p87 = scmp.ne.s32.totalorder %s79, %s81
    %p88 = scmp.eq.s32.totalorder %s15, 11
    %p89 = por %p87, %p88
    %p90 = scmp.ne.s32.totalorder %s81, %s82
    %p91 = scmp.eq.s32.totalorder %s15, 0
    %p92 = por %p90, %p91
    %p93 = scmp.ne.s32.totalorder %s81, %s82
    %p94 = scmp.eq.s32.totalorder %s16, 11
    %p95 = por %p93, %p94
    %p97 = scmp.ne.s32.totalorder %s82, %s96
    %p98 = scmp.eq.s32.totalorder %s16, 0
    %p99 = por %p97, %p98
    %s101 = sadd.s32 %s100, 1
    %p104 = scmp.eq.s32.totalorder %s10, 11
    %p105 = scmp.ne.s32.totalorder %s100, %s102
    %p106 = scmp.eq.s32.totalorder %s10, 0
    %p107 = por %p105, %p106
    %p108 = scmp.ne.s32.totalorder %s100, %s102
    %p109 = scmp.eq.s32.totalorder %s15, 11
    %p110 = por %p108, %p109
    %p111 = scmp.ne.s32.totalorder %s102, %s103
    %p112 = scmp.eq.s32.totalorder %s15, 0
    %p113 = por %p111, %p112
    %p114 = scmp.ne.s32.totalorder %s102, %s103
    %p115 = scmp.eq.s32.totalorder %s16, 11
    %p116 = por %p114, %p115
    %p118 = scmp.ne.s32.totalorder %s103, %s117
    %p119 = scmp.eq.s32.totalorder %s16, 0
    %p120 = por %p118, %p119
    %s121 = ssub.s32 %s17, %s29
    %s122 = ssub.s32 %s18, %s25
    %s123 = sor.u32 %s121, %s122
    %p124 = scmp.eq.s32.totalorder %s123, 0
    %s126 = sadd.s32 %s125, 1
    %s127 = scalar_select %p124, %s125, %s126
    %p130 = pneg %p124
    %p131 = scmp.eq.s32.totalorder %s10, 11
    %p132 = por %p130, %p131
    %p133 = scmp.ne.s32.totalorder %s125, %s128
    %p134 = scmp.eq.s32.totalorder %s10, 0
    %p135 = por %p133, %p134
    %p136 = scmp.ne.s32.totalorder %s125, %s128
    %p137 = scmp.eq.s32.totalorder %s15, 11
    %p138 = por %p136, %p137
    %p139 = scmp.ne.s32.totalorder %s128, %s129
    %p140 = scmp.eq.s32.totalorder %s15, 0
    %p141 = por %p139, %p140
    %p142 = scmp.ne.s32.totalorder %s128, %s129
    %p143 = scmp.eq.s32.totalorder %s16, 11
    %p144 = por %p142, %p143
    %p146 = scmp.ne.s32.totalorder %s129, %s145
    %p147 = scmp.eq.s32.totalorder %s16, 0
    %p148 = por %p146, %p147
    %p149 = scmp.le.s32.totalorder 1, %s10
    %p150 = scmp.lt.s32.totalorder %s10, 13
    %p151 = pnand %p149, %p150
    %p152 = pneg %p151
    // Predicated region
    $region9: #{_lambda_.4} parent=5 // pred_check
      _
    $region10: #{_lambda_.4} parent=5 // pred_check_branch
      %154 = sbr.rel (%p151) target = $region12
    $region11: #{_lambda_.4} parent=5 // pred_region
      %s155 = ssub.s32 %s10, 1
      // Predicated region
      $region13: #{_lambda_.4} parent=11 // pred_check
        %p156 = pneg %p71
      $region14: #{_lambda_.4} parent=11 // pred_check_branch
        %158 = sbr.rel (%p156) target = $region16
      $region15: #{_lambda_.4} parent=11 // pred_region
        _
      $region16: #{_lambda_.4} parent=11 // pred_fallthru
        _
      // Predicated region
      $region17: #{_lambda_.4} parent=11 // pred_check
        %p159 = pneg %p92
      $region18: #{_lambda_.4} parent=11 // pred_check_branch
        %161 = sbr.rel (%p159) target = $region20
      $region19: #{_lambda_.4} parent=11 // pred_region
        _
      $region20: #{_lambda_.4} parent=11 // pred_fallthru
        _
      // Predicated region
      $region21: #{_lambda_.4} parent=11 // pred_check
        %p162 = pneg %p113
      $region22: #{_lambda_.4} parent=11 // pred_check_branch
        %164 = sbr.rel (%p162) target = $region24
      $region23: #{_lambda_.4} parent=11 // pred_region
        _
      $region24: #{_lambda_.4} parent=11 // pred_fallthru
        _
    $region12: #{_lambda_.4} parent=5 // pred_fallthru
      _
    %p165 = scmp.lt.s32.totalorder %s10, 12
    // Predicated region
    $region25: #{_lambda_.4} parent=5 // pred_check
      %p166 = pneg %p165
    $region26: #{_lambda_.4} parent=5 // pred_check_branch
      %168 = sbr.rel (%p166) target = $region28
    $region27: #{_lambda_.4} parent=5 // pred_region
      // Predicated region
      $region29: #{_lambda_.4} parent=27 // pred_check
        %p169 = pneg %p44
      $region30: #{_lambda_.4} parent=27 // pred_check_branch
        %171 = sbr.rel (%p169) target = $region32
      $region31: #{_lambda_.4} parent=27 // pred_region
        %p172 = scmp.lt.s32.totalorder %s17, 3
        %s173 = scalar_select %p172, %s17, 3
        %p174 = scmp.lt.s32.totalorder %s18, 2
        %s175 = scalar_select %p174, %s18, 2
        %s176 = smul.addr %s175, 108
        %s177 = smul.addr %s173, 324
        %s178 = sadd.s32 %s176, %s177
        %s179 = smul.addr %s178, 8
        %s180 = scalar_lea.vmem %s0, %s179
      $region32: #{_lambda_.4} parent=27 // pred_fallthru
        _
    $region28: #{_lambda_.4} parent=5 // pred_fallthru
      _
    %p181 = scmp.le.s32.totalorder 1, %s10
    %p182 = scmp.lt.s32.totalorder %s10, 13
    %p183 = pnand %p181, %p182
    %p184 = pneg %p183
    // Predicated region
    $region33: #{_lambda_.4} parent=5 // pred_check
      _
    $region34: #{_lambda_.4} parent=5 // pred_check_branch
      %186 = sbr.rel (%p183) target = $region36
    $region35: #{_lambda_.4} parent=5 // pred_region
      %s187 = ssub.s32 %s10, 1
      %p188 = scmp.lt.s32.totalorder %s19, 3
      %s189 = scalar_select %p188, %s19, 3
      %p190 = scmp.lt.s32.totalorder %s20, 2
      %s191 = scalar_select %p190, %s20, 2
      %s192 = smul.addr %s191, 108
      %s193 = smul.addr %s189, 324
      %s194 = sadd.s32 %s192, %s193
      %s195 = smul.addr %s194, 8
      %s196 = scalar_lea.vmem %s0, %s195
      %p197 = pneg %p50
      %p198 = pneg %p47
      %p199 = pneg %p71
      %p200 = pneg %p68
      %p201 = pneg %p92
      %p202 = pneg %p89
      %p203 = pneg %p113
      %p204 = pneg %p110
      %p205 = pneg %p141
      %p206 = pneg %p138
      %s207 = smul.u32 24, %s20
      %p208 = scmp.lt.s32.totalorder %s19, 3
      %s209 = scalar_select %p208, %s19, 3
      %p210 = scmp.lt.s32.totalorder %s207, 71
      %s211 = scalar_select %p210, %s207, 71
      %s212 = smul.addr %s209, 72
      %s213 = sadd.s32 %s211, %s212
      %s214 = smul.addr %s213, 4
      %s215 = scalar_lea.vmem %s4, %s214
      %p216 = scmp.lt.s32.totalorder %s19, 3
      %s217 = scalar_select %p216, %s19, 3
      %p218 = scmp.lt.s32.totalorder %s20, 2
      %s219 = scalar_select %p218, %s20, 2
      %s220 = smul.addr %s219, 108
      %s221 = smul.addr %s217, 324
      %s222 = sadd.s32 %s220, %s221
      %s223 = smul.addr %s222, 8
      %s224 = scalar_lea.vmem %s0, %s223
      %s225 = smul.u32 24, %s20
      %p226 = scmp.lt.s32.totalorder %s19, 3
      %s227 = scalar_select %p226, %s19, 3
      %p228 = scmp.lt.s32.totalorder %s225, 71
      %s229 = scalar_select %p228, %s225, 71
      %s230 = smul.addr %s227, 72
      %s231 = sadd.s32 %s229, %s230
      %s232 = smul.addr %s231, 4
      %s233 = scalar_lea.vmem %s4, %s232
      %s234 = smul.u32 24, %s20
      %v235 = vld [vmem:[%s224] sm:$0xff]
      %v236 = vld [vmem:[%s224 + $0x8] sm:$0xff]
      %v237 = vld [vmem:[%s224 + $0x10] sm:$0xff]
      %v238 = vld [vmem:[%s224 + $0x18] sm:$0xff]
      %v239 = vld [vmem:[%s224 + $0x20] sm:$0xff]
      %v240 = vld [vmem:[%s224 + $0x28] sm:$0xff]
      %v241 = vld [vmem:[%s224 + $0x30] sm:$0xff]
      %v242 = vld [vmem:[%s224 + $0x38] sm:$0xff]
      %v243 = vld [vmem:[%s224 + $0x40] sm:$0xff]
      %v244 = vld [vmem:[%s224 + $0x48] sm:$0xff]
      %v245 = vld [vmem:[%s224 + $0x50] sm:$0xff]
      %v246 = vld [vmem:[%s224 + $0x58] sm:$0xff]
      %v247 = vld [vmem:[%s224 + $0x60] sm:$0xff]
      %v248 = vld [vmem:[%s224 + $0x68] sm:$0xff]
      %v249 = vld [vmem:[%s224 + $0x70] sm:$0xff]
      %v250 = vld [vmem:[%s224 + $0x78] sm:$0xff]
      %v251 = vld [vmem:[%s224 + $0x80] sm:$0xff]
      %v252 = vld [vmem:[%s224 + $0x88] sm:$0xff]
      %v253 = vld [vmem:[%s224 + $0x90] sm:$0xff]
      %v254 = vld [vmem:[%s224 + $0x98] sm:$0xff]
      %v255 = vld [vmem:[%s224 + $0xa0] sm:$0xff]
      %v256 = vld [vmem:[%s224 + $0xa8] sm:$0xff]
      %v257 = vld [vmem:[%s224 + $0xb0] sm:$0xff]
      %v258 = vld [vmem:[%s224 + $0xb8] sm:$0xff]
      %v259 = vld [vmem:[%s224 + $0xc0] sm:$0xff]
      %v260 = vld [vmem:[%s224 + $0xc8] sm:$0xff]
      %v261 = vld [vmem:[%s224 + $0xd0] sm:$0xff]
      %v262 = vld [vmem:[%s224 + $0xd8] sm:$0xff]
      %v263 = vld [vmem:[%s224 + $0xe0] sm:$0xff]
      %v264 = vld [vmem:[%s224 + $0xe8] sm:$0xff]
      %v265 = vld [vmem:[%s224 + $0xf0] sm:$0xff]
      %v266 = vld [vmem:[%s224 + $0xf8] sm:$0xff]
      %v267 = vld [vmem:[%s224 + $0x100] sm:$0xff]
      %v268 = vld [vmem:[%s224 + $0x108] sm:$0xff]
      %v269 = vld [vmem:[%s224 + $0x110] sm:$0xff]
      %v270 = vld [vmem:[%s224 + $0x118] sm:$0xff]
      %v271 = vld [vmem:[%s224 + $0x120] sm:$0xff]
      %v272 = vld [vmem:[%s224 + $0x128] sm:$0xff]
      %v273 = vld [vmem:[%s224 + $0x130] sm:$0xff]
      %v274 = vld [vmem:[%s224 + $0x138] sm:$0xff]
      %v275 = vld [vmem:[%s224 + $0x140] sm:$0xff]
      %v276 = vld [vmem:[%s224 + $0x148] sm:$0xff]
      %v277 = vld [vmem:[%s224 + $0x150] sm:$0xff]
      %v278 = vld [vmem:[%s224 + $0x158] sm:$0xff]
      %v279 = vld [vmem:[%s224 + $0x160] sm:$0xff]
      %v280 = vld [vmem:[%s224 + $0x168] sm:$0xff]
      %v281 = vld [vmem:[%s224 + $0x170] sm:$0xff]
      %v282 = vld [vmem:[%s224 + $0x178] sm:$0xff]
      %v283 = vld [vmem:[%s224 + $0x180] sm:$0xff]
      %v284 = vld [vmem:[%s224 + $0x188] sm:$0xff]
      %v285 = vld [vmem:[%s224 + $0x190] sm:$0xff]
      %v286 = vld [vmem:[%s224 + $0x198] sm:$0xff]
      %v287 = vld [vmem:[%s224 + $0x1a0] sm:$0xff]
      %v288 = vld [vmem:[%s224 + $0x1a8] sm:$0xff]
      %v289 = vld [vmem:[%s224 + $0x1b0] sm:$0xff]
      %v290 = vld [vmem:[%s224 + $0x1b8] sm:$0xff]
      %v291 = vld [vmem:[%s224 + $0x1c0] sm:$0xff]
      %v292 = vld [vmem:[%s224 + $0x1c8] sm:$0xff]
      %v293 = vld [vmem:[%s224 + $0x1d0] sm:$0xff]
      %v294 = vld [vmem:[%s224 + $0x1d8] sm:$0xff]
      %v295 = vld [vmem:[%s224 + $0x1e0] sm:$0xff]
      %v296 = vld [vmem:[%s224 + $0x1e8] sm:$0xff]
      %v297 = vld [vmem:[%s224 + $0x1f0] sm:$0xff]
      %v298 = vld [vmem:[%s224 + $0x1f8] sm:$0xff]
      %v299 = vld [vmem:[%s224 + $0x200] sm:$0xff]
      %v300 = vld [vmem:[%s224 + $0x208] sm:$0xff]
      %v301 = vld [vmem:[%s224 + $0x210] sm:$0xff]
      %v302 = vld [vmem:[%s224 + $0x218] sm:$0xff]
      %v303 = vld [vmem:[%s224 + $0x220] sm:$0xff]
      %v304 = vld [vmem:[%s224 + $0x228] sm:$0xff]
      %v305 = vld [vmem:[%s224 + $0x230] sm:$0xff]
      %v306 = vld [vmem:[%s224 + $0x238] sm:$0xff]
      %v307 = vld [vmem:[%s224 + $0x240] sm:$0xff]
      %v308 = vld [vmem:[%s224 + $0x248] sm:$0xff]
      %v309 = vld [vmem:[%s224 + $0x250] sm:$0xff]
      %v310 = vld [vmem:[%s224 + $0x258] sm:$0xff]
      %v311 = vld [vmem:[%s224 + $0x260] sm:$0xff]
      %v312 = vld [vmem:[%s224 + $0x268] sm:$0xff]
      %v313 = vld [vmem:[%s224 + $0x270] sm:$0xff]
      %v314 = vld [vmem:[%s224 + $0x278] sm:$0xff]
      %v315 = vld [vmem:[%s224 + $0x280] sm:$0xff]
      %v316 = vld [vmem:[%s224 + $0x288] sm:$0xff]
      %v317 = vld [vmem:[%s224 + $0x290] sm:$0xff]
      %v318 = vld [vmem:[%s224 + $0x298] sm:$0xff]
      %v319 = vld [vmem:[%s224 + $0x2a0] sm:$0xff]
      %v320 = vld [vmem:[%s224 + $0x2a8] sm:$0xff]
      %v321 = vld [vmem:[%s224 + $0x2b0] sm:$0xff]
      %v322 = vld [vmem:[%s224 + $0x2b8] sm:$0xff]
      %v323 = vld [vmem:[%s224 + $0x2c0] sm:$0xff]
      %v324 = vld [vmem:[%s224 + $0x2c8] sm:$0xff]
      %v325 = vld [vmem:[%s224 + $0x2d0] sm:$0xff]
      %v326 = vld [vmem:[%s224 + $0x2d8] sm:$0xff]
      %v327 = vld [vmem:[%s224 + $0x2e0] sm:$0xff]
      %v328 = vld [vmem:[%s224 + $0x2e8] sm:$0xff]
      %v329 = vld [vmem:[%s224 + $0x2f0] sm:$0xff]
      %v330 = vld [vmem:[%s224 + $0x2f8] sm:$0xff]
      %v331 = vpack.c.bf16 %v239, %v235
      %v332 = vpack.c.bf16 %v240, %v236
      %v333 = vpack.c.bf16 %v241, %v237
      %v334 = vpack.c.bf16 %v242, %v238
      %v335 = vpack.c.bf16 %v247, %v243
      %v336 = vpack.c.bf16 %v248, %v244
      %v337 = vpack.c.bf16 %v249, %v245
      %v338 = vpack.c.bf16 %v250, %v246
      %v339 = vpack.c.bf16 %v255, %v251
      %v340 = vpack.c.bf16 %v256, %v252
      %v341 = vpack.c.bf16 %v257, %v253
      %v342 = vpack.c.bf16 %v258, %v254
      %v343 = vpack.c.bf16 %v263, %v259
      %v344 = vpack.c.bf16 %v264, %v260
      %v345 = vpack.c.bf16 %v265, %v261
      %v346 = vpack.c.bf16 %v266, %v262
      %v347 = vpack.c.bf16 %v271, %v267
      %v348 = vpack.c.bf16 %v272, %v268
      %v349 = vpack.c.bf16 %v273, %v269
      %v350 = vpack.c.bf16 %v274, %v270
      %v351 = vpack.c.bf16 %v279, %v275
      %v352 = vpack.c.bf16 %v280, %v276
      %v353 = vpack.c.bf16 %v281, %v277
      %v354 = vpack.c.bf16 %v282, %v278
      %v355 = vpack.c.bf16 %v287, %v283
      %v356 = vpack.c.bf16 %v288, %v284
      %v357 = vpack.c.bf16 %v289, %v285
      %v358 = vpack.c.bf16 %v290, %v286
      %v359 = vpack.c.bf16 %v295, %v291
      %v360 = vpack.c.bf16 %v296, %v292
      %v361 = vpack.c.bf16 %v297, %v293
      %v362 = vpack.c.bf16 %v298, %v294
      %v363 = vpack.c.bf16 %v303, %v299
      %v364 = vpack.c.bf16 %v304, %v300
      %v365 = vpack.c.bf16 %v305, %v301
      %v366 = vpack.c.bf16 %v306, %v302
      %v367 = vpack.c.bf16 %v311, %v307
      %v368 = vpack.c.bf16 %v312, %v308
      %v369 = vpack.c.bf16 %v313, %v309
      %v370 = vpack.c.bf16 %v314, %v310
      %v371 = vpack.c.bf16 %v319, %v315
      %v372 = vpack.c.bf16 %v320, %v316
      %v373 = vpack.c.bf16 %v321, %v317
      %v374 = vpack.c.bf16 %v322, %v318
      %v375 = vpack.c.bf16 %v327, %v323
      %v376 = vpack.c.bf16 %v328, %v324
      %v377 = vpack.c.bf16 %v329, %v325
      %v378 = vpack.c.bf16 %v330, %v326
      %v379 = vld [vmem:[%s1] sm:$0xf]
      %v380 = vld [vmem:[%s1 + $0x4] sm:$0xf]
      %v381 = vld [vmem:[%s1 + $0x8] sm:$0xf]
      %v382 = vld [vmem:[%s1 + $0xc] sm:$0xf]
      %v383 = vld [vmem:[%s1 + $0x10] sm:$0xf]
      %v384 = vld [vmem:[%s1 + $0x14] sm:$0xf]
      %v385 = vld [vmem:[%s1 + $0x18] sm:$0xf]
      %v386 = vld [vmem:[%s1 + $0x1c] sm:$0xf]
      %v387 = vld [vmem:[%s1 + $0x20] sm:$0xf]
      %v388 = vld [vmem:[%s1 + $0x24] sm:$0xf]
      %v389 = vld [vmem:[%s1 + $0x28] sm:$0xf]
      %v390 = vld [vmem:[%s1 + $0x2c] sm:$0xf]
      %v391 = vld [vmem:[%s1 + $0x30] sm:$0xf]
      %v392 = vld [vmem:[%s1 + $0x34] sm:$0xf]
      %v393 = vld [vmem:[%s1 + $0x38] sm:$0xf]
      %v394 = vld [vmem:[%s1 + $0x3c] sm:$0xf]
      %v395 = vld [vmem:[%s1 + $0x40] sm:$0xf]
      %v396 = vld [vmem:[%s1 + $0x44] sm:$0xf]
      %v397 = vld [vmem:[%s1 + $0x48] sm:$0xf]
      %v398 = vld [vmem:[%s1 + $0x4c] sm:$0xf]
      %v399 = vld [vmem:[%s1 + $0x50] sm:$0xf]
      %v400 = vld [vmem:[%s1 + $0x54] sm:$0xf]
      %v401 = vld [vmem:[%s1 + $0x58] sm:$0xf]
      %v402 = vld [vmem:[%s1 + $0x5c] sm:$0xf]
      %v403 = vld [vmem:[%s1 + $0x60] sm:$0xf]
      %v404 = vld [vmem:[%s1 + $0x64] sm:$0xf]
      %v405 = vld [vmem:[%s1 + $0x68] sm:$0xf]
      %v406 = vld [vmem:[%s1 + $0x6c] sm:$0xf]
      %v407 = vld [vmem:[%s1 + $0x70] sm:$0xf]
      %v408 = vld [vmem:[%s1 + $0x74] sm:$0xf]
      %v409 = vld [vmem:[%s1 + $0x78] sm:$0xf]
      %v410 = vld [vmem:[%s1 + $0x7c] sm:$0xf]
      %v411 = vld [vmem:[%s1 + $0x80] sm:$0xf]
      %v412 = vld [vmem:[%s1 + $0x84] sm:$0xf]
      %v413 = vld [vmem:[%s1 + $0x88] sm:$0xf]
      %v414 = vld [vmem:[%s1 + $0x8c] sm:$0xf]
      %v415 = vld [vmem:[%s1 + $0x90] sm:$0xf]
      %v416 = vld [vmem:[%s1 + $0x94] sm:$0xf]
      %v417 = vld [vmem:[%s1 + $0x98] sm:$0xf]
      %v418 = vld [vmem:[%s1 + $0x9c] sm:$0xf]
      %v419 = vld [vmem:[%s1 + $0xa0] sm:$0xf]
      %v420 = vld [vmem:[%s1 + $0xa4] sm:$0xf]
      %v421 = vld [vmem:[%s1 + $0xa8] sm:$0xf]
      %v422 = vld [vmem:[%s1 + $0xac] sm:$0xf]
      %v423 = vld [vmem:[%s1 + $0xb0] sm:$0xf]
      %v424 = vld [vmem:[%s1 + $0xb4] sm:$0xf]
      %v425 = vld [vmem:[%s1 + $0xb8] sm:$0xf]
      %v426 = vld [vmem:[%s1 + $0xbc] sm:$0xf]
      %v427 = vld [vmem:[%s1 + $0xc0] sm:$0xf]
      %v428 = vld [vmem:[%s1 + $0xc4] sm:$0xf]
      %v429 = vld [vmem:[%s1 + $0xc8] sm:$0xf]
      %v430 = vld [vmem:[%s1 + $0xcc] sm:$0xf]
      %v431 = vld [vmem:[%s1 + $0xd0] sm:$0xf]
      %v432 = vld [vmem:[%s1 + $0xd4] sm:$0xf]
      %v433 = vld [vmem:[%s1 + $0xd8] sm:$0xf]
      %v434 = vld [vmem:[%s1 + $0xdc] sm:$0xf]
      %v435 = vld [vmem:[%s1 + $0xe0] sm:$0xf]
      %v436 = vld [vmem:[%s1 + $0xe4] sm:$0xf]
      %v437 = vld [vmem:[%s1 + $0xe8] sm:$0xf]
      %v438 = vld [vmem:[%s1 + $0xec] sm:$0xf]
      %v439 = vld [vmem:[%s1 + $0xf0] sm:$0xf]
      %v440 = vld [vmem:[%s1 + $0xf4] sm:$0xf]
      %v441 = vld [vmem:[%s1 + $0xf8] sm:$0xf]
      %v442 = vld [vmem:[%s1 + $0xfc] sm:$0xf]
      %v443 = vld [vmem:[%s224 + $0x60] sm:$0xff]
      %v444 = vld [vmem:[%s224 + $0x68] sm:$0xff]
      %v445 = vld [vmem:[%s224 + $0x70] sm:$0xff]
      %v446 = vld [vmem:[%s224 + $0x78] sm:$0xff]
      %v447 = vld [vmem:[%s224 + $0x80] sm:$0xff]
      %v448 = vld [vmem:[%s224 + $0x88] sm:$0xff]
      %v449 = vld [vmem:[%s224 + $0x90] sm:$0xff]
      %v450 = vld [vmem:[%s224 + $0x98] sm:$0xff]
      %v451 = vld [vmem:[%s224 + $0xa0] sm:$0xff]
      %v452 = vld [vmem:[%s224 + $0xa8] sm:$0xff]
      %v453 = vld [vmem:[%s224 + $0xb0] sm:$0xff]
      %v454 = vld [vmem:[%s224 + $0xb8] sm:$0xff]
      %v455 = vld [vmem:[%s224 + $0xc0] sm:$0xff]
      %v456 = vld [vmem:[%s224 + $0xc8] sm:$0xff]
      %v457 = vld [vmem:[%s224 + $0xd0] sm:$0xff]
      %v458 = vld [vmem:[%s224 + $0xd8] sm:$0xff]
      %v459 = vld [vmem:[%s224 + $0xe0] sm:$0xff]
      %v460 = vld [vmem:[%s224 + $0xe8] sm:$0xff]
      %v461 = vld [vmem:[%s224 + $0xf0] sm:$0xff]
      %v462 = vld [vmem:[%s224 + $0xf8] sm:$0xff]
      %v463 = vld [vmem:[%s224 + $0x100] sm:$0xff]
      %v464 = vld [vmem:[%s224 + $0x108] sm:$0xff]
      %v465 = vld [vmem:[%s224 + $0x110] sm:$0xff]
      %v466 = vld [vmem:[%s224 + $0x118] sm:$0xff]
      %v467 = vld [vmem:[%s224 + $0x120] sm:$0xff]
      %v468 = vld [vmem:[%s224 + $0x128] sm:$0xff]
      %v469 = vld [vmem:[%s224 + $0x130] sm:$0xff]
      %v470 = vld [vmem:[%s224 + $0x138] sm:$0xff]
      %v471 = vld [vmem:[%s224 + $0x140] sm:$0xff]
      %v472 = vld [vmem:[%s224 + $0x148] sm:$0xff]
      %v473 = vld [vmem:[%s224 + $0x150] sm:$0xff]
      %v474 = vld [vmem:[%s224 + $0x158] sm:$0xff]
      %v475 = vld [vmem:[%s224 + $0x160] sm:$0xff]
      %v476 = vld [vmem:[%s224 + $0x168] sm:$0xff]
      %v477 = vld [vmem:[%s224 + $0x170] sm:$0xff]
      %v478 = vld [vmem:[%s224 + $0x178] sm:$0xff]
      %v479 = vld [vmem:[%s224 + $0x180] sm:$0xff]
      %v480 = vld [vmem:[%s224 + $0x188] sm:$0xff]
      %v481 = vld [vmem:[%s224 + $0x190] sm:$0xff]
      %v482 = vld [vmem:[%s224 + $0x198] sm:$0xff]
      %v483 = vld [vmem:[%s224 + $0x1a0] sm:$0xff]
      %v484 = vld [vmem:[%s224 + $0x1a8] sm:$0xff]
      %v485 = vld [vmem:[%s224 + $0x1b0] sm:$0xff]
      %v486 = vld [vmem:[%s224 + $0x1b8] sm:$0xff]
      %v487 = vld [vmem:[%s224 + $0x1c0] sm:$0xff]
      %v488 = vld [vmem:[%s224 + $0x1c8] sm:$0xff]
      %v489 = vld [vmem:[%s224 + $0x1d0] sm:$0xff]
      %v490 = vld [vmem:[%s224 + $0x1d8] sm:$0xff]
      %v491 = vld [vmem:[%s224 + $0x1e0] sm:$0xff]
      %v492 = vld [vmem:[%s224 + $0x1e8] sm:$0xff]
      %v493 = vld [vmem:[%s224 + $0x1f0] sm:$0xff]
      %v494 = vld [vmem:[%s224 + $0x1f8] sm:$0xff]
      %v495 = vld [vmem:[%s224 + $0x200] sm:$0xff]
      %v496 = vld [vmem:[%s224 + $0x208] sm:$0xff]
      %v497 = vld [vmem:[%s224 + $0x210] sm:$0xff]
      %v498 = vld [vmem:[%s224 + $0x218] sm:$0xff]
      %v499 = vld [vmem:[%s224 + $0x220] sm:$0xff]
      %v500 = vld [vmem:[%s224 + $0x228] sm:$0xff]
      %v501 = vld [vmem:[%s224 + $0x230] sm:$0xff]
      %v502 = vld [vmem:[%s224 + $0x238] sm:$0xff]
      %v503 = vld [vmem:[%s224 + $0x240] sm:$0xff]
      %v504 = vld [vmem:[%s224 + $0x248] sm:$0xff]
      %v505 = vld [vmem:[%s224 + $0x250] sm:$0xff]
      %v506 = vld [vmem:[%s224 + $0x258] sm:$0xff]
      %v507 = vld [vmem:[%s224 + $0x260] sm:$0xff]
      %v508 = vld [vmem:[%s224 + $0x268] sm:$0xff]
      %v509 = vld [vmem:[%s224 + $0x270] sm:$0xff]
      %v510 = vld [vmem:[%s224 + $0x278] sm:$0xff]
      %v511 = vld [vmem:[%s224 + $0x280] sm:$0xff]
      %v512 = vld [vmem:[%s224 + $0x288] sm:$0xff]
      %v513 = vld [vmem:[%s224 + $0x290] sm:$0xff]
      %v514 = vld [vmem:[%s224 + $0x298] sm:$0xff]
      %v515 = vld [vmem:[%s224 + $0x2a0] sm:$0xff]
      %v516 = vld [vmem:[%s224 + $0x2a8] sm:$0xff]
      %v517 = vld [vmem:[%s224 + $0x2b0] sm:$0xff]
      %v518 = vld [vmem:[%s224 + $0x2b8] sm:$0xff]
      %v519 = vld [vmem:[%s224 + $0x2c0] sm:$0xff]
      %v520 = vld [vmem:[%s224 + $0x2c8] sm:$0xff]
      %v521 = vld [vmem:[%s224 + $0x2d0] sm:$0xff]
      %v522 = vld [vmem:[%s224 + $0x2d8] sm:$0xff]
      %v523 = vld [vmem:[%s224 + $0x2e0] sm:$0xff]
      %v524 = vld [vmem:[%s224 + $0x2e8] sm:$0xff]
      %v525 = vld [vmem:[%s224 + $0x2f0] sm:$0xff]
      %v526 = vld [vmem:[%s224 + $0x2f8] sm:$0xff]
      %v527 = vld [vmem:[%s224 + $0x300] sm:$0xff]
      %v528 = vld [vmem:[%s224 + $0x308] sm:$0xff]
      %v529 = vld [vmem:[%s224 + $0x310] sm:$0xff]
      %v530 = vld [vmem:[%s224 + $0x318] sm:$0xff]
      %v531 = vld [vmem:[%s224 + $0x320] sm:$0xff]
      %v532 = vld [vmem:[%s224 + $0x328] sm:$0xff]
      %v533 = vld [vmem:[%s224 + $0x330] sm:$0xff]
      %v534 = vld [vmem:[%s224 + $0x338] sm:$0xff]
      %v535 = vld [vmem:[%s224 + $0x340] sm:$0xff]
      %v536 = vld [vmem:[%s224 + $0x348] sm:$0xff]
      %v537 = vld [vmem:[%s224 + $0x350] sm:$0xff]
      %v538 = vld [vmem:[%s224 + $0x358] sm:$0xff]
      %v539 = vpack.c.bf16 %v447, %v443
      %v540 = vpack.c.bf16 %v448, %v444
      %v541 = vpack.c.bf16 %v449, %v445
      %v542 = vpack.c.bf16 %v450, %v446
      %v543 = vpack.c.bf16 %v455, %v451
      %v544 = vpack.c.bf16 %v456, %v452
      %v545 = vpack.c.bf16 %v457, %v453
      %v546 = vpack.c.bf16 %v458, %v454
      %v547 = vpack.c.bf16 %v463, %v459
      %v548 = vpack.c.bf16 %v464, %v460
      %v549 = vpack.c.bf16 %v465, %v461
      %v550 = vpack.c.bf16 %v466, %v462
      %v551 = vpack.c.bf16 %v471, %v467
      %v552 = vpack.c.bf16 %v472, %v468
      %v553 = vpack.c.bf16 %v473, %v469
      %v554 = vpack.c.bf16 %v474, %v470
      %v555 = vpack.c.bf16 %v479, %v475
      %v556 = vpack.c.bf16 %v480, %v476
      %v557 = vpack.c.bf16 %v481, %v477
      %v558 = vpack.c.bf16 %v482, %v478
      %v559 = vpack.c.bf16 %v487, %v483
      %v560 = vpack.c.bf16 %v488, %v484
      %v561 = vpack.c.bf16 %v489, %v485
      %v562 = vpack.c.bf16 %v490, %v486
      %v563 = vpack.c.bf16 %v495, %v491
      %v564 = vpack.c.bf16 %v496, %v492
      %v565 = vpack.c.bf16 %v497, %v493
      %v566 = vpack.c.bf16 %v498, %v494
      %v567 = vpack.c.bf16 %v503, %v499
      %v568 = vpack.c.bf16 %v504, %v500
      %v569 = vpack.c.bf16 %v505, %v501
      %v570 = vpack.c.bf16 %v506, %v502
      %v571 = vpack.c.bf16 %v511, %v507
      %v572 = vpack.c.bf16 %v512, %v508
      %v573 = vpack.c.bf16 %v513, %v509
      %v574 = vpack.c.bf16 %v514, %v510
      %v575 = vpack.c.bf16 %v519, %v515
      %v576 = vpack.c.bf16 %v520, %v516
      %v577 = vpack.c.bf16 %v521, %v517
      %v578 = vpack.c.bf16 %v522, %v518
      %v579 = vpack.c.bf16 %v527, %v523
      %v580 = vpack.c.bf16 %v528, %v524
      %v581 = vpack.c.bf16 %v529, %v525
      %v582 = vpack.c.bf16 %v530, %v526
      %v583 = vpack.c.bf16 %v535, %v531
      %v584 = vpack.c.bf16 %v536, %v532
      %v585 = vpack.c.bf16 %v537, %v533
      %v586 = vpack.c.bf16 %v538, %v534
      %s587 = scalar_lea.vmem %s1, 256
      %v588 = vld [vmem:[%s587] sm:$0xf]
      %v589 = vld [vmem:[%s587 + $0x4] sm:$0xf]
      %v590 = vld [vmem:[%s587 + $0x8] sm:$0xf]
      %v591 = vld [vmem:[%s587 + $0xc] sm:$0xf]
      %v592 = vld [vmem:[%s587 + $0x10] sm:$0xf]
      %v593 = vld [vmem:[%s587 + $0x14] sm:$0xf]
      %v594 = vld [vmem:[%s587 + $0x18] sm:$0xf]
      %v595 = vld [vmem:[%s587 + $0x1c] sm:$0xf]
      %v596 = vld [vmem:[%s587 + $0x20] sm:$0xf]
      %v597 = vld [vmem:[%s587 + $0x24] sm:$0xf]
      %v598 = vld [vmem:[%s587 + $0x28] sm:$0xf]
      %v599 = vld [vmem:[%s587 + $0x2c] sm:$0xf]
      %v600 = vld [vmem:[%s587 + $0x30] sm:$0xf]
      %v601 = vld [vmem:[%s587 + $0x34] sm:$0xf]
      %v602 = vld [vmem:[%s587 + $0x38] sm:$0xf]
      %v603 = vld [vmem:[%s587 + $0x3c] sm:$0xf]
      %v604 = vld [vmem:[%s587 + $0x40] sm:$0xf]
      %v605 = vld [vmem:[%s587 + $0x44] sm:$0xf]
      %v606 = vld [vmem:[%s587 + $0x48] sm:$0xf]
      %v607 = vld [vmem:[%s587 + $0x4c] sm:$0xf]
      %v608 = vld [vmem:[%s587 + $0x50] sm:$0xf]
      %v609 = vld [vmem:[%s587 + $0x54] sm:$0xf]
      %v610 = vld [vmem:[%s587 + $0x58] sm:$0xf]
      %v611 = vld [vmem:[%s587 + $0x5c] sm:$0xf]
      %v612 = vld [vmem:[%s587 + $0x60] sm:$0xf]
      %v613 = vld [vmem:[%s587 + $0x64] sm:$0xf]
      %v614 = vld [vmem:[%s587 + $0x68] sm:$0xf]
      %v615 = vld [vmem:[%s587 + $0x6c] sm:$0xf]
      %v616 = vld [vmem:[%s587 + $0x70] sm:$0xf]
      %v617 = vld [vmem:[%s587 + $0x74] sm:$0xf]
      %v618 = vld [vmem:[%s587 + $0x78] sm:$0xf]
      %v619 = vld [vmem:[%s587 + $0x7c] sm:$0xf]
      %v620 = vld [vmem:[%s587 + $0x80] sm:$0xf]
      %v621 = vld [vmem:[%s587 + $0x84] sm:$0xf]
      %v622 = vld [vmem:[%s587 + $0x88] sm:$0xf]
      %v623 = vld [vmem:[%s587 + $0x8c] sm:$0xf]
      %v624 = vld [vmem:[%s587 + $0x90] sm:$0xf]
      %v625 = vld [vmem:[%s587 + $0x94] sm:$0xf]
      %v626 = vld [vmem:[%s587 + $0x98] sm:$0xf]
      %v627 = vld [vmem:[%s587 + $0x9c] sm:$0xf]
      %v628 = vld [vmem:[%s587 + $0xa0] sm:$0xf]
      %v629 = vld [vmem:[%s587 + $0xa4] sm:$0xf]
      %v630 = vld [vmem:[%s587 + $0xa8] sm:$0xf]
      %v631 = vld [vmem:[%s587 + $0xac] sm:$0xf]
      %v632 = vld [vmem:[%s587 + $0xb0] sm:$0xf]
      %v633 = vld [vmem:[%s587 + $0xb4] sm:$0xf]
      %v634 = vld [vmem:[%s587 + $0xb8] sm:$0xf]
      %v635 = vld [vmem:[%s587 + $0xbc] sm:$0xf]
      %v636 = vld [vmem:[%s587 + $0xc0] sm:$0xf]
      %v637 = vld [vmem:[%s587 + $0xc4] sm:$0xf]
      %v638 = vld [vmem:[%s587 + $0xc8] sm:$0xf]
      %v639 = vld [vmem:[%s587 + $0xcc] sm:$0xf]
      %v640 = vld [vmem:[%s587 + $0xd0] sm:$0xf]
      %v641 = vld [vmem:[%s587 + $0xd4] sm:$0xf]
      %v642 = vld [vmem:[%s587 + $0xd8] sm:$0xf]
      %v643 = vld [vmem:[%s587 + $0xdc] sm:$0xf]
      %v644 = vld [vmem:[%s587 + $0xe0] sm:$0xf]
      %v645 = vld [vmem:[%s587 + $0xe4] sm:$0xf]
      %v646 = vld [vmem:[%s587 + $0xe8] sm:$0xf]
      %v647 = vld [vmem:[%s587 + $0xec] sm:$0xf]
      %v648 = vld [vmem:[%s587 + $0xf0] sm:$0xf]
      %v649 = vld [vmem:[%s587 + $0xf4] sm:$0xf]
      %v650 = vld [vmem:[%s587 + $0xf8] sm:$0xf]
      %v651 = vld [vmem:[%s587 + $0xfc] sm:$0xf]
      %v716 = vunpack.c.l.b16 %v588
      %v717 = vunpack.c.l.b16 %v589
      %v718 = vunpack.c.l.b16 %v590
      %v719 = vunpack.c.l.b16 %v591
      %v720 = vunpack.c.l.b16 %v592
      %v721 = vunpack.c.l.b16 %v593
      %v722 = vunpack.c.l.b16 %v594
      %v723 = vunpack.c.l.b16 %v595
      %v724 = vunpack.c.l.b16 %v596
      %v725 = vunpack.c.l.b16 %v597
      %v726 = vunpack.c.l.b16 %v598
      %v727 = vunpack.c.l.b16 %v599
      %v728 = vunpack.c.l.b16 %v600
      %v729 = vunpack.c.l.b16 %v601
      %v730 = vunpack.c.l.b16 %v602
      %v731 = vunpack.c.l.b16 %v603
      %v732 = vunpack.c.l.b16 %v604
      %v733 = vunpack.c.l.b16 %v605
      %v734 = vunpack.c.l.b16 %v606
      %v735 = vunpack.c.l.b16 %v607
      %v736 = vunpack.c.l.b16 %v608
      %v737 = vunpack.c.l.b16 %v609
      %v738 = vunpack.c.l.b16 %v610
      %v739 = vunpack.c.l.b16 %v611
      %v740 = vunpack.c.l.b16 %v612
      %v741 = vunpack.c.l.b16 %v613
      %v742 = vunpack.c.l.b16 %v614
      %v743 = vunpack.c.l.b16 %v615
      %v744 = vunpack.c.l.b16 %v616
      %v745 = vunpack.c.l.b16 %v617
      %v746 = vunpack.c.l.b16 %v618
      %v747 = vunpack.c.l.b16 %v619
      %v748 = vunpack.c.l.b16 %v620
      %v749 = vunpack.c.l.b16 %v621
      %v750 = vunpack.c.l.b16 %v622
      %v751 = vunpack.c.l.b16 %v623
      %v752 = vunpack.c.l.b16 %v624
      %v753 = vunpack.c.l.b16 %v625
      %v754 = vunpack.c.l.b16 %v626
      %v755 = vunpack.c.l.b16 %v627
      %v756 = vunpack.c.l.b16 %v628
      %v757 = vunpack.c.l.b16 %v629
      %v758 = vunpack.c.l.b16 %v630
      %v759 = vunpack.c.l.b16 %v631
      %v760 = vunpack.c.l.b16 %v632
      %v761 = vunpack.c.l.b16 %v633
      %v762 = vunpack.c.l.b16 %v634
      %v763 = vunpack.c.l.b16 %v635
      %v764 = vunpack.c.l.b16 %v636
      %v765 = vunpack.c.l.b16 %v637
      %v766 = vunpack.c.l.b16 %v638
      %v767 = vunpack.c.l.b16 %v639
      %v768 = vunpack.c.l.b16 %v640
      %v769 = vunpack.c.l.b16 %v641
      %v770 = vunpack.c.l.b16 %v642
      %v771 = vunpack.c.l.b16 %v643
      %v772 = vunpack.c.l.b16 %v644
      %v773 = vunpack.c.l.b16 %v645
      %v774 = vunpack.c.l.b16 %v646
      %v775 = vunpack.c.l.b16 %v647
      %v776 = vunpack.c.l.b16 %v648
      %v777 = vunpack.c.l.b16 %v649
      %v778 = vunpack.c.l.b16 %v650
      %v779 = vunpack.c.l.b16 %v651
      %v780 = vpack.c.b16 %v717, %v716
      %v781 = vpack.c.b16 %v719, %v718
      %v782 = vpack.c.b16 %v721, %v720
      %v783 = vpack.c.b16 %v723, %v722
      %v784 = vpack.c.b16 %v725, %v724
      %v785 = vpack.c.b16 %v727, %v726
      %v786 = vpack.c.b16 %v729, %v728
      %v787 = vpack.c.b16 %v731, %v730
      %v788 = vpack.c.b16 %v733, %v732
      %v789 = vpack.c.b16 %v735, %v734
      %v790 = vpack.c.b16 %v737, %v736
      %v791 = vpack.c.b16 %v739, %v738
      %v792 = vpack.c.b16 %v741, %v740
      %v793 = vpack.c.b16 %v743, %v742
      %v794 = vpack.c.b16 %v745, %v744
      %v795 = vpack.c.b16 %v747, %v746
      %v796 = vpack.c.b16 %v749, %v748
      %v797 = vpack.c.b16 %v751, %v750
      %v798 = vpack.c.b16 %v753, %v752
      %v799 = vpack.c.b16 %v755, %v754
      %v800 = vpack.c.b16 %v757, %v756
      %v801 = vpack.c.b16 %v759, %v758
      %v802 = vpack.c.b16 %v761, %v760
      %v803 = vpack.c.b16 %v763, %v762
      %v804 = vpack.c.b16 %v765, %v764
      %v805 = vpack.c.b16 %v767, %v766
      %v806 = vpack.c.b16 %v769, %v768
      %v807 = vpack.c.b16 %v771, %v770
      %v808 = vpack.c.b16 %v773, %v772
      %v809 = vpack.c.b16 %v775, %v774
      %v810 = vpack.c.b16 %v777, %v776
      %v811 = vpack.c.b16 %v779, %v778
      %844 = vmatpush.bf16.msra.mxu0 %v787
      %845 = vmatpush.bf16.msra.mxu0 %v786
      %846 = vmatpush.bf16.msra.mxu0 %v785
      %847 = vmatpush.bf16.msra.mxu0 %v784
      %848 = vmatpush.bf16.msra.mxu0 %v783
      %849 = vmatpush.bf16.msra.mxu0 %v782
      %850 = vmatpush.bf16.msra.mxu0 %v781
      %851 = vmatpush.bf16.msra.mxu0 %v780
      %852 = vmatmul.bf16.gmra.mxu0 %v539
      %v853 = vpop.f32.mrf.mxu0
      %v854 = vadd.f32 0.0, %v853
      %v855 = vpop.f32.mrf.mxu0
      %v856 = vadd.f32 0.0, %v855
      %857 = vmatmul.bf16.gmra.mxu0 %v543
      %v858 = vpop.f32.mrf.mxu0
      %v859 = vadd.f32 0.0, %v858
      %v860 = vpop.f32.mrf.mxu0
      %v861 = vadd.f32 0.0, %v860
      %862 = vmatmul.bf16.gmra.mxu0 %v547
      %v863 = vpop.f32.mrf.mxu0
      %v864 = vadd.f32 0.0, %v863
      %v865 = vpop.f32.mrf.mxu0
      %v866 = vadd.f32 0.0, %v865
      %867 = vmatmul.bf16.gmra.mxu0 %v551
      %v868 = vpop.f32.mrf.mxu0
      %v869 = vadd.f32 0.0, %v868
      %v870 = vpop.f32.mrf.mxu0
      %v871 = vadd.f32 0.0, %v870
      %872 = vmatmul.bf16.gmra.mxu0 %v555
      %v873 = vpop.f32.mrf.mxu0
      %v874 = vadd.f32 0.0, %v873
      %v875 = vpop.f32.mrf.mxu0
      %v876 = vadd.f32 0.0, %v875
      %877 = vmatmul.bf16.gmra.mxu0 %v559
      %v878 = vpop.f32.mrf.mxu0
      %v879 = vadd.f32 0.0, %v878
      %v880 = vpop.f32.mrf.mxu0
      %v881 = vadd.f32 0.0, %v880
      %882 = vmatmul.bf16.gmra.mxu0 %v563
      %v883 = vpop.f32.mrf.mxu0
      %v884 = vadd.f32 0.0, %v883
      %v885 = vpop.f32.mrf.mxu0
      %v886 = vadd.f32 0.0, %v885
      %887 = vmatmul.bf16.gmra.mxu0 %v567
      %v888 = vpop.f32.mrf.mxu0
      %v889 = vadd.f32 0.0, %v888
      %v890 = vpop.f32.mrf.mxu0
      %v891 = vadd.f32 0.0, %v890
      %892 = vmatmul.bf16.gmra.mxu0 %v571
      %v893 = vpop.f32.mrf.mxu0
      %v894 = vadd.f32 0.0, %v893
      %v895 = vpop.f32.mrf.mxu0
      %v896 = vadd.f32 0.0, %v895
      %897 = vmatmul.bf16.gmra.mxu0 %v575
      %v898 = vpop.f32.mrf.mxu0
      %v899 = vadd.f32 0.0, %v898
      %v900 = vpop.f32.mrf.mxu0
      %v901 = vadd.f32 0.0, %v900
      %902 = vmatmul.bf16.gmra.mxu0 %v579
      %v903 = vpop.f32.mrf.mxu0
      %v904 = vadd.f32 0.0, %v903
      %v905 = vpop.f32.mrf.mxu0
      %v906 = vadd.f32 0.0, %v905
      %907 = vmatmul.bf16.gmra.mxu0 %v583
      %v908 = vpop.f32.mrf.mxu0
      %v909 = vadd.f32 0.0, %v908
      %v910 = vpop.f32.mrf.mxu0
      %v911 = vadd.f32 0.0, %v910
      %912 = vdwg.mxu0
      %913 = vmatpush.bf16.msra.mxu0 %v795
      %914 = vmatpush.bf16.msra.mxu0 %v794
      %915 = vmatpush.bf16.msra.mxu0 %v793
      %916 = vmatpush.bf16.msra.mxu0 %v792
      %917 = vmatpush.bf16.msra.mxu0 %v791
      %918 = vmatpush.bf16.msra.mxu0 %v790
      %919 = vmatpush.bf16.msra.mxu0 %v789
      %920 = vmatpush.bf16.msra.mxu0 %v788
      %921 = vmatmul.bf16.gmra.mxu0 %v540
      %v922 = vpop.f32.mrf.mxu0
      %v923 = vadd.f32 %v854, %v922
      %v924 = vpop.f32.mrf.mxu0
      %v925 = vadd.f32 %v856, %v924
      %926 = vmatmul.bf16.gmra.mxu0 %v544
      %v927 = vpop.f32.mrf.mxu0
      %v928 = vadd.f32 %v859, %v927
      %v929 = vpop.f32.mrf.mxu0
      %v930 = vadd.f32 %v861, %v929
      %931 = vmatmul.bf16.gmra.mxu0 %v548
      %v932 = vpop.f32.mrf.mxu0
      %v933 = vadd.f32 %v864, %v932
      %v934 = vpop.f32.mrf.mxu0
      %v935 = vadd.f32 %v866, %v934
      %936 = vmatmul.bf16.gmra.mxu0 %v552
      %v937 = vpop.f32.mrf.mxu0
      %v938 = vadd.f32 %v869, %v937
      %v939 = vpop.f32.mrf.mxu0
      %v940 = vadd.f32 %v871, %v939
      %941 = vmatmul.bf16.gmra.mxu0 %v556
      %v942 = vpop.f32.mrf.mxu0
      %v943 = vadd.f32 %v874, %v942
      %v944 = vpop.f32.mrf.mxu0
      %v945 = vadd.f32 %v876, %v944
      %946 = vmatmul.bf16.gmra.mxu0 %v560
      %v947 = vpop.f32.mrf.mxu0
      %v948 = vadd.f32 %v879, %v947
      %v949 = vpop.f32.mrf.mxu0
      %v950 = vadd.f32 %v881, %v949
      %951 = vmatmul.bf16.gmra.mxu0 %v564
      %v952 = vpop.f32.mrf.mxu0
      %v953 = vadd.f32 %v884, %v952
      %v954 = vpop.f32.mrf.mxu0
      %v955 = vadd.f32 %v886, %v954
      %956 = vmatmul.bf16.gmra.mxu0 %v568
      %v957 = vpop.f32.mrf.mxu0
      %v958 = vadd.f32 %v889, %v957
      %v959 = vpop.f32.mrf.mxu0
      %v960 = vadd.f32 %v891, %v959
      %961 = vmatmul.bf16.gmra.mxu0 %v572
      %v962 = vpop.f32.mrf.mxu0
      %v963 = vadd.f32 %v894, %v962
      %v964 = vpop.f32.mrf.mxu0
      %v965 = vadd.f32 %v896, %v964
      %966 = vmatmul.bf16.gmra.mxu0 %v576
      %v967 = vpop.f32.mrf.mxu0
      %v968 = vadd.f32 %v899, %v967
      %v969 = vpop.f32.mrf.mxu0
      %v970 = vadd.f32 %v901, %v969
      %971 = vmatmul.bf16.gmra.mxu0 %v580
      %v972 = vpop.f32.mrf.mxu0
      %v973 = vadd.f32 %v904, %v972
      %v974 = vpop.f32.mrf.mxu0
      %v975 = vadd.f32 %v906, %v974
      %976 = vmatmul.bf16.gmra.mxu0 %v584
      %v977 = vpop.f32.mrf.mxu0
      %v978 = vadd.f32 %v909, %v977
      %v979 = vpop.f32.mrf.mxu0
      %v980 = vadd.f32 %v911, %v979
      %981 = vdwg.mxu0
      %982 = vmatpush.bf16.msra.mxu0 %v803
      %983 = vmatpush.bf16.msra.mxu0 %v802
      %984 = vmatpush.bf16.msra.mxu0 %v801
      %985 = vmatpush.bf16.msra.mxu0 %v800
      %986 = vmatpush.bf16.msra.mxu0 %v799
      %987 = vmatpush.bf16.msra.mxu0 %v798
      %988 = vmatpush.bf16.msra.mxu0 %v797
      %989 = vmatpush.bf16.msra.mxu0 %v796
      %990 = vmatmul.bf16.gmra.mxu0 %v541
      %v991 = vpop.f32.mrf.mxu0
      %v992 = vadd.f32 %v923, %v991
      %v993 = vpop.f32.mrf.mxu0
      %v994 = vadd.f32 %v925, %v993
      %995 = vmatmul.bf16.gmra.mxu0 %v545
      %v996 = vpop.f32.mrf.mxu0
      %v997 = vadd.f32 %v928, %v996
      %v998 = vpop.f32.mrf.mxu0
      %v999 = vadd.f32 %v930, %v998
      %1000 = vmatmul.bf16.gmra.mxu0 %v549
      %v1001 = vpop.f32.mrf.mxu0
      %v1002 = vadd.f32 %v933, %v1001
      %v1003 = vpop.f32.mrf.mxu0
      %v1004 = vadd.f32 %v935, %v1003
      %1005 = vmatmul.bf16.gmra.mxu0 %v553
      %v1006 = vpop.f32.mrf.mxu0
      %v1007 = vadd.f32 %v938, %v1006
      %v1008 = vpop.f32.mrf.mxu0
      %v1009 = vadd.f32 %v940, %v1008
      %1010 = vmatmul.bf16.gmra.mxu0 %v557
      %v1011 = vpop.f32.mrf.mxu0
      %v1012 = vadd.f32 %v943, %v1011
      %v1013 = vpop.f32.mrf.mxu0
      %v1014 = vadd.f32 %v945, %v1013
      %1015 = vmatmul.bf16.gmra.mxu0 %v561
      %v1016 = vpop.f32.mrf.mxu0
      %v1017 = vadd.f32 %v948, %v1016
      %v1018 = vpop.f32.mrf.mxu0
      %v1019 = vadd.f32 %v950, %v1018
      %1020 = vmatmul.bf16.gmra.mxu0 %v565
      %v1021 = vpop.f32.mrf.mxu0
      %v1022 = vadd.f32 %v953, %v1021
      %v1023 = vpop.f32.mrf.mxu0
      %v1024 = vadd.f32 %v955, %v1023
      %1025 = vmatmul.bf16.gmra.mxu0 %v569
      %v1026 = vpop.f32.mrf.mxu0
      %v1027 = vadd.f32 %v958, %v1026
      %v1028 = vpop.f32.mrf.mxu0
      %v1029 = vadd.f32 %v960, %v1028
      %1030 = vmatmul.bf16.gmra.mxu0 %v573
      %v1031 = vpop.f32.mrf.mxu0
      %v1032 = vadd.f32 %v963, %v1031
      %v1033 = vpop.f32.mrf.mxu0
      %v1034 = vadd.f32 %v965, %v1033
      %1035 = vmatmul.bf16.gmra.mxu0 %v577
      %v1036 = vpop.f32.mrf.mxu0
      %v1037 = vadd.f32 %v968, %v1036
      %v1038 = vpop.f32.mrf.mxu0
      %v1039 = vadd.f32 %v970, %v1038
      %1040 = vmatmul.bf16.gmra.mxu0 %v581
      %v1041 = vpop.f32.mrf.mxu0
      %v1042 = vadd.f32 %v973, %v1041
      %v1043 = vpop.f32.mrf.mxu0
      %v1044 = vadd.f32 %v975, %v1043
      %1045 = vmatmul.bf16.gmra.mxu0 %v585
      %v1046 = vpop.f32.mrf.mxu0
      %v1047 = vadd.f32 %v978, %v1046
      %v1048 = vpop.f32.mrf.mxu0
      %v1049 = vadd.f32 %v980, %v1048
      %1050 = vdwg.mxu0
      %1051 = vmatpush.bf16.msra.mxu0 %v811
      %1052 = vmatpush.bf16.msra.mxu0 %v810
      %1053 = vmatpush.bf16.msra.mxu0 %v809
      %1054 = vmatpush.bf16.msra.mxu0 %v808
      %1055 = vmatpush.bf16.msra.mxu0 %v807
      %1056 = vmatpush.bf16.msra.mxu0 %v806
      %1057 = vmatpush.bf16.msra.mxu0 %v805
      %1058 = vmatpush.bf16.msra.mxu0 %v804
      %1059 = vmatmul.bf16.gmra.mxu0 %v542
      %v1060 = vpop.f32.mrf.mxu0
      %v1061 = vadd.f32 %v992, %v1060
      %v1062 = vpop.f32.mrf.mxu0
      %v1063 = vadd.f32 %v994, %v1062
      %1064 = vmatmul.bf16.gmra.mxu0 %v546
      %v1065 = vpop.f32.mrf.mxu0
      %v1066 = vadd.f32 %v997, %v1065
      %v1067 = vpop.f32.mrf.mxu0
      %v1068 = vadd.f32 %v999, %v1067
      %1069 = vmatmul.bf16.gmra.mxu0 %v550
      %v1070 = vpop.f32.mrf.mxu0
      %v1071 = vadd.f32 %v1002, %v1070
      %v1072 = vpop.f32.mrf.mxu0
      %v1073 = vadd.f32 %v1004, %v1072
      %1074 = vmatmul.bf16.gmra.mxu0 %v554
      %v1075 = vpop.f32.mrf.mxu0
      %v1076 = vadd.f32 %v1007, %v1075
      %v1077 = vpop.f32.mrf.mxu0
      %v1078 = vadd.f32 %v1009, %v1077
      %1079 = vmatmul.bf16.gmra.mxu0 %v558
      %v1080 = vpop.f32.mrf.mxu0
      %v1081 = vadd.f32 %v1012, %v1080
      %v1082 = vpop.f32.mrf.mxu0
      %v1083 = vadd.f32 %v1014, %v1082
      %1084 = vmatmul.bf16.gmra.mxu0 %v562
      %v1085 = vpop.f32.mrf.mxu0
      %v1086 = vadd.f32 %v1017, %v1085
      %v1087 = vpop.f32.mrf.mxu0
      %v1088 = vadd.f32 %v1019, %v1087
      %1089 = vmatmul.bf16.gmra.mxu0 %v566
      %v1090 = vpop.f32.mrf.mxu0
      %v1091 = vadd.f32 %v1022, %v1090
      %v1092 = vpop.f32.mrf.mxu0
      %v1093 = vadd.f32 %v1024, %v1092
      %1094 = vmatmul.bf16.gmra.mxu0 %v570
      %v1095 = vpop.f32.mrf.mxu0
      %v1096 = vadd.f32 %v1027, %v1095
      %v1097 = vpop.f32.mrf.mxu0
      %v1098 = vadd.f32 %v1029, %v1097
      %1099 = vmatmul.bf16.gmra.mxu0 %v574
      %v1100 = vpop.f32.mrf.mxu0
      %v1101 = vadd.f32 %v1032, %v1100
      %v1102 = vpop.f32.mrf.mxu0
      %v1103 = vadd.f32 %v1034, %v1102
      %1104 = vmatmul.bf16.gmra.mxu0 %v578
      %v1105 = vpop.f32.mrf.mxu0
      %v1106 = vadd.f32 %v1037, %v1105
      %v1107 = vpop.f32.mrf.mxu0
      %v1108 = vadd.f32 %v1039, %v1107
      %1109 = vmatmul.bf16.gmra.mxu0 %v582
      %v1110 = vpop.f32.mrf.mxu0
      %v1111 = vadd.f32 %v1042, %v1110
      %v1112 = vpop.f32.mrf.mxu0
      %v1113 = vadd.f32 %v1044, %v1112
      %1114 = vmatmul.bf16.gmra.mxu0 %v586
      %v1115 = vpop.f32.mrf.mxu0
      %v1116 = vadd.f32 %v1047, %v1115
      %v1117 = vpop.f32.mrf.mxu0
      %v1118 = vadd.f32 %v1049, %v1117
      %1119 = vdwg.mxu0
      %v1184 = vunpack.c.l.b16 %v379
      %v1185 = vunpack.c.l.b16 %v380
      %v1186 = vunpack.c.l.b16 %v381
      %v1187 = vunpack.c.l.b16 %v382
      %v1188 = vunpack.c.l.b16 %v383
      %v1189 = vunpack.c.l.b16 %v384
      %v1190 = vunpack.c.l.b16 %v385
      %v1191 = vunpack.c.l.b16 %v386
      %v1192 = vunpack.c.l.b16 %v387
      %v1193 = vunpack.c.l.b16 %v388
      %v1194 = vunpack.c.l.b16 %v389
      %v1195 = vunpack.c.l.b16 %v390
      %v1196 = vunpack.c.l.b16 %v391
      %v1197 = vunpack.c.l.b16 %v392
      %v1198 = vunpack.c.l.b16 %v393
      %v1199 = vunpack.c.l.b16 %v394
      %v1200 = vunpack.c.l.b16 %v395
      %v1201 = vunpack.c.l.b16 %v396
      %v1202 = vunpack.c.l.b16 %v397
      %v1203 = vunpack.c.l.b16 %v398
      %v1204 = vunpack.c.l.b16 %v399
      %v1205 = vunpack.c.l.b16 %v400
      %v1206 = vunpack.c.l.b16 %v401
      %v1207 = vunpack.c.l.b16 %v402
      %v1208 = vunpack.c.l.b16 %v403
      %v1209 = vunpack.c.l.b16 %v404
      %v1210 = vunpack.c.l.b16 %v405
      %v1211 = vunpack.c.l.b16 %v406
      %v1212 = vunpack.c.l.b16 %v407
      %v1213 = vunpack.c.l.b16 %v408
      %v1214 = vunpack.c.l.b16 %v409
      %v1215 = vunpack.c.l.b16 %v410
      %v1216 = vunpack.c.l.b16 %v411
      %v1217 = vunpack.c.l.b16 %v412
      %v1218 = vunpack.c.l.b16 %v413
      %v1219 = vunpack.c.l.b16 %v414
      %v1220 = vunpack.c.l.b16 %v415
      %v1221 = vunpack.c.l.b16 %v416
      %v1222 = vunpack.c.l.b16 %v417
      %v1223 = vunpack.c.l.b16 %v418
      %v1224 = vunpack.c.l.b16 %v419
      %v1225 = vunpack.c.l.b16 %v420
      %v1226 = vunpack.c.l.b16 %v421
      %v1227 = vunpack.c.l.b16 %v422
      %v1228 = vunpack.c.l.b16 %v423
      %v1229 = vunpack.c.l.b16 %v424
      %v1230 = vunpack.c.l.b16 %v425
      %v1231 = vunpack.c.l.b16 %v426
      %v1232 = vunpack.c.l.b16 %v427
      %v1233 = vunpack.c.l.b16 %v428
      %v1234 = vunpack.c.l.b16 %v429
      %v1235 = vunpack.c.l.b16 %v430
      %v1236 = vunpack.c.l.b16 %v431
      %v1237 = vunpack.c.l.b16 %v432
      %v1238 = vunpack.c.l.b16 %v433
      %v1239 = vunpack.c.l.b16 %v434
      %v1240 = vunpack.c.l.b16 %v435
      %v1241 = vunpack.c.l.b16 %v436
      %v1242 = vunpack.c.l.b16 %v437
      %v1243 = vunpack.c.l.b16 %v438
      %v1244 = vunpack.c.l.b16 %v439
      %v1245 = vunpack.c.l.b16 %v440
      %v1246 = vunpack.c.l.b16 %v441
      %v1247 = vunpack.c.l.b16 %v442
      %v1248 = vpack.c.b16 %v1185, %v1184
      %v1249 = vpack.c.b16 %v1187, %v1186
      %v1250 = vpack.c.b16 %v1189, %v1188
      %v1251 = vpack.c.b16 %v1191, %v1190
      %v1252 = vpack.c.b16 %v1193, %v1192
      %v1253 = vpack.c.b16 %v1195, %v1194
      %v1254 = vpack.c.b16 %v1197, %v1196
      %v1255 = vpack.c.b16 %v1199, %v1198
      %v1256 = vpack.c.b16 %v1201, %v1200
      %v1257 = vpack.c.b16 %v1203, %v1202
      %v1258 = vpack.c.b16 %v1205, %v1204
      %v1259 = vpack.c.b16 %v1207, %v1206
      %v1260 = vpack.c.b16 %v1209, %v1208
      %v1261 = vpack.c.b16 %v1211, %v1210
      %v1262 = vpack.c.b16 %v1213, %v1212
      %v1263 = vpack.c.b16 %v1215, %v1214
      %v1264 = vpack.c.b16 %v1217, %v1216
      %v1265 = vpack.c.b16 %v1219, %v1218
      %v1266 = vpack.c.b16 %v1221, %v1220
      %v1267 = vpack.c.b16 %v1223, %v1222
      %v1268 = vpack.c.b16 %v1225, %v1224
      %v1269 = vpack.c.b16 %v1227, %v1226
      %v1270 = vpack.c.b16 %v1229, %v1228
      %v1271 = vpack.c.b16 %v1231, %v1230
      %v1272 = vpack.c.b16 %v1233, %v1232
      %v1273 = vpack.c.b16 %v1235, %v1234
      %v1274 = vpack.c.b16 %v1237, %v1236
      %v1275 = vpack.c.b16 %v1239, %v1238
      %v1276 = vpack.c.b16 %v1241, %v1240
      %v1277 = vpack.c.b16 %v1243, %v1242
      %v1278 = vpack.c.b16 %v1245, %v1244
      %v1279 = vpack.c.b16 %v1247, %v1246
      %1312 = vmatpush.bf16.msra.mxu0 %v1255
      %1313 = vmatpush.bf16.msra.mxu0 %v1254
      %1314 = vmatpush.bf16.msra.mxu0 %v1253
      %1315 = vmatpush.bf16.msra.mxu0 %v1252
      %1316 = vmatpush.bf16.msra.mxu0 %v1251
      %1317 = vmatpush.bf16.msra.mxu0 %v1250
      %1318 = vmatpush.bf16.msra.mxu0 %v1249
      %1319 = vmatpush.bf16.msra.mxu0 %v1248
      %1320 = vmatmul.bf16.gmra.mxu0 %v331
      %v1321 = vpop.f32.mrf.mxu0
      %v1322 = vadd.f32 %v1061, %v1321
      %v1323 = vpop.f32.mrf.mxu0
      %v1324 = vadd.f32 %v1063, %v1323
      %1325 = vmatmul.bf16.gmra.mxu0 %v335
      %v1326 = vpop.f32.mrf.mxu0
      %v1327 = vadd.f32 %v1066, %v1326
      %v1328 = vpop.f32.mrf.mxu0
      %v1329 = vadd.f32 %v1068, %v1328
      %1330 = vmatmul.bf16.gmra.mxu0 %v339
      %v1331 = vpop.f32.mrf.mxu0
      %v1332 = vadd.f32 %v1071, %v1331
      %v1333 = vpop.f32.mrf.mxu0
      %v1334 = vadd.f32 %v1073, %v1333
      %1335 = vmatmul.bf16.gmra.mxu0 %v343
      %v1336 = vpop.f32.mrf.mxu0
      %v1337 = vadd.f32 %v1076, %v1336
      %v1338 = vpop.f32.mrf.mxu0
      %v1339 = vadd.f32 %v1078, %v1338
      %1340 = vmatmul.bf16.gmra.mxu0 %v347
      %v1341 = vpop.f32.mrf.mxu0
      %v1342 = vadd.f32 %v1081, %v1341
      %v1343 = vpop.f32.mrf.mxu0
      %v1344 = vadd.f32 %v1083, %v1343
      %1345 = vmatmul.bf16.gmra.mxu0 %v351
      %v1346 = vpop.f32.mrf.mxu0
      %v1347 = vadd.f32 %v1086, %v1346
      %v1348 = vpop.f32.mrf.mxu0
      %v1349 = vadd.f32 %v1088, %v1348
      %1350 = vmatmul.bf16.gmra.mxu0 %v355
      %v1351 = vpop.f32.mrf.mxu0
      %v1352 = vadd.f32 %v1091, %v1351
      %v1353 = vpop.f32.mrf.mxu0
      %v1354 = vadd.f32 %v1093, %v1353
      %1355 = vmatmul.bf16.gmra.mxu0 %v359
      %v1356 = vpop.f32.mrf.mxu0
      %v1357 = vadd.f32 %v1096, %v1356
      %v1358 = vpop.f32.mrf.mxu0
      %v1359 = vadd.f32 %v1098, %v1358
      %1360 = vmatmul.bf16.gmra.mxu0 %v363
      %v1361 = vpop.f32.mrf.mxu0
      %v1362 = vadd.f32 %v1101, %v1361
      %v1363 = vpop.f32.mrf.mxu0
      %v1364 = vadd.f32 %v1103, %v1363
      %1365 = vmatmul.bf16.gmra.mxu0 %v367
      %v1366 = vpop.f32.mrf.mxu0
      %v1367 = vadd.f32 %v1106, %v1366
      %v1368 = vpop.f32.mrf.mxu0
      %v1369 = vadd.f32 %v1108, %v1368
      %1370 = vmatmul.bf16.gmra.mxu0 %v371
      %v1371 = vpop.f32.mrf.mxu0
      %v1372 = vadd.f32 %v1111, %v1371
      %v1373 = vpop.f32.mrf.mxu0
      %v1374 = vadd.f32 %v1113, %v1373
      %1375 = vmatmul.bf16.gmra.mxu0 %v375
      %v1376 = vpop.f32.mrf.mxu0
      %v1377 = vadd.f32 %v1116, %v1376
      %v1378 = vpop.f32.mrf.mxu0
      %v1379 = vadd.f32 %v1118, %v1378
      %1380 = vdwg.mxu0
      %1381 = vmatpush.bf16.msra.mxu0 %v1263
      %1382 = vmatpush.bf16.msra.mxu0 %v1262
      %1383 = vmatpush.bf16.msra.mxu0 %v1261
      %1384 = vmatpush.bf16.msra.mxu0 %v1260
      %1385 = vmatpush.bf16.msra.mxu0 %v1259
      %1386 = vmatpush.bf16.msra.mxu0 %v1258
      %1387 = vmatpush.bf16.msra.mxu0 %v1257
      %1388 = vmatpush.bf16.msra.mxu0 %v1256
      %1389 = vmatmul.bf16.gmra.mxu0 %v332
      %v1390 = vpop.f32.mrf.mxu0
      %v1391 = vadd.f32 %v1322, %v1390
      %v1392 = vpop.f32.mrf.mxu0
      %v1393 = vadd.f32 %v1324, %v1392
      %1394 = vmatmul.bf16.gmra.mxu0 %v336
      %v1395 = vpop.f32.mrf.mxu0
      %v1396 = vadd.f32 %v1327, %v1395
      %v1397 = vpop.f32.mrf.mxu0
      %v1398 = vadd.f32 %v1329, %v1397
      %1399 = vmatmul.bf16.gmra.mxu0 %v340
      %v1400 = vpop.f32.mrf.mxu0
      %v1401 = vadd.f32 %v1332, %v1400
      %v1402 = vpop.f32.mrf.mxu0
      %v1403 = vadd.f32 %v1334, %v1402
      %1404 = vmatmul.bf16.gmra.mxu0 %v344
      %v1405 = vpop.f32.mrf.mxu0
      %v1406 = vadd.f32 %v1337, %v1405
      %v1407 = vpop.f32.mrf.mxu0
      %v1408 = vadd.f32 %v1339, %v1407
      %1409 = vmatmul.bf16.gmra.mxu0 %v348
      %v1410 = vpop.f32.mrf.mxu0
      %v1411 = vadd.f32 %v1342, %v1410
      %v1412 = vpop.f32.mrf.mxu0
      %v1413 = vadd.f32 %v1344, %v1412
      %1414 = vmatmul.bf16.gmra.mxu0 %v352
      %v1415 = vpop.f32.mrf.mxu0
      %v1416 = vadd.f32 %v1347, %v1415
      %v1417 = vpop.f32.mrf.mxu0
      %v1418 = vadd.f32 %v1349, %v1417
      %1419 = vmatmul.bf16.gmra.mxu0 %v356
      %v1420 = vpop.f32.mrf.mxu0
      %v1421 = vadd.f32 %v1352, %v1420
      %v1422 = vpop.f32.mrf.mxu0
      %v1423 = vadd.f32 %v1354, %v1422
      %1424 = vmatmul.bf16.gmra.mxu0 %v360
      %v1425 = vpop.f32.mrf.mxu0
      %v1426 = vadd.f32 %v1357, %v1425
      %v1427 = vpop.f32.mrf.mxu0
      %v1428 = vadd.f32 %v1359, %v1427
      %1429 = vmatmul.bf16.gmra.mxu0 %v364
      %v1430 = vpop.f32.mrf.mxu0
      %v1431 = vadd.f32 %v1362, %v1430
      %v1432 = vpop.f32.mrf.mxu0
      %v1433 = vadd.f32 %v1364, %v1432
      %1434 = vmatmul.bf16.gmra.mxu0 %v368
      %v1435 = vpop.f32.mrf.mxu0
      %v1436 = vadd.f32 %v1367, %v1435
      %v1437 = vpop.f32.mrf.mxu0
      %v1438 = vadd.f32 %v1369, %v1437
      %1439 = vmatmul.bf16.gmra.mxu0 %v372
      %v1440 = vpop.f32.mrf.mxu0
      %v1441 = vadd.f32 %v1372, %v1440
      %v1442 = vpop.f32.mrf.mxu0
      %v1443 = vadd.f32 %v1374, %v1442
      %1444 = vmatmul.bf16.gmra.mxu0 %v376
      %v1445 = vpop.f32.mrf.mxu0
      %v1446 = vadd.f32 %v1377, %v1445
      %v1447 = vpop.f32.mrf.mxu0
      %v1448 = vadd.f32 %v1379, %v1447
      %1449 = vdwg.mxu0
      %1450 = vmatpush.bf16.msra.mxu0 %v1271
      %1451 = vmatpush.bf16.msra.mxu0 %v1270
      %1452 = vmatpush.bf16.msra.mxu0 %v1269
      %1453 = vmatpush.bf16.msra.mxu0 %v1268
      %1454 = vmatpush.bf16.msra.mxu0 %v1267
      %1455 = vmatpush.bf16.msra.mxu0 %v1266
      %1456 = vmatpush.bf16.msra.mxu0 %v1265
      %1457 = vmatpush.bf16.msra.mxu0 %v1264
      %1458 = vmatmul.bf16.gmra.mxu0 %v333
      %v1459 = vpop.f32.mrf.mxu0
      %v1460 = vadd.f32 %v1391, %v1459
      %v1461 = vpop.f32.mrf.mxu0
      %v1462 = vadd.f32 %v1393, %v1461
      %1463 = vmatmul.bf16.gmra.mxu0 %v337
      %v1464 = vpop.f32.mrf.mxu0
      %v1465 = vadd.f32 %v1396, %v1464
      %v1466 = vpop.f32.mrf.mxu0
      %v1467 = vadd.f32 %v1398, %v1466
      %1468 = vmatmul.bf16.gmra.mxu0 %v341
      %v1469 = vpop.f32.mrf.mxu0
      %v1470 = vadd.f32 %v1401, %v1469
      %v1471 = vpop.f32.mrf.mxu0
      %v1472 = vadd.f32 %v1403, %v1471
      %1473 = vmatmul.bf16.gmra.mxu0 %v345
      %v1474 = vpop.f32.mrf.mxu0
      %v1475 = vadd.f32 %v1406, %v1474
      %v1476 = vpop.f32.mrf.mxu0
      %v1477 = vadd.f32 %v1408, %v1476
      %1478 = vmatmul.bf16.gmra.mxu0 %v349
      %v1479 = vpop.f32.mrf.mxu0
      %v1480 = vadd.f32 %v1411, %v1479
      %v1481 = vpop.f32.mrf.mxu0
      %v1482 = vadd.f32 %v1413, %v1481
      %1483 = vmatmul.bf16.gmra.mxu0 %v353
      %v1484 = vpop.f32.mrf.mxu0
      %v1485 = vadd.f32 %v1416, %v1484
      %v1486 = vpop.f32.mrf.mxu0
      %v1487 = vadd.f32 %v1418, %v1486
      %1488 = vmatmul.bf16.gmra.mxu0 %v357
      %v1489 = vpop.f32.mrf.mxu0
      %v1490 = vadd.f32 %v1421, %v1489
      %v1491 = vpop.f32.mrf.mxu0
      %v1492 = vadd.f32 %v1423, %v1491
      %1493 = vmatmul.bf16.gmra.mxu0 %v361
      %v1494 = vpop.f32.mrf.mxu0
      %v1495 = vadd.f32 %v1426, %v1494
      %v1496 = vpop.f32.mrf.mxu0
      %v1497 = vadd.f32 %v1428, %v1496
      %1498 = vmatmul.bf16.gmra.mxu0 %v365
      %v1499 = vpop.f32.mrf.mxu0
      %v1500 = vadd.f32 %v1431, %v1499
      %v1501 = vpop.f32.mrf.mxu0
      %v1502 = vadd.f32 %v1433, %v1501
      %1503 = vmatmul.bf16.gmra.mxu0 %v369
      %v1504 = vpop.f32.mrf.mxu0
      %v1505 = vadd.f32 %v1436, %v1504
      %v1506 = vpop.f32.mrf.mxu0
      %v1507 = vadd.f32 %v1438, %v1506
      %1508 = vmatmul.bf16.gmra.mxu0 %v373
      %v1509 = vpop.f32.mrf.mxu0
      %v1510 = vadd.f32 %v1441, %v1509
      %v1511 = vpop.f32.mrf.mxu0
      %v1512 = vadd.f32 %v1443, %v1511
      %1513 = vmatmul.bf16.gmra.mxu0 %v377
      %v1514 = vpop.f32.mrf.mxu0
      %v1515 = vadd.f32 %v1446, %v1514
      %v1516 = vpop.f32.mrf.mxu0
      %v1517 = vadd.f32 %v1448, %v1516
      %1518 = vdwg.mxu0
      %1519 = vmatpush.bf16.msra.mxu0 %v1279
      %1520 = vmatpush.bf16.msra.mxu0 %v1278
      %1521 = vmatpush.bf16.msra.mxu0 %v1277
      %1522 = vmatpush.bf16.msra.mxu0 %v1276
      %1523 = vmatpush.bf16.msra.mxu0 %v1275
      %1524 = vmatpush.bf16.msra.mxu0 %v1274
      %1525 = vmatpush.bf16.msra.mxu0 %v1273
      %1526 = vmatpush.bf16.msra.mxu0 %v1272
      %1527 = vmatmul.bf16.gmra.mxu0 %v334
      %v1528 = vpop.f32.mrf.mxu0
      %v1529 = vadd.f32 %v1460, %v1528
      %v1530 = vpop.f32.mrf.mxu0
      %v1531 = vadd.f32 %v1462, %v1530
      %1532 = vmatmul.bf16.gmra.mxu0 %v338
      %v1533 = vpop.f32.mrf.mxu0
      %v1534 = vadd.f32 %v1465, %v1533
      %v1535 = vpop.f32.mrf.mxu0
      %v1536 = vadd.f32 %v1467, %v1535
      %1537 = vmatmul.bf16.gmra.mxu0 %v342
      %v1538 = vpop.f32.mrf.mxu0
      %v1539 = vadd.f32 %v1470, %v1538
      %v1540 = vpop.f32.mrf.mxu0
      %v1541 = vadd.f32 %v1472, %v1540
      %1542 = vmatmul.bf16.gmra.mxu0 %v346
      %v1543 = vpop.f32.mrf.mxu0
      %v1544 = vadd.f32 %v1475, %v1543
      %v1545 = vpop.f32.mrf.mxu0
      %v1546 = vadd.f32 %v1477, %v1545
      %1547 = vmatmul.bf16.gmra.mxu0 %v350
      %v1548 = vpop.f32.mrf.mxu0
      %v1549 = vadd.f32 %v1480, %v1548
      %v1550 = vpop.f32.mrf.mxu0
      %v1551 = vadd.f32 %v1482, %v1550
      %1552 = vmatmul.bf16.gmra.mxu0 %v354
      %v1553 = vpop.f32.mrf.mxu0
      %v1554 = vadd.f32 %v1485, %v1553
      %v1555 = vpop.f32.mrf.mxu0
      %v1556 = vadd.f32 %v1487, %v1555
      %1557 = vmatmul.bf16.gmra.mxu0 %v358
      %v1558 = vpop.f32.mrf.mxu0
      %v1559 = vadd.f32 %v1490, %v1558
      %v1560 = vpop.f32.mrf.mxu0
      %v1561 = vadd.f32 %v1492, %v1560
      %1562 = vmatmul.bf16.gmra.mxu0 %v362
      %v1563 = vpop.f32.mrf.mxu0
      %v1564 = vadd.f32 %v1495, %v1563
      %v1565 = vpop.f32.mrf.mxu0
      %v1566 = vadd.f32 %v1497, %v1565
      %1567 = vmatmul.bf16.gmra.mxu0 %v366
      %v1568 = vpop.f32.mrf.mxu0
      %v1569 = vadd.f32 %v1500, %v1568
      %v1570 = vpop.f32.mrf.mxu0
      %v1571 = vadd.f32 %v1502, %v1570
      %1572 = vmatmul.bf16.gmra.mxu0 %v370
      %v1573 = vpop.f32.mrf.mxu0
      %v1574 = vadd.f32 %v1505, %v1573
      %v1575 = vpop.f32.mrf.mxu0
      %v1576 = vadd.f32 %v1507, %v1575
      %1577 = vmatmul.bf16.gmra.mxu0 %v374
      %v1578 = vpop.f32.mrf.mxu0
      %v1579 = vadd.f32 %v1510, %v1578
      %v1580 = vpop.f32.mrf.mxu0
      %v1581 = vadd.f32 %v1512, %v1580
      %1582 = vmatmul.bf16.gmra.mxu0 %v378
      %v1583 = vpop.f32.mrf.mxu0
      %v1584 = vadd.f32 %v1515, %v1583
      %v1585 = vpop.f32.mrf.mxu0
      %v1586 = vadd.f32 %v1517, %v1585
      %1587 = vdwg.mxu0
      %v1588 = vld [vmem:[%s2] sm:$0x1]
      %v1590 = vperm.slane %v1588, 0
      %v1592 = vmul.f32 %v1529, %v1590
      %v1593 = vmul.f32 %v1531, %v1590
      %v1594 = vmul.f32 %v1534, %v1590
      %v1595 = vmul.f32 %v1536, %v1590
      %v1596 = vmul.f32 %v1539, %v1590
      %v1597 = vmul.f32 %v1541, %v1590
      %v1598 = vmul.f32 %v1544, %v1590
      %v1599 = vmul.f32 %v1546, %v1590
      %v1600 = vmul.f32 %v1549, %v1590
      %v1601 = vmul.f32 %v1551, %v1590
      %v1602 = vmul.f32 %v1554, %v1590
      %v1603 = vmul.f32 %v1556, %v1590
      %v1604 = vmul.f32 %v1559, %v1590
      %v1605 = vmul.f32 %v1561, %v1590
      %v1606 = vmul.f32 %v1564, %v1590
      %v1607 = vmul.f32 %v1566, %v1590
      %v1608 = vmul.f32 %v1569, %v1590
      %v1609 = vmul.f32 %v1571, %v1590
      %v1610 = vmul.f32 %v1574, %v1590
      %v1611 = vmul.f32 %v1576, %v1590
      %v1612 = vmul.f32 %v1579, %v1590
      %v1613 = vmul.f32 %v1581, %v1590
      %v1614 = vmul.f32 %v1584, %v1590
      %v1615 = vmul.f32 %v1586, %v1590
      %v1616 = vld [vmem:[%s3] sm:$0x1]
      %v1618 = vperm.slane %v1616, 0
      %v1620 = vadd.f32 %v1592, %v1618
      %v1621 = vadd.f32 %v1593, %v1618
      %v1622 = vadd.f32 %v1594, %v1618
      %v1623 = vadd.f32 %v1595, %v1618
      %v1624 = vadd.f32 %v1596, %v1618
      %v1625 = vadd.f32 %v1597, %v1618
      %v1626 = vadd.f32 %v1598, %v1618
      %v1627 = vadd.f32 %v1599, %v1618
      %v1628 = vadd.f32 %v1600, %v1618
      %v1629 = vadd.f32 %v1601, %v1618
      %v1630 = vadd.f32 %v1602, %v1618
      %v1631 = vadd.f32 %v1603, %v1618
      %v1632 = vadd.f32 %v1604, %v1618
      %v1633 = vadd.f32 %v1605, %v1618
      %v1634 = vadd.f32 %v1606, %v1618
      %v1635 = vadd.f32 %v1607, %v1618
      %v1636 = vadd.f32 %v1608, %v1618
      %v1637 = vadd.f32 %v1609, %v1618
      %v1638 = vadd.f32 %v1610, %v1618
      %v1639 = vadd.f32 %v1611, %v1618
      %v1640 = vadd.f32 %v1612, %v1618
      %v1641 = vadd.f32 %v1613, %v1618
      %v1642 = vadd.f32 %v1614, %v1618
      %v1643 = vadd.f32 %v1615, %v1618
      %v1644 = vmax.f32 %v1620, 0.0
      %v1645 = vmax.f32 %v1621, 0.0
      %v1646 = vmax.f32 %v1622, 0.0
      %v1647 = vmax.f32 %v1623, 0.0
      %v1648 = vmax.f32 %v1624, 0.0
      %v1649 = vmax.f32 %v1625, 0.0
      %v1650 = vmax.f32 %v1626, 0.0
      %v1651 = vmax.f32 %v1627, 0.0
      %v1652 = vmax.f32 %v1628, 0.0
      %v1653 = vmax.f32 %v1629, 0.0
      %v1654 = vmax.f32 %v1630, 0.0
      %v1655 = vmax.f32 %v1631, 0.0
      %v1656 = vmax.f32 %v1632, 0.0
      %v1657 = vmax.f32 %v1633, 0.0
      %v1658 = vmax.f32 %v1634, 0.0
      %v1659 = vmax.f32 %v1635, 0.0
      %v1660 = vmax.f32 %v1636, 0.0
      %v1661 = vmax.f32 %v1637, 0.0
      %v1662 = vmax.f32 %v1638, 0.0
      %v1663 = vmax.f32 %v1639, 0.0
      %v1664 = vmax.f32 %v1640, 0.0
      %v1665 = vmax.f32 %v1641, 0.0
      %v1666 = vmax.f32 %v1642, 0.0
      %v1667 = vmax.f32 %v1643, 0.0
      %v1668 = vpack.c.bf16 %v1644, %v1644
      %v1669 = vpack.c.bf16 %v1645, %v1645
      %v1670 = vpack.c.bf16 %v1646, %v1646
      %v1671 = vpack.c.bf16 %v1647, %v1647
      %v1672 = vpack.c.bf16 %v1648, %v1648
      %v1673 = vpack.c.bf16 %v1649, %v1649
      %v1674 = vpack.c.bf16 %v1650, %v1650
      %v1675 = vpack.c.bf16 %v1651, %v1651
      %v1676 = vpack.c.bf16 %v1652, %v1652
      %v1677 = vpack.c.bf16 %v1653, %v1653
      %v1678 = vpack.c.bf16 %v1654, %v1654
      %v1679 = vpack.c.bf16 %v1655, %v1655
      %v1680 = vpack.c.bf16 %v1656, %v1656
      %v1681 = vpack.c.bf16 %v1657, %v1657
      %v1682 = vpack.c.bf16 %v1658, %v1658
      %v1683 = vpack.c.bf16 %v1659, %v1659
      %v1684 = vpack.c.bf16 %v1660, %v1660
      %v1685 = vpack.c.bf16 %v1661, %v1661
      %v1686 = vpack.c.bf16 %v1662, %v1662
      %v1687 = vpack.c.bf16 %v1663, %v1663
      %v1688 = vpack.c.bf16 %v1664, %v1664
      %v1689 = vpack.c.bf16 %v1665, %v1665
      %v1690 = vpack.c.bf16 %v1666, %v1666
      %v1691 = vpack.c.bf16 %v1667, %v1667
      %1692 = vst [vmem:[%s233] sm:$0xf] %v1668
      %1693 = vst [vmem:[%s233 + $0x4] sm:$0xf] %v1669
      %1694 = vst [vmem:[%s233 + $0x8] sm:$0xf] %v1670
      %1695 = vst [vmem:[%s233 + $0xc] sm:$0xf] %v1671
      %1696 = vst [vmem:[%s233 + $0x10] sm:$0xf] %v1672
      %1697 = vst [vmem:[%s233 + $0x14] sm:$0xf] %v1673
      %1698 = vst [vmem:[%s233 + $0x18] sm:$0xf] %v1674
      %1699 = vst [vmem:[%s233 + $0x1c] sm:$0xf] %v1675
      %1700 = vst [vmem:[%s233 + $0x20] sm:$0xf] %v1676
      %1701 = vst [vmem:[%s233 + $0x24] sm:$0xf] %v1677
      %1702 = vst [vmem:[%s233 + $0x28] sm:$0xf] %v1678
      %1703 = vst [vmem:[%s233 + $0x2c] sm:$0xf] %v1679
      %1704 = vst [vmem:[%s233 + $0x30] sm:$0xf] %v1680
      %1705 = vst [vmem:[%s233 + $0x34] sm:$0xf] %v1681
      %1706 = vst [vmem:[%s233 + $0x38] sm:$0xf] %v1682
      %1707 = vst [vmem:[%s233 + $0x3c] sm:$0xf] %v1683
      %1708 = vst [vmem:[%s233 + $0x40] sm:$0xf] %v1684
      %1709 = vst [vmem:[%s233 + $0x44] sm:$0xf] %v1685
      %1710 = vst [vmem:[%s233 + $0x48] sm:$0xf] %v1686
      %1711 = vst [vmem:[%s233 + $0x4c] sm:$0xf] %v1687
      %1712 = vst [vmem:[%s233 + $0x50] sm:$0xf] %v1688
      %1713 = vst [vmem:[%s233 + $0x54] sm:$0xf] %v1689
      %1714 = vst [vmem:[%s233 + $0x58] sm:$0xf] %v1690
      %1715 = vst [vmem:[%s233 + $0x5c] sm:$0xf] %v1691
      %s1716 = smul.u32 24, %s20
      %p1717 = scmp.lt.s32.totalorder %s19, 3
      %s1718 = scalar_select %p1717, %s19, 3
      %p1719 = scmp.lt.s32.totalorder %s1716, 71
      %s1720 = scalar_select %p1719, %s1716, 71
      %s1721 = smul.addr %s1718, 72
      %s1722 = sadd.s32 %s1720, %s1721
      %s1723 = smul.addr %s1722, 4
      %s1724 = scalar_lea.vmem %s4, %s1723
      // Predicated region
      $region37: #{_lambda_.4} parent=35 // pred_check
        %p1725 = pneg %p138
      $region38: #{_lambda_.4} parent=35 // pred_check_branch
        %1727 = sbr.rel (%p1725) target = $region40
      $region39: #{_lambda_.4} parent=35 // pred_region
        %s1728 = smul.u32 24, %s20
      $region40: #{_lambda_.4} parent=35 // pred_fallthru
        _
    $region36: #{_lambda_.4} parent=5 // pred_fallthru
      _
    %p1729 = scmp.le.s32.totalorder 2, %s10
    // Predicated region
    $region41: #{_lambda_.4} parent=5 // pred_check
      %p1730 = pneg %p1729
    $region42: #{_lambda_.4} parent=5 // pred_check_branch
      %1732 = sbr.rel (%p1730) target = $region44
    $region43: #{_lambda_.4} parent=5 // pred_region
      %s1733 = ssub.s32 %s10, 2
      // Predicated region
      $region45: #{_lambda_.4} parent=43 // pred_check
        %p1734 = pneg %p144
      $region46: #{_lambda_.4} parent=43 // pred_check_branch
        %1736 = sbr.rel (%p1734) target = $region48
      $region47: #{_lambda_.4} parent=43 // pred_region
        %s1737 = smul.u32 24, %s22
        %p1738 = scmp.lt.s32.totalorder %s21, 3
        %s1739 = scalar_select %p1738, %s21, 3
        %p1740 = scmp.lt.s32.totalorder %s1737, 71
        %s1741 = scalar_select %p1740, %s1737, 71
        %s1742 = smul.addr %s1739, 72
        %s1743 = sadd.s32 %s1741, %s1742
        %s1744 = smul.addr %s1743, 4
        %s1745 = scalar_lea.vmem %s4, %s1744
      $region48: #{_lambda_.4} parent=43 // pred_fallthru
        _
    $region44: #{_lambda_.4} parent=5 // pred_fallthru
      _
  $region6: #{_lambda_.4} parent=0 // loop_footer
    %s14 = sadd.s32 1, %s10
  $region7: #{_lambda_.4} parent=0 // loop_footer_branch
    %9 = sbr.rel target = $region3
  $region8: #{_lambda_.4} parent=0 // loop_exit
    _

// kernel: _lambda_.5
$region0: #{_lambda_.5}
  #allocation0 [shape = 'u32[]', space=smem, size = 0x4, offset = 0x4, fixed_abs, tag = 'smem constant byte address 0x4 - core index']
  #allocation1 [shape = 'u32[72,128]{1,0:T(1,128)}', space=vmem, size = 0x9000, scoped, tag = 'internal scratch']
  %s0 = inlined_call_operand.vmem [shape: f32[4,3,240,384], index: 0, kind: input, shape index: {}]
  %s1 = inlined_call_operand.vmem [shape: bf16[3,384,128], index: 1, kind: input, shape index: {}]
  %s2 = inlined_call_operand.vmem [shape: f32[1,128], index: 2, kind: input, shape index: {}]
  %s3 = inlined_call_operand.vmem [shape: f32[1,128], index: 3, kind: input, shape index: {}]
  %s4 = inlined_call_operand.vmem [shape: bf16[4,576,128], index: 4, kind: output, shape index: {}]
  %s5 = sld [smem:[#allocation0]]
  $region49: #{_lambda_.5} parent=0
    _
  %s7 = ssub.s32 1, %s5
  %s8 = scalar_select 0, %s7, %s5
  loop: start=0, step=1, limit=14
  $region2: #{_lambda_.5} parent=0 // loop_pre_header
    _
  $region3: #{_lambda_.5} parent=0 // loop_header
    %s10 = sphi 0, %s14
    %p11 = scmp.ge.s32.totalorder %s10, 14
    %s17 = sphi 0, %s29
    %s18 = sphi 0, %s25
    %s19 = sphi 0, %s17
    %s20 = sphi 0, %s18
    %s21 = sphi 0, %s19
    %s22 = sphi 0, %s20
    %s34 = sphi 0, %s36
    %s37 = sphi 0, %s34
    %s38 = sphi 0, %s37
    %s54 = sphi 0, %s38
    %s58 = sphi 0, %s58
    %s60 = sphi 0, %s58
    %s61 = sphi 0, %s60
    %s75 = sphi 0, %s61
    %s79 = sphi 0, %s79
    %s81 = sphi 0, %s79
    %s82 = sphi 0, %s81
    %s96 = sphi 0, %s82
    %s100 = sphi 0, %s100
    %s102 = sphi 0, %s100
    %s103 = sphi 0, %s102
    %s117 = sphi 0, %s103
    %s125 = sphi 0, %s127
    %s128 = sphi 0, %s125
    %s129 = sphi 0, %s128
    %s145 = sphi 0, %s129
  $region4: #{_lambda_.5} parent=0 // loop_header_branch
    %13 = sbr.rel (%p11) target = $region8
  $region5: #{_lambda_.5} parent=0 // loop_body
    %s15 = ssub.s32 %s10, 1
    %s16 = ssub.s32 %s10, 2
    %s23 = sadd.s32 1, %s18
    %p24 = scmp.ge.s32.totalorder %s23, 3
    %s25 = scalar_select %p24, 0, %s23
    %s26 = sadd.s32 1, %s17
    %s27 = scalar_select %p24, %s26, %s17
    %p28 = scmp.ge.s32.totalorder %s27, 4
    %s29 = scalar_select %p28, 0, %s27
    %s30 = ssub.s32 %s17, %s29
    %s31 = ssub.s32 %s18, %s25
    %s32 = sor.u32 %s30, %s31
    %p33 = scmp.eq.s32.totalorder %s32, 0
    %s35 = sadd.s32 %s34, 1
    %s36 = scalar_select %p33, %s34, %s35
    %p39 = pneg %p33
    %p40 = scmp.eq.s32.totalorder %s10, 11
    %p41 = por %p39, %p40
    %p42 = scmp.ne.s32.totalorder %s34, %s37
    %p43 = scmp.eq.s32.totalorder %s10, 0
    %p44 = por %p42, %p43
    %p45 = scmp.ne.s32.totalorder %s34, %s37
    %p46 = scmp.eq.s32.totalorder %s15, 11
    %p47 = por %p45, %p46
    %p48 = scmp.ne.s32.totalorder %s37, %s38
    %p49 = scmp.eq.s32.totalorder %s15, 0
    %p50 = por %p48, %p49
    %p51 = scmp.ne.s32.totalorder %s37, %s38
    %p52 = scmp.eq.s32.totalorder %s16, 11
    %p53 = por %p51, %p52
    %p55 = scmp.ne.s32.totalorder %s38, %s54
    %p56 = scmp.eq.s32.totalorder %s16, 0
    %p57 = por %p55, %p56
    %s59 = sadd.s32 %s58, 1
    %p62 = scmp.eq.s32.totalorder %s10, 11
    %p63 = scmp.ne.s32.totalorder %s58, %s60
    %p64 = scmp.eq.s32.totalorder %s10, 0
    %p65 = por %p63, %p64
    %p66 = scmp.ne.s32.totalorder %s58, %s60
    %p67 = scmp.eq.s32.totalorder %s15, 11
    %p68 = por %p66, %p67
    %p69 = scmp.ne.s32.totalorder %s60, %s61
    %p70 = scmp.eq.s32.totalorder %s15, 0
    %p71 = por %p69, %p70
    %p72 = scmp.ne.s32.totalorder %s60, %s61
    %p73 = scmp.eq.s32.totalorder %s16, 11
    %p74 = por %p72, %p73
    %p76 = scmp.ne.s32.totalorder %s61, %s75
    %p77 = scmp.eq.s32.totalorder %s16, 0
    %p78 = por %p76, %p77
    %s80 = sadd.s32 %s79, 1
    %p83 = scmp.eq.s32.totalorder %s10, 11
    %p84 = scmp.ne.s32.totalorder %s79, %s81
    %p85 = scmp.eq.s32.totalorder %s10, 0
    %p86 = por %p84, %p85
    %p87 = scmp.ne.s32.totalorder %s79, %s81
    %p88 = scmp.eq.s32.totalorder %s15, 11
    %p89 = por %p87, %p88
    %p90 = scmp.ne.s32.totalorder %s81, %s82
    %p91 = scmp.eq.s32.totalorder %s15, 0
    %p92 = por %p90, %p91
    %p93 = scmp.ne.s32.totalorder %s81, %s82
    %p94 = scmp.eq.s32.totalorder %s16, 11
    %p95 = por %p93, %p94
    %p97 = scmp.ne.s32.totalorder %s82, %s96
    %p98 = scmp.eq.s32.totalorder %s16, 0
    %p99 = por %p97, %p98
    %s101 = sadd.s32 %s100, 1
    %p104 = scmp.eq.s32.totalorder %s10, 11
    %p105 = scmp.ne.s32.totalorder %s100, %s102
    %p106 = scmp.eq.s32.totalorder %s10, 0
    %p107 = por %p105, %p106
    %p108 = scmp.ne.s32.totalorder %s100, %s102
    %p109 = scmp.eq.s32.totalorder %s15, 11
    %p110 = por %p108, %p109
    %p111 = scmp.ne.s32.totalorder %s102, %s103
    %p112 = scmp.eq.s32.totalorder %s15, 0
    %p113 = por %p111, %p112
    %p114 = scmp.ne.s32.totalorder %s102, %s103
    %p115 = scmp.eq.s32.totalorder %s16, 11
    %p116 = por %p114, %p115
    %p118 = scmp.ne.s32.totalorder %s103, %s117
    %p119 = scmp.eq.s32.totalorder %s16, 0
    %p120 = por %p118, %p119
    %s121 = ssub.s32 %s17, %s29
    %s122 = ssub.s32 %s18, %s25
    %s123 = sor.u32 %s121, %s122
    %p124 = scmp.eq.s32.totalorder %s123, 0
    %s126 = sadd.s32 %s125, 1
    %s127 = scalar_select %p124, %s125, %s126
    %p130 = pneg %p124
    %p131 = scmp.eq.s32.totalorder %s10, 11
    %p132 = por %p130, %p131
    %p133 = scmp.ne.s32.totalorder %s125, %s128
    %p134 = scmp.eq.s32.totalorder %s10, 0
    %p135 = por %p133, %p134
    %p136 = scmp.ne.s32.totalorder %s125, %s128
    %p137 = scmp.eq.s32.totalorder %s15, 11
    %p138 = por %p136, %p137
    %p139 = scmp.ne.s32.totalorder %s128, %s129
    %p140 = scmp.eq.s32.totalorder %s15, 0
    %p141 = por %p139, %p140
    %p142 = scmp.ne.s32.totalorder %s128, %s129
    %p143 = scmp.eq.s32.totalorder %s16, 11
    %p144 = por %p142, %p143
    %p146 = scmp.ne.s32.totalorder %s129, %s145
    %p147 = scmp.eq.s32.totalorder %s16, 0
    %p148 = por %p146, %p147
    %p149 = scmp.le.s32.totalorder 1, %s10
    %p150 = scmp.lt.s32.totalorder %s10, 13
    %p151 = pnand %p149, %p150
    %p152 = pneg %p151
    // Predicated region
    $region9: #{_lambda_.5} parent=5 // pred_check
      _
    $region10: #{_lambda_.5} parent=5 // pred_check_branch
      %154 = sbr.rel (%p151) target = $region12
    $region11: #{_lambda_.5} parent=5 // pred_region
      %s155 = ssub.s32 %s10, 1
      // Predicated region
      $region13: #{_lambda_.5} parent=11 // pred_check
        %p156 = pneg %p71
      $region14: #{_lambda_.5} parent=11 // pred_check_branch
        %158 = sbr.rel (%p156) target = $region16
      $region15: #{_lambda_.5} parent=11 // pred_region
        _
      $region16: #{_lambda_.5} parent=11 // pred_fallthru
        _
      // Predicated region
      $region17: #{_lambda_.5} parent=11 // pred_check
        %p159 = pneg %p92
      $region18: #{_lambda_.5} parent=11 // pred_check_branch
        %161 = sbr.rel (%p159) target = $region20
      $region19: #{_lambda_.5} parent=11 // pred_region
        _
      $region20: #{_lambda_.5} parent=11 // pred_fallthru
        _
      // Predicated region
      $region21: #{_lambda_.5} parent=11 // pred_check
        %p162 = pneg %p113
      $region22: #{_lambda_.5} parent=11 // pred_check_branch
        %164 = sbr.rel (%p162) target = $region24
      $region23: #{_lambda_.5} parent=11 // pred_region
        _
      $region24: #{_lambda_.5} parent=11 // pred_fallthru
        _
    $region12: #{_lambda_.5} parent=5 // pred_fallthru
      _
    %p165 = scmp.lt.s32.totalorder %s10, 12
    // Predicated region
    $region25: #{_lambda_.5} parent=5 // pred_check
      %p166 = pneg %p165
    $region26: #{_lambda_.5} parent=5 // pred_check_branch
      %168 = sbr.rel (%p166) target = $region28
    $region27: #{_lambda_.5} parent=5 // pred_region
      // Predicated region
      $region29: #{_lambda_.5} parent=27 // pred_check
        %p169 = pneg %p44
      $region30: #{_lambda_.5} parent=27 // pred_check_branch
        %171 = sbr.rel (%p169) target = $region32
      $region31: #{_lambda_.5} parent=27 // pred_region
        %p172 = scmp.lt.s32.totalorder %s17, 3
        %s173 = scalar_select %p172, %s17, 3
        %p174 = scmp.lt.s32.totalorder %s18, 2
        %s175 = scalar_select %p174, %s18, 2
        %s176 = smul.addr %s175, 90
        %s177 = smul.addr %s173, 270
        %s178 = sadd.s32 %s176, %s177
        %s179 = smul.addr %s178, 8
        %s180 = scalar_lea.vmem %s0, %s179
      $region32: #{_lambda_.5} parent=27 // pred_fallthru
        _
    $region28: #{_lambda_.5} parent=5 // pred_fallthru
      _
    %p181 = scmp.le.s32.totalorder 1, %s10
    %p182 = scmp.lt.s32.totalorder %s10, 13
    %p183 = pnand %p181, %p182
    %p184 = pneg %p183
    // Predicated region
    $region33: #{_lambda_.5} parent=5 // pred_check
      _
    $region34: #{_lambda_.5} parent=5 // pred_check_branch
      %186 = sbr.rel (%p183) target = $region36
    $region35: #{_lambda_.5} parent=5 // pred_region
      %s187 = ssub.s32 %s10, 1
      %p188 = scmp.lt.s32.totalorder %s19, 3
      %s189 = scalar_select %p188, %s19, 3
      %p190 = scmp.lt.s32.totalorder %s20, 2
      %s191 = scalar_select %p190, %s20, 2
      %s192 = smul.addr %s191, 90
      %s193 = smul.addr %s189, 270
      %s194 = sadd.s32 %s192, %s193
      %s195 = smul.addr %s194, 8
      %s196 = scalar_lea.vmem %s0, %s195
      %p197 = pneg %p50
      %p198 = pneg %p47
      %p199 = pneg %p71
      %p200 = pneg %p68
      %p201 = pneg %p92
      %p202 = pneg %p89
      %p203 = pneg %p113
      %p204 = pneg %p110
      %p205 = pneg %p141
      %p206 = pneg %p138
      %s207 = smul.u32 24, %s20
      %p208 = scmp.lt.s32.totalorder %s19, 3
      %s209 = scalar_select %p208, %s19, 3
      %p210 = scmp.lt.s32.totalorder %s207, 71
      %s211 = scalar_select %p210, %s207, 71
      %s212 = smul.addr %s209, 72
      %s213 = sadd.s32 %s211, %s212
      %s214 = smul.addr %s213, 4
      %s215 = scalar_lea.vmem %s4, %s214
      %p216 = scmp.lt.s32.totalorder %s19, 3
      %s217 = scalar_select %p216, %s19, 3
      %p218 = scmp.lt.s32.totalorder %s20, 2
      %s219 = scalar_select %p218, %s20, 2
      %s220 = smul.addr %s219, 90
      %s221 = smul.addr %s217, 270
      %s222 = sadd.s32 %s220, %s221
      %s223 = smul.addr %s222, 8
      %s224 = scalar_lea.vmem %s0, %s223
      %s225 = smul.u32 24, %s20
      %p226 = scmp.lt.s32.totalorder %s19, 3
      %s227 = scalar_select %p226, %s19, 3
      %p228 = scmp.lt.s32.totalorder %s225, 71
      %s229 = scalar_select %p228, %s225, 71
      %s230 = smul.addr %s227, 72
      %s231 = sadd.s32 %s229, %s230
      %s232 = smul.addr %s231, 4
      %s233 = scalar_lea.vmem %s4, %s232
      %s234 = smul.u32 24, %s20
      %v235 = vld [vmem:[%s224] sm:$0xff]
      %v236 = vld [vmem:[%s224 + $0x8] sm:$0xff]
      %v237 = vld [vmem:[%s224 + $0x10] sm:$0xff]
      %v238 = vld [vmem:[%s224 + $0x18] sm:$0xff]
      %v239 = vld [vmem:[%s224 + $0x20] sm:$0xff]
      %v240 = vld [vmem:[%s224 + $0x28] sm:$0xff]
      %v241 = vld [vmem:[%s224 + $0x30] sm:$0xff]
      %v242 = vld [vmem:[%s224 + $0x38] sm:$0xff]
      %v243 = vld [vmem:[%s224 + $0x40] sm:$0xff]
      %v244 = vld [vmem:[%s224 + $0x48] sm:$0xff]
      %v245 = vld [vmem:[%s224 + $0x50] sm:$0xff]
      %v246 = vld [vmem:[%s224 + $0x58] sm:$0xff]
      %v247 = vld [vmem:[%s224 + $0x60] sm:$0xff]
      %v248 = vld [vmem:[%s224 + $0x68] sm:$0xff]
      %v249 = vld [vmem:[%s224 + $0x70] sm:$0xff]
      %v250 = vld [vmem:[%s224 + $0x78] sm:$0xff]
      %v251 = vld [vmem:[%s224 + $0x80] sm:$0xff]
      %v252 = vld [vmem:[%s224 + $0x88] sm:$0xff]
      %v253 = vld [vmem:[%s224 + $0x90] sm:$0xff]
      %v254 = vld [vmem:[%s224 + $0x98] sm:$0xff]
      %v255 = vld [vmem:[%s224 + $0xa0] sm:$0xff]
      %v256 = vld [vmem:[%s224 + $0xa8] sm:$0xff]
      %v257 = vld [vmem:[%s224 + $0xb0] sm:$0xff]
      %v258 = vld [vmem:[%s224 + $0xb8] sm:$0xff]
      %v259 = vld [vmem:[%s224 + $0xc0] sm:$0xff]
      %v260 = vld [vmem:[%s224 + $0xc8] sm:$0xff]
      %v261 = vld [vmem:[%s224 + $0xd0] sm:$0xff]
      %v262 = vld [vmem:[%s224 + $0xd8] sm:$0xff]
      %v263 = vld [vmem:[%s224 + $0xe0] sm:$0xff]
      %v264 = vld [vmem:[%s224 + $0xe8] sm:$0xff]
      %v265 = vld [vmem:[%s224 + $0xf0] sm:$0xff]
      %v266 = vld [vmem:[%s224 + $0xf8] sm:$0xff]
      %v267 = vld [vmem:[%s224 + $0x100] sm:$0xff]
      %v268 = vld [vmem:[%s224 + $0x108] sm:$0xff]
      %v269 = vld [vmem:[%s224 + $0x110] sm:$0xff]
      %v270 = vld [vmem:[%s224 + $0x118] sm:$0xff]
      %v271 = vld [vmem:[%s224 + $0x120] sm:$0xff]
      %v272 = vld [vmem:[%s224 + $0x128] sm:$0xff]
      %v273 = vld [vmem:[%s224 + $0x130] sm:$0xff]
      %v274 = vld [vmem:[%s224 + $0x138] sm:$0xff]
      %v275 = vld [vmem:[%s224 + $0x140] sm:$0xff]
      %v276 = vld [vmem:[%s224 + $0x148] sm:$0xff]
      %v277 = vld [vmem:[%s224 + $0x150] sm:$0xff]
      %v278 = vld [vmem:[%s224 + $0x158] sm:$0xff]
      %v279 = vld [vmem:[%s224 + $0x160] sm:$0xff]
      %v280 = vld [vmem:[%s224 + $0x168] sm:$0xff]
      %v281 = vld [vmem:[%s224 + $0x170] sm:$0xff]
      %v282 = vld [vmem:[%s224 + $0x178] sm:$0xff]
      %v283 = vld [vmem:[%s224 + $0x180] sm:$0xff]
      %v284 = vld [vmem:[%s224 + $0x188] sm:$0xff]
      %v285 = vld [vmem:[%s224 + $0x190] sm:$0xff]
      %v286 = vld [vmem:[%s224 + $0x198] sm:$0xff]
      %v287 = vld [vmem:[%s224 + $0x1a0] sm:$0xff]
      %v288 = vld [vmem:[%s224 + $0x1a8] sm:$0xff]
      %v289 = vld [vmem:[%s224 + $0x1b0] sm:$0xff]
      %v290 = vld [vmem:[%s224 + $0x1b8] sm:$0xff]
      %v291 = vld [vmem:[%s224 + $0x1c0] sm:$0xff]
      %v292 = vld [vmem:[%s224 + $0x1c8] sm:$0xff]
      %v293 = vld [vmem:[%s224 + $0x1d0] sm:$0xff]
      %v294 = vld [vmem:[%s224 + $0x1d8] sm:$0xff]
      %v295 = vld [vmem:[%s224 + $0x1e0] sm:$0xff]
      %v296 = vld [vmem:[%s224 + $0x1e8] sm:$0xff]
      %v297 = vld [vmem:[%s224 + $0x1f0] sm:$0xff]
      %v298 = vld [vmem:[%s224 + $0x1f8] sm:$0xff]
      %v299 = vld [vmem:[%s224 + $0x200] sm:$0xff]
      %v300 = vld [vmem:[%s224 + $0x208] sm:$0xff]
      %v301 = vld [vmem:[%s224 + $0x210] sm:$0xff]
      %v302 = vld [vmem:[%s224 + $0x218] sm:$0xff]
      %v303 = vld [vmem:[%s224 + $0x220] sm:$0xff]
      %v304 = vld [vmem:[%s224 + $0x228] sm:$0xff]
      %v305 = vld [vmem:[%s224 + $0x230] sm:$0xff]
      %v306 = vld [vmem:[%s224 + $0x238] sm:$0xff]
      %v307 = vpack.c.bf16 %v238, %v235
      %v308 = vpack.c.bf16 %v239, %v236
      %v309 = vpack.c.bf16 %v240, %v237
      %v310 = vpack.c.bf16 %v244, %v241
      %v311 = vpack.c.bf16 %v245, %v242
      %v312 = vpack.c.bf16 %v246, %v243
      %v313 = vpack.c.bf16 %v250, %v247
      %v314 = vpack.c.bf16 %v251, %v248
      %v315 = vpack.c.bf16 %v252, %v249
      %v316 = vpack.c.bf16 %v256, %v253
      %v317 = vpack.c.bf16 %v257, %v254
      %v318 = vpack.c.bf16 %v258, %v255
      %v319 = vpack.c.bf16 %v262, %v259
      %v320 = vpack.c.bf16 %v263, %v260
      %v321 = vpack.c.bf16 %v264, %v261
      %v322 = vpack.c.bf16 %v268, %v265
      %v323 = vpack.c.bf16 %v269, %v266
      %v324 = vpack.c.bf16 %v270, %v267
      %v325 = vpack.c.bf16 %v274, %v271
      %v326 = vpack.c.bf16 %v275, %v272
      %v327 = vpack.c.bf16 %v276, %v273
      %v328 = vpack.c.bf16 %v280, %v277
      %v329 = vpack.c.bf16 %v281, %v278
      %v330 = vpack.c.bf16 %v282, %v279
      %v331 = vpack.c.bf16 %v286, %v283
      %v332 = vpack.c.bf16 %v287, %v284
      %v333 = vpack.c.bf16 %v288, %v285
      %v334 = vpack.c.bf16 %v292, %v289
      %v335 = vpack.c.bf16 %v293, %v290
      %v336 = vpack.c.bf16 %v294, %v291
      %v337 = vpack.c.bf16 %v298, %v295
      %v338 = vpack.c.bf16 %v299, %v296
      %v339 = vpack.c.bf16 %v300, %v297
      %v340 = vpack.c.bf16 %v304, %v301
      %v341 = vpack.c.bf16 %v305, %v302
      %v342 = vpack.c.bf16 %v306, %v303
      %v343 = vld [vmem:[%s1] sm:$0xf]
      %v344 = vld [vmem:[%s1 + $0x4] sm:$0xf]
      %v345 = vld [vmem:[%s1 + $0x8] sm:$0xf]
      %v346 = vld [vmem:[%s1 + $0xc] sm:$0xf]
      %v347 = vld [vmem:[%s1 + $0x10] sm:$0xf]
      %v348 = vld [vmem:[%s1 + $0x14] sm:$0xf]
      %v349 = vld [vmem:[%s1 + $0x18] sm:$0xf]
      %v350 = vld [vmem:[%s1 + $0x1c] sm:$0xf]
      %v351 = vld [vmem:[%s1 + $0x20] sm:$0xf]
      %v352 = vld [vmem:[%s1 + $0x24] sm:$0xf]
      %v353 = vld [vmem:[%s1 + $0x28] sm:$0xf]
      %v354 = vld [vmem:[%s1 + $0x2c] sm:$0xf]
      %v355 = vld [vmem:[%s1 + $0x30] sm:$0xf]
      %v356 = vld [vmem:[%s1 + $0x34] sm:$0xf]
      %v357 = vld [vmem:[%s1 + $0x38] sm:$0xf]
      %v358 = vld [vmem:[%s1 + $0x3c] sm:$0xf]
      %v359 = vld [vmem:[%s1 + $0x40] sm:$0xf]
      %v360 = vld [vmem:[%s1 + $0x44] sm:$0xf]
      %v361 = vld [vmem:[%s1 + $0x48] sm:$0xf]
      %v362 = vld [vmem:[%s1 + $0x4c] sm:$0xf]
      %v363 = vld [vmem:[%s1 + $0x50] sm:$0xf]
      %v364 = vld [vmem:[%s1 + $0x54] sm:$0xf]
      %v365 = vld [vmem:[%s1 + $0x58] sm:$0xf]
      %v366 = vld [vmem:[%s1 + $0x5c] sm:$0xf]
      %v367 = vld [vmem:[%s1 + $0x60] sm:$0xf]
      %v368 = vld [vmem:[%s1 + $0x64] sm:$0xf]
      %v369 = vld [vmem:[%s1 + $0x68] sm:$0xf]
      %v370 = vld [vmem:[%s1 + $0x6c] sm:$0xf]
      %v371 = vld [vmem:[%s1 + $0x70] sm:$0xf]
      %v372 = vld [vmem:[%s1 + $0x74] sm:$0xf]
      %v373 = vld [vmem:[%s1 + $0x78] sm:$0xf]
      %v374 = vld [vmem:[%s1 + $0x7c] sm:$0xf]
      %v375 = vld [vmem:[%s1 + $0x80] sm:$0xf]
      %v376 = vld [vmem:[%s1 + $0x84] sm:$0xf]
      %v377 = vld [vmem:[%s1 + $0x88] sm:$0xf]
      %v378 = vld [vmem:[%s1 + $0x8c] sm:$0xf]
      %v379 = vld [vmem:[%s1 + $0x90] sm:$0xf]
      %v380 = vld [vmem:[%s1 + $0x94] sm:$0xf]
      %v381 = vld [vmem:[%s1 + $0x98] sm:$0xf]
      %v382 = vld [vmem:[%s1 + $0x9c] sm:$0xf]
      %v383 = vld [vmem:[%s1 + $0xa0] sm:$0xf]
      %v384 = vld [vmem:[%s1 + $0xa4] sm:$0xf]
      %v385 = vld [vmem:[%s1 + $0xa8] sm:$0xf]
      %v386 = vld [vmem:[%s1 + $0xac] sm:$0xf]
      %v387 = vld [vmem:[%s1 + $0xb0] sm:$0xf]
      %v388 = vld [vmem:[%s1 + $0xb4] sm:$0xf]
      %v389 = vld [vmem:[%s1 + $0xb8] sm:$0xf]
      %v390 = vld [vmem:[%s1 + $0xbc] sm:$0xf]
      %v391 = vld [vmem:[%s224 + $0x240] sm:$0xff]
      %v392 = vld [vmem:[%s224 + $0x248] sm:$0xff]
      %v393 = vld [vmem:[%s224 + $0x250] sm:$0xff]
      %v394 = vld [vmem:[%s224 + $0x258] sm:$0xff]
      %v395 = vld [vmem:[%s224 + $0x260] sm:$0xff]
      %v396 = vld [vmem:[%s224 + $0x268] sm:$0xff]
      %v397 = vld [vmem:[%s224 + $0x270] sm:$0xff]
      %v398 = vld [vmem:[%s224 + $0x278] sm:$0xff]
      %v399 = vld [vmem:[%s224 + $0x280] sm:$0xff]
      %v400 = vpack.c.bf16 %v247, %v244
      %v401 = vpack.c.bf16 %v248, %v245
      %v402 = vpack.c.bf16 %v249, %v246
      %v403 = vpack.c.bf16 %v253, %v250
      %v404 = vpack.c.bf16 %v254, %v251
      %v405 = vpack.c.bf16 %v255, %v252
      %v406 = vpack.c.bf16 %v259, %v256
      %v407 = vpack.c.bf16 %v260, %v257
      %v408 = vpack.c.bf16 %v261, %v258
      %v409 = vpack.c.bf16 %v265, %v262
      %v410 = vpack.c.bf16 %v266, %v263
      %v411 = vpack.c.bf16 %v267, %v264
      %v412 = vpack.c.bf16 %v271, %v268
      %v413 = vpack.c.bf16 %v272, %v269
      %v414 = vpack.c.bf16 %v273, %v270
      %v415 = vpack.c.bf16 %v277, %v274
      %v416 = vpack.c.bf16 %v278, %v275
      %v417 = vpack.c.bf16 %v279, %v276
      %v418 = vpack.c.bf16 %v283, %v280
      %v419 = vpack.c.bf16 %v284, %v281
      %v420 = vpack.c.bf16 %v285, %v282
      %v421 = vpack.c.bf16 %v289, %v286
      %v422 = vpack.c.bf16 %v290, %v287
      %v423 = vpack.c.bf16 %v291, %v288
      %v424 = vpack.c.bf16 %v295, %v292
      %v425 = vpack.c.bf16 %v296, %v293
      %v426 = vpack.c.bf16 %v297, %v294
      %v427 = vpack.c.bf16 %v301, %v298
      %v428 = vpack.c.bf16 %v302, %v299
      %v429 = vpack.c.bf16 %v303, %v300
      %v430 = vpack.c.bf16 %v391, %v304
      %v431 = vpack.c.bf16 %v392, %v305
      %v432 = vpack.c.bf16 %v393, %v306
      %v433 = vpack.c.bf16 %v397, %v394
      %v434 = vpack.c.bf16 %v398, %v395
      %v435 = vpack.c.bf16 %v399, %v396
      %s436 = scalar_lea.vmem %s1, 192
      %v437 = vld [vmem:[%s436] sm:$0xf]
      %v438 = vld [vmem:[%s436 + $0x4] sm:$0xf]
      %v439 = vld [vmem:[%s436 + $0x8] sm:$0xf]
      %v440 = vld [vmem:[%s436 + $0xc] sm:$0xf]
      %v441 = vld [vmem:[%s436 + $0x10] sm:$0xf]
      %v442 = vld [vmem:[%s436 + $0x14] sm:$0xf]
      %v443 = vld [vmem:[%s436 + $0x18] sm:$0xf]
      %v444 = vld [vmem:[%s436 + $0x1c] sm:$0xf]
      %v445 = vld [vmem:[%s436 + $0x20] sm:$0xf]
      %v446 = vld [vmem:[%s436 + $0x24] sm:$0xf]
      %v447 = vld [vmem:[%s436 + $0x28] sm:$0xf]
      %v448 = vld [vmem:[%s436 + $0x2c] sm:$0xf]
      %v449 = vld [vmem:[%s436 + $0x30] sm:$0xf]
      %v450 = vld [vmem:[%s436 + $0x34] sm:$0xf]
      %v451 = vld [vmem:[%s436 + $0x38] sm:$0xf]
      %v452 = vld [vmem:[%s436 + $0x3c] sm:$0xf]
      %v453 = vld [vmem:[%s436 + $0x40] sm:$0xf]
      %v454 = vld [vmem:[%s436 + $0x44] sm:$0xf]
      %v455 = vld [vmem:[%s436 + $0x48] sm:$0xf]
      %v456 = vld [vmem:[%s436 + $0x4c] sm:$0xf]
      %v457 = vld [vmem:[%s436 + $0x50] sm:$0xf]
      %v458 = vld [vmem:[%s436 + $0x54] sm:$0xf]
      %v459 = vld [vmem:[%s436 + $0x58] sm:$0xf]
      %v460 = vld [vmem:[%s436 + $0x5c] sm:$0xf]
      %v461 = vld [vmem:[%s436 + $0x60] sm:$0xf]
      %v462 = vld [vmem:[%s436 + $0x64] sm:$0xf]
      %v463 = vld [vmem:[%s436 + $0x68] sm:$0xf]
      %v464 = vld [vmem:[%s436 + $0x6c] sm:$0xf]
      %v465 = vld [vmem:[%s436 + $0x70] sm:$0xf]
      %v466 = vld [vmem:[%s436 + $0x74] sm:$0xf]
      %v467 = vld [vmem:[%s436 + $0x78] sm:$0xf]
      %v468 = vld [vmem:[%s436 + $0x7c] sm:$0xf]
      %v469 = vld [vmem:[%s436 + $0x80] sm:$0xf]
      %v470 = vld [vmem:[%s436 + $0x84] sm:$0xf]
      %v471 = vld [vmem:[%s436 + $0x88] sm:$0xf]
      %v472 = vld [vmem:[%s436 + $0x8c] sm:$0xf]
      %v473 = vld [vmem:[%s436 + $0x90] sm:$0xf]
      %v474 = vld [vmem:[%s436 + $0x94] sm:$0xf]
      %v475 = vld [vmem:[%s436 + $0x98] sm:$0xf]
      %v476 = vld [vmem:[%s436 + $0x9c] sm:$0xf]
      %v477 = vld [vmem:[%s436 + $0xa0] sm:$0xf]
      %v478 = vld [vmem:[%s436 + $0xa4] sm:$0xf]
      %v479 = vld [vmem:[%s436 + $0xa8] sm:$0xf]
      %v480 = vld [vmem:[%s436 + $0xac] sm:$0xf]
      %v481 = vld [vmem:[%s436 + $0xb0] sm:$0xf]
      %v482 = vld [vmem:[%s436 + $0xb4] sm:$0xf]
      %v483 = vld [vmem:[%s436 + $0xb8] sm:$0xf]
      %v484 = vld [vmem:[%s436 + $0xbc] sm:$0xf]
      %v533 = vunpack.c.l.b16 %v437
      %v534 = vunpack.c.l.b16 %v438
      %v535 = vunpack.c.l.b16 %v439
      %v536 = vunpack.c.l.b16 %v440
      %v537 = vunpack.c.l.b16 %v441
      %v538 = vunpack.c.l.b16 %v442
      %v539 = vunpack.c.l.b16 %v443
      %v540 = vunpack.c.l.b16 %v444
      %v541 = vunpack.c.l.b16 %v445
      %v542 = vunpack.c.l.b16 %v446
      %v543 = vunpack.c.l.b16 %v447
      %v544 = vunpack.c.l.b16 %v448
      %v545 = vunpack.c.l.b16 %v449
      %v546 = vunpack.c.l.b16 %v450
      %v547 = vunpack.c.l.b16 %v451
      %v548 = vunpack.c.l.b16 %v452
      %v549 = vunpack.c.l.b16 %v453
      %v550 = vunpack.c.l.b16 %v454
      %v551 = vunpack.c.l.b16 %v455
      %v552 = vunpack.c.l.b16 %v456
      %v553 = vunpack.c.l.b16 %v457
      %v554 = vunpack.c.l.b16 %v458
      %v555 = vunpack.c.l.b16 %v459
      %v556 = vunpack.c.l.b16 %v460
      %v557 = vunpack.c.l.b16 %v461
      %v558 = vunpack.c.l.b16 %v462
      %v559 = vunpack.c.l.b16 %v463
      %v560 = vunpack.c.l.b16 %v464
      %v561 = vunpack.c.l.b16 %v465
      %v562 = vunpack.c.l.b16 %v466
      %v563 = vunpack.c.l.b16 %v467
      %v564 = vunpack.c.l.b16 %v468
      %v565 = vunpack.c.l.b16 %v469
      %v566 = vunpack.c.l.b16 %v470
      %v567 = vunpack.c.l.b16 %v471
      %v568 = vunpack.c.l.b16 %v472
      %v569 = vunpack.c.l.b16 %v473
      %v570 = vunpack.c.l.b16 %v474
      %v571 = vunpack.c.l.b16 %v475
      %v572 = vunpack.c.l.b16 %v476
      %v573 = vunpack.c.l.b16 %v477
      %v574 = vunpack.c.l.b16 %v478
      %v575 = vunpack.c.l.b16 %v479
      %v576 = vunpack.c.l.b16 %v480
      %v577 = vunpack.c.l.b16 %v481
      %v578 = vunpack.c.l.b16 %v482
      %v579 = vunpack.c.l.b16 %v483
      %v580 = vunpack.c.l.b16 %v484
      %v581 = vpack.c.b16 %v534, %v533
      %v582 = vpack.c.b16 %v536, %v535
      %v583 = vpack.c.b16 %v538, %v537
      %v584 = vpack.c.b16 %v540, %v539
      %v585 = vpack.c.b16 %v542, %v541
      %v586 = vpack.c.b16 %v544, %v543
      %v587 = vpack.c.b16 %v546, %v545
      %v588 = vpack.c.b16 %v548, %v547
      %v589 = vpack.c.b16 %v550, %v549
      %v590 = vpack.c.b16 %v552, %v551
      %v591 = vpack.c.b16 %v554, %v553
      %v592 = vpack.c.b16 %v556, %v555
      %v593 = vpack.c.b16 %v558, %v557
      %v594 = vpack.c.b16 %v560, %v559
      %v595 = vpack.c.b16 %v562, %v561
      %v596 = vpack.c.b16 %v564, %v563
      %v597 = vpack.c.b16 %v566, %v565
      %v598 = vpack.c.b16 %v568, %v567
      %v599 = vpack.c.b16 %v570, %v569
      %v600 = vpack.c.b16 %v572, %v571
      %v601 = vpack.c.b16 %v574, %v573
      %v602 = vpack.c.b16 %v576, %v575
      %v603 = vpack.c.b16 %v578, %v577
      %v604 = vpack.c.b16 %v580, %v579
      %629 = vmatpush.bf16.msra.mxu0 %v588
      %630 = vmatpush.bf16.msra.mxu0 %v587
      %631 = vmatpush.bf16.msra.mxu0 %v586
      %632 = vmatpush.bf16.msra.mxu0 %v585
      %633 = vmatpush.bf16.msra.mxu0 %v584
      %634 = vmatpush.bf16.msra.mxu0 %v583
      %635 = vmatpush.bf16.msra.mxu0 %v582
      %636 = vmatpush.bf16.msra.mxu0 %v581
      %637 = vmatmul.bf16.gmra.mxu0 %v400
      %v638 = vpop.f32.mrf.mxu0
      %v639 = vadd.f32 0.0, %v638
      %v640 = vpop.f32.mrf.mxu0
      %v641 = vadd.f32 0.0, %v640
      %642 = vmatmul.bf16.gmra.mxu0 %v403
      %v643 = vpop.f32.mrf.mxu0
      %v644 = vadd.f32 0.0, %v643
      %v645 = vpop.f32.mrf.mxu0
      %v646 = vadd.f32 0.0, %v645
      %647 = vmatmul.bf16.gmra.mxu0 %v406
      %v648 = vpop.f32.mrf.mxu0
      %v649 = vadd.f32 0.0, %v648
      %v650 = vpop.f32.mrf.mxu0
      %v651 = vadd.f32 0.0, %v650
      %652 = vmatmul.bf16.gmra.mxu0 %v409
      %v653 = vpop.f32.mrf.mxu0
      %v654 = vadd.f32 0.0, %v653
      %v655 = vpop.f32.mrf.mxu0
      %v656 = vadd.f32 0.0, %v655
      %657 = vmatmul.bf16.gmra.mxu0 %v412
      %v658 = vpop.f32.mrf.mxu0
      %v659 = vadd.f32 0.0, %v658
      %v660 = vpop.f32.mrf.mxu0
      %v661 = vadd.f32 0.0, %v660
      %662 = vmatmul.bf16.gmra.mxu0 %v415
      %v663 = vpop.f32.mrf.mxu0
      %v664 = vadd.f32 0.0, %v663
      %v665 = vpop.f32.mrf.mxu0
      %v666 = vadd.f32 0.0, %v665
      %667 = vmatmul.bf16.gmra.mxu0 %v418
      %v668 = vpop.f32.mrf.mxu0
      %v669 = vadd.f32 0.0, %v668
      %v670 = vpop.f32.mrf.mxu0
      %v671 = vadd.f32 0.0, %v670
      %672 = vmatmul.bf16.gmra.mxu0 %v421
      %v673 = vpop.f32.mrf.mxu0
      %v674 = vadd.f32 0.0, %v673
      %v675 = vpop.f32.mrf.mxu0
      %v676 = vadd.f32 0.0, %v675
      %677 = vmatmul.bf16.gmra.mxu0 %v424
      %v678 = vpop.f32.mrf.mxu0
      %v679 = vadd.f32 0.0, %v678
      %v680 = vpop.f32.mrf.mxu0
      %v681 = vadd.f32 0.0, %v680
      %682 = vmatmul.bf16.gmra.mxu0 %v427
      %v683 = vpop.f32.mrf.mxu0
      %v684 = vadd.f32 0.0, %v683
      %v685 = vpop.f32.mrf.mxu0
      %v686 = vadd.f32 0.0, %v685
      %687 = vmatmul.bf16.gmra.mxu0 %v430
      %v688 = vpop.f32.mrf.mxu0
      %v689 = vadd.f32 0.0, %v688
      %v690 = vpop.f32.mrf.mxu0
      %v691 = vadd.f32 0.0, %v690
      %692 = vmatmul.bf16.gmra.mxu0 %v433
      %v693 = vpop.f32.mrf.mxu0
      %v694 = vadd.f32 0.0, %v693
      %v695 = vpop.f32.mrf.mxu0
      %v696 = vadd.f32 0.0, %v695
      %697 = vdwg.mxu0
      %698 = vmatpush.bf16.msra.mxu0 %v596
      %699 = vmatpush.bf16.msra.mxu0 %v595
      %700 = vmatpush.bf16.msra.mxu0 %v594
      %701 = vmatpush.bf16.msra.mxu0 %v593
      %702 = vmatpush.bf16.msra.mxu0 %v592
      %703 = vmatpush.bf16.msra.mxu0 %v591
      %704 = vmatpush.bf16.msra.mxu0 %v590
      %705 = vmatpush.bf16.msra.mxu0 %v589
      %706 = vmatmul.bf16.gmra.mxu0 %v401
      %v707 = vpop.f32.mrf.mxu0
      %v708 = vadd.f32 %v639, %v707
      %v709 = vpop.f32.mrf.mxu0
      %v710 = vadd.f32 %v641, %v709
      %711 = vmatmul.bf16.gmra.mxu0 %v404
      %v712 = vpop.f32.mrf.mxu0
      %v713 = vadd.f32 %v644, %v712
      %v714 = vpop.f32.mrf.mxu0
      %v715 = vadd.f32 %v646, %v714
      %716 = vmatmul.bf16.gmra.mxu0 %v407
      %v717 = vpop.f32.mrf.mxu0
      %v718 = vadd.f32 %v649, %v717
      %v719 = vpop.f32.mrf.mxu0
      %v720 = vadd.f32 %v651, %v719
      %721 = vmatmul.bf16.gmra.mxu0 %v410
      %v722 = vpop.f32.mrf.mxu0
      %v723 = vadd.f32 %v654, %v722
      %v724 = vpop.f32.mrf.mxu0
      %v725 = vadd.f32 %v656, %v724
      %726 = vmatmul.bf16.gmra.mxu0 %v413
      %v727 = vpop.f32.mrf.mxu0
      %v728 = vadd.f32 %v659, %v727
      %v729 = vpop.f32.mrf.mxu0
      %v730 = vadd.f32 %v661, %v729
      %731 = vmatmul.bf16.gmra.mxu0 %v416
      %v732 = vpop.f32.mrf.mxu0
      %v733 = vadd.f32 %v664, %v732
      %v734 = vpop.f32.mrf.mxu0
      %v735 = vadd.f32 %v666, %v734
      %736 = vmatmul.bf16.gmra.mxu0 %v419
      %v737 = vpop.f32.mrf.mxu0
      %v738 = vadd.f32 %v669, %v737
      %v739 = vpop.f32.mrf.mxu0
      %v740 = vadd.f32 %v671, %v739
      %741 = vmatmul.bf16.gmra.mxu0 %v422
      %v742 = vpop.f32.mrf.mxu0
      %v743 = vadd.f32 %v674, %v742
      %v744 = vpop.f32.mrf.mxu0
      %v745 = vadd.f32 %v676, %v744
      %746 = vmatmul.bf16.gmra.mxu0 %v425
      %v747 = vpop.f32.mrf.mxu0
      %v748 = vadd.f32 %v679, %v747
      %v749 = vpop.f32.mrf.mxu0
      %v750 = vadd.f32 %v681, %v749
      %751 = vmatmul.bf16.gmra.mxu0 %v428
      %v752 = vpop.f32.mrf.mxu0
      %v753 = vadd.f32 %v684, %v752
      %v754 = vpop.f32.mrf.mxu0
      %v755 = vadd.f32 %v686, %v754
      %756 = vmatmul.bf16.gmra.mxu0 %v431
      %v757 = vpop.f32.mrf.mxu0
      %v758 = vadd.f32 %v689, %v757
      %v759 = vpop.f32.mrf.mxu0
      %v760 = vadd.f32 %v691, %v759
      %761 = vmatmul.bf16.gmra.mxu0 %v434
      %v762 = vpop.f32.mrf.mxu0
      %v763 = vadd.f32 %v694, %v762
      %v764 = vpop.f32.mrf.mxu0
      %v765 = vadd.f32 %v696, %v764
      %766 = vdwg.mxu0
      %767 = vmatpush.bf16.msra.mxu0 %v604
      %768 = vmatpush.bf16.msra.mxu0 %v603
      %769 = vmatpush.bf16.msra.mxu0 %v602
      %770 = vmatpush.bf16.msra.mxu0 %v601
      %771 = vmatpush.bf16.msra.mxu0 %v600
      %772 = vmatpush.bf16.msra.mxu0 %v599
      %773 = vmatpush.bf16.msra.mxu0 %v598
      %774 = vmatpush.bf16.msra.mxu0 %v597
      %775 = vmatmul.bf16.gmra.mxu0 %v402
      %v776 = vpop.f32.mrf.mxu0
      %v777 = vadd.f32 %v708, %v776
      %v778 = vpop.f32.mrf.mxu0
      %v779 = vadd.f32 %v710, %v778
      %780 = vmatmul.bf16.gmra.mxu0 %v405
      %v781 = vpop.f32.mrf.mxu0
      %v782 = vadd.f32 %v713, %v781
      %v783 = vpop.f32.mrf.mxu0
      %v784 = vadd.f32 %v715, %v783
      %785 = vmatmul.bf16.gmra.mxu0 %v408
      %v786 = vpop.f32.mrf.mxu0
      %v787 = vadd.f32 %v718, %v786
      %v788 = vpop.f32.mrf.mxu0
      %v789 = vadd.f32 %v720, %v788
      %790 = vmatmul.bf16.gmra.mxu0 %v411
      %v791 = vpop.f32.mrf.mxu0
      %v792 = vadd.f32 %v723, %v791
      %v793 = vpop.f32.mrf.mxu0
      %v794 = vadd.f32 %v725, %v793
      %795 = vmatmul.bf16.gmra.mxu0 %v414
      %v796 = vpop.f32.mrf.mxu0
      %v797 = vadd.f32 %v728, %v796
      %v798 = vpop.f32.mrf.mxu0
      %v799 = vadd.f32 %v730, %v798
      %800 = vmatmul.bf16.gmra.mxu0 %v417
      %v801 = vpop.f32.mrf.mxu0
      %v802 = vadd.f32 %v733, %v801
      %v803 = vpop.f32.mrf.mxu0
      %v804 = vadd.f32 %v735, %v803
      %805 = vmatmul.bf16.gmra.mxu0 %v420
      %v806 = vpop.f32.mrf.mxu0
      %v807 = vadd.f32 %v738, %v806
      %v808 = vpop.f32.mrf.mxu0
      %v809 = vadd.f32 %v740, %v808
      %810 = vmatmul.bf16.gmra.mxu0 %v423
      %v811 = vpop.f32.mrf.mxu0
      %v812 = vadd.f32 %v743, %v811
      %v813 = vpop.f32.mrf.mxu0
      %v814 = vadd.f32 %v745, %v813
      %815 = vmatmul.bf16.gmra.mxu0 %v426
      %v816 = vpop.f32.mrf.mxu0
      %v817 = vadd.f32 %v748, %v816
      %v818 = vpop.f32.mrf.mxu0
      %v819 = vadd.f32 %v750, %v818
      %820 = vmatmul.bf16.gmra.mxu0 %v429
      %v821 = vpop.f32.mrf.mxu0
      %v822 = vadd.f32 %v753, %v821
      %v823 = vpop.f32.mrf.mxu0
      %v824 = vadd.f32 %v755, %v823
      %825 = vmatmul.bf16.gmra.mxu0 %v432
      %v826 = vpop.f32.mrf.mxu0
      %v827 = vadd.f32 %v758, %v826
      %v828 = vpop.f32.mrf.mxu0
      %v829 = vadd.f32 %v760, %v828
      %830 = vmatmul.bf16.gmra.mxu0 %v435
      %v831 = vpop.f32.mrf.mxu0
      %v832 = vadd.f32 %v763, %v831
      %v833 = vpop.f32.mrf.mxu0
      %v834 = vadd.f32 %v765, %v833
      %835 = vdwg.mxu0
      %v884 = vunpack.c.l.b16 %v343
      %v885 = vunpack.c.l.b16 %v344
      %v886 = vunpack.c.l.b16 %v345
      %v887 = vunpack.c.l.b16 %v346
      %v888 = vunpack.c.l.b16 %v347
      %v889 = vunpack.c.l.b16 %v348
      %v890 = vunpack.c.l.b16 %v349
      %v891 = vunpack.c.l.b16 %v350
      %v892 = vunpack.c.l.b16 %v351
      %v893 = vunpack.c.l.b16 %v352
      %v894 = vunpack.c.l.b16 %v353
      %v895 = vunpack.c.l.b16 %v354
      %v896 = vunpack.c.l.b16 %v355
      %v897 = vunpack.c.l.b16 %v356
      %v898 = vunpack.c.l.b16 %v357
      %v899 = vunpack.c.l.b16 %v358
      %v900 = vunpack.c.l.b16 %v359
      %v901 = vunpack.c.l.b16 %v360
      %v902 = vunpack.c.l.b16 %v361
      %v903 = vunpack.c.l.b16 %v362
      %v904 = vunpack.c.l.b16 %v363
      %v905 = vunpack.c.l.b16 %v364
      %v906 = vunpack.c.l.b16 %v365
      %v907 = vunpack.c.l.b16 %v366
      %v908 = vunpack.c.l.b16 %v367
      %v909 = vunpack.c.l.b16 %v368
      %v910 = vunpack.c.l.b16 %v369
      %v911 = vunpack.c.l.b16 %v370
      %v912 = vunpack.c.l.b16 %v371
      %v913 = vunpack.c.l.b16 %v372
      %v914 = vunpack.c.l.b16 %v373
      %v915 = vunpack.c.l.b16 %v374
      %v916 = vunpack.c.l.b16 %v375
      %v917 = vunpack.c.l.b16 %v376
      %v918 = vunpack.c.l.b16 %v377
      %v919 = vunpack.c.l.b16 %v378
      %v920 = vunpack.c.l.b16 %v379
      %v921 = vunpack.c.l.b16 %v380
      %v922 = vunpack.c.l.b16 %v381
      %v923 = vunpack.c.l.b16 %v382
      %v924 = vunpack.c.l.b16 %v383
      %v925 = vunpack.c.l.b16 %v384
      %v926 = vunpack.c.l.b16 %v385
      %v927 = vunpack.c.l.b16 %v386
      %v928 = vunpack.c.l.b16 %v387
      %v929 = vunpack.c.l.b16 %v388
      %v930 = vunpack.c.l.b16 %v389
      %v931 = vunpack.c.l.b16 %v390
      %v932 = vpack.c.b16 %v885, %v884
      %v933 = vpack.c.b16 %v887, %v886
      %v934 = vpack.c.b16 %v889, %v888
      %v935 = vpack.c.b16 %v891, %v890
      %v936 = vpack.c.b16 %v893, %v892
      %v937 = vpack.c.b16 %v895, %v894
      %v938 = vpack.c.b16 %v897, %v896
      %v939 = vpack.c.b16 %v899, %v898
      %v940 = vpack.c.b16 %v901, %v900
      %v941 = vpack.c.b16 %v903, %v902
      %v942 = vpack.c.b16 %v905, %v904
      %v943 = vpack.c.b16 %v907, %v906
      %v944 = vpack.c.b16 %v909, %v908
      %v945 = vpack.c.b16 %v911, %v910
      %v946 = vpack.c.b16 %v913, %v912
      %v947 = vpack.c.b16 %v915, %v914
      %v948 = vpack.c.b16 %v917, %v916
      %v949 = vpack.c.b16 %v919, %v918
      %v950 = vpack.c.b16 %v921, %v920
      %v951 = vpack.c.b16 %v923, %v922
      %v952 = vpack.c.b16 %v925, %v924
      %v953 = vpack.c.b16 %v927, %v926
      %v954 = vpack.c.b16 %v929, %v928
      %v955 = vpack.c.b16 %v931, %v930
      %980 = vmatpush.bf16.msra.mxu0 %v939
      %981 = vmatpush.bf16.msra.mxu0 %v938
      %982 = vmatpush.bf16.msra.mxu0 %v937
      %983 = vmatpush.bf16.msra.mxu0 %v936
      %984 = vmatpush.bf16.msra.mxu0 %v935
      %985 = vmatpush.bf16.msra.mxu0 %v934
      %986 = vmatpush.bf16.msra.mxu0 %v933
      %987 = vmatpush.bf16.msra.mxu0 %v932
      %988 = vmatmul.bf16.gmra.mxu0 %v307
      %v989 = vpop.f32.mrf.mxu0
      %v990 = vadd.f32 %v777, %v989
      %v991 = vpop.f32.mrf.mxu0
      %v992 = vadd.f32 %v779, %v991
      %993 = vmatmul.bf16.gmra.mxu0 %v310
      %v994 = vpop.f32.mrf.mxu0
      %v995 = vadd.f32 %v782, %v994
      %v996 = vpop.f32.mrf.mxu0
      %v997 = vadd.f32 %v784, %v996
      %998 = vmatmul.bf16.gmra.mxu0 %v313
      %v999 = vpop.f32.mrf.mxu0
      %v1000 = vadd.f32 %v787, %v999
      %v1001 = vpop.f32.mrf.mxu0
      %v1002 = vadd.f32 %v789, %v1001
      %1003 = vmatmul.bf16.gmra.mxu0 %v316
      %v1004 = vpop.f32.mrf.mxu0
      %v1005 = vadd.f32 %v792, %v1004
      %v1006 = vpop.f32.mrf.mxu0
      %v1007 = vadd.f32 %v794, %v1006
      %1008 = vmatmul.bf16.gmra.mxu0 %v319
      %v1009 = vpop.f32.mrf.mxu0
      %v1010 = vadd.f32 %v797, %v1009
      %v1011 = vpop.f32.mrf.mxu0
      %v1012 = vadd.f32 %v799, %v1011
      %1013 = vmatmul.bf16.gmra.mxu0 %v322
      %v1014 = vpop.f32.mrf.mxu0
      %v1015 = vadd.f32 %v802, %v1014
      %v1016 = vpop.f32.mrf.mxu0
      %v1017 = vadd.f32 %v804, %v1016
      %1018 = vmatmul.bf16.gmra.mxu0 %v325
      %v1019 = vpop.f32.mrf.mxu0
      %v1020 = vadd.f32 %v807, %v1019
      %v1021 = vpop.f32.mrf.mxu0
      %v1022 = vadd.f32 %v809, %v1021
      %1023 = vmatmul.bf16.gmra.mxu0 %v328
      %v1024 = vpop.f32.mrf.mxu0
      %v1025 = vadd.f32 %v812, %v1024
      %v1026 = vpop.f32.mrf.mxu0
      %v1027 = vadd.f32 %v814, %v1026
      %1028 = vmatmul.bf16.gmra.mxu0 %v331
      %v1029 = vpop.f32.mrf.mxu0
      %v1030 = vadd.f32 %v817, %v1029
      %v1031 = vpop.f32.mrf.mxu0
      %v1032 = vadd.f32 %v819, %v1031
      %1033 = vmatmul.bf16.gmra.mxu0 %v334
      %v1034 = vpop.f32.mrf.mxu0
      %v1035 = vadd.f32 %v822, %v1034
      %v1036 = vpop.f32.mrf.mxu0
      %v1037 = vadd.f32 %v824, %v1036
      %1038 = vmatmul.bf16.gmra.mxu0 %v337
      %v1039 = vpop.f32.mrf.mxu0
      %v1040 = vadd.f32 %v827, %v1039
      %v1041 = vpop.f32.mrf.mxu0
      %v1042 = vadd.f32 %v829, %v1041
      %1043 = vmatmul.bf16.gmra.mxu0 %v340
      %v1044 = vpop.f32.mrf.mxu0
      %v1045 = vadd.f32 %v832, %v1044
      %v1046 = vpop.f32.mrf.mxu0
      %v1047 = vadd.f32 %v834, %v1046
      %1048 = vdwg.mxu0
      %1049 = vmatpush.bf16.msra.mxu0 %v947
      %1050 = vmatpush.bf16.msra.mxu0 %v946
      %1051 = vmatpush.bf16.msra.mxu0 %v945
      %1052 = vmatpush.bf16.msra.mxu0 %v944
      %1053 = vmatpush.bf16.msra.mxu0 %v943
      %1054 = vmatpush.bf16.msra.mxu0 %v942
      %1055 = vmatpush.bf16.msra.mxu0 %v941
      %1056 = vmatpush.bf16.msra.mxu0 %v940
      %1057 = vmatmul.bf16.gmra.mxu0 %v308
      %v1058 = vpop.f32.mrf.mxu0
      %v1059 = vadd.f32 %v990, %v1058
      %v1060 = vpop.f32.mrf.mxu0
      %v1061 = vadd.f32 %v992, %v1060
      %1062 = vmatmul.bf16.gmra.mxu0 %v311
      %v1063 = vpop.f32.mrf.mxu0
      %v1064 = vadd.f32 %v995, %v1063
      %v1065 = vpop.f32.mrf.mxu0
      %v1066 = vadd.f32 %v997, %v1065
      %1067 = vmatmul.bf16.gmra.mxu0 %v314
      %v1068 = vpop.f32.mrf.mxu0
      %v1069 = vadd.f32 %v1000, %v1068
      %v1070 = vpop.f32.mrf.mxu0
      %v1071 = vadd.f32 %v1002, %v1070
      %1072 = vmatmul.bf16.gmra.mxu0 %v317
      %v1073 = vpop.f32.mrf.mxu0
      %v1074 = vadd.f32 %v1005, %v1073
      %v1075 = vpop.f32.mrf.mxu0
      %v1076 = vadd.f32 %v1007, %v1075
      %1077 = vmatmul.bf16.gmra.mxu0 %v320
      %v1078 = vpop.f32.mrf.mxu0
      %v1079 = vadd.f32 %v1010, %v1078
      %v1080 = vpop.f32.mrf.mxu0
      %v1081 = vadd.f32 %v1012, %v1080
      %1082 = vmatmul.bf16.gmra.mxu0 %v323
      %v1083 = vpop.f32.mrf.mxu0
      %v1084 = vadd.f32 %v1015, %v1083
      %v1085 = vpop.f32.mrf.mxu0
      %v1086 = vadd.f32 %v1017, %v1085
      %1087 = vmatmul.bf16.gmra.mxu0 %v326
      %v1088 = vpop.f32.mrf.mxu0
      %v1089 = vadd.f32 %v1020, %v1088
      %v1090 = vpop.f32.mrf.mxu0
      %v1091 = vadd.f32 %v1022, %v1090
      %1092 = vmatmul.bf16.gmra.mxu0 %v329
      %v1093 = vpop.f32.mrf.mxu0
      %v1094 = vadd.f32 %v1025, %v1093
      %v1095 = vpop.f32.mrf.mxu0
      %v1096 = vadd.f32 %v1027, %v1095
      %1097 = vmatmul.bf16.gmra.mxu0 %v332
      %v1098 = vpop.f32.mrf.mxu0
      %v1099 = vadd.f32 %v1030, %v1098
      %v1100 = vpop.f32.mrf.mxu0
      %v1101 = vadd.f32 %v1032, %v1100
      %1102 = vmatmul.bf16.gmra.mxu0 %v335
      %v1103 = vpop.f32.mrf.mxu0
      %v1104 = vadd.f32 %v1035, %v1103
      %v1105 = vpop.f32.mrf.mxu0
      %v1106 = vadd.f32 %v1037, %v1105
      %1107 = vmatmul.bf16.gmra.mxu0 %v338
      %v1108 = vpop.f32.mrf.mxu0
      %v1109 = vadd.f32 %v1040, %v1108
      %v1110 = vpop.f32.mrf.mxu0
      %v1111 = vadd.f32 %v1042, %v1110
      %1112 = vmatmul.bf16.gmra.mxu0 %v341
      %v1113 = vpop.f32.mrf.mxu0
      %v1114 = vadd.f32 %v1045, %v1113
      %v1115 = vpop.f32.mrf.mxu0
      %v1116 = vadd.f32 %v1047, %v1115
      %1117 = vdwg.mxu0
      %1118 = vmatpush.bf16.msra.mxu0 %v955
      %1119 = vmatpush.bf16.msra.mxu0 %v954
      %1120 = vmatpush.bf16.msra.mxu0 %v953
      %1121 = vmatpush.bf16.msra.mxu0 %v952
      %1122 = vmatpush.bf16.msra.mxu0 %v951
      %1123 = vmatpush.bf16.msra.mxu0 %v950
      %1124 = vmatpush.bf16.msra.mxu0 %v949
      %1125 = vmatpush.bf16.msra.mxu0 %v948
      %1126 = vmatmul.bf16.gmra.mxu0 %v309
      %v1127 = vpop.f32.mrf.mxu0
      %v1128 = vadd.f32 %v1059, %v1127
      %v1129 = vpop.f32.mrf.mxu0
      %v1130 = vadd.f32 %v1061, %v1129
      %1131 = vmatmul.bf16.gmra.mxu0 %v312
      %v1132 = vpop.f32.mrf.mxu0
      %v1133 = vadd.f32 %v1064, %v1132
      %v1134 = vpop.f32.mrf.mxu0
      %v1135 = vadd.f32 %v1066, %v1134
      %1136 = vmatmul.bf16.gmra.mxu0 %v315
      %v1137 = vpop.f32.mrf.mxu0
      %v1138 = vadd.f32 %v1069, %v1137
      %v1139 = vpop.f32.mrf.mxu0
      %v1140 = vadd.f32 %v1071, %v1139
      %1141 = vmatmul.bf16.gmra.mxu0 %v318
      %v1142 = vpop.f32.mrf.mxu0
      %v1143 = vadd.f32 %v1074, %v1142
      %v1144 = vpop.f32.mrf.mxu0
      %v1145 = vadd.f32 %v1076, %v1144
      %1146 = vmatmul.bf16.gmra.mxu0 %v321
      %v1147 = vpop.f32.mrf.mxu0
      %v1148 = vadd.f32 %v1079, %v1147
      %v1149 = vpop.f32.mrf.mxu0
      %v1150 = vadd.f32 %v1081, %v1149
      %1151 = vmatmul.bf16.gmra.mxu0 %v324
      %v1152 = vpop.f32.mrf.mxu0
      %v1153 = vadd.f32 %v1084, %v1152
      %v1154 = vpop.f32.mrf.mxu0
      %v1155 = vadd.f32 %v1086, %v1154
      %1156 = vmatmul.bf16.gmra.mxu0 %v327
      %v1157 = vpop.f32.mrf.mxu0
      %v1158 = vadd.f32 %v1089, %v1157
      %v1159 = vpop.f32.mrf.mxu0
      %v1160 = vadd.f32 %v1091, %v1159
      %1161 = vmatmul.bf16.gmra.mxu0 %v330
      %v1162 = vpop.f32.mrf.mxu0
      %v1163 = vadd.f32 %v1094, %v1162
      %v1164 = vpop.f32.mrf.mxu0
      %v1165 = vadd.f32 %v1096, %v1164
      %1166 = vmatmul.bf16.gmra.mxu0 %v333
      %v1167 = vpop.f32.mrf.mxu0
      %v1168 = vadd.f32 %v1099, %v1167
      %v1169 = vpop.f32.mrf.mxu0
      %v1170 = vadd.f32 %v1101, %v1169
      %1171 = vmatmul.bf16.gmra.mxu0 %v336
      %v1172 = vpop.f32.mrf.mxu0
      %v1173 = vadd.f32 %v1104, %v1172
      %v1174 = vpop.f32.mrf.mxu0
      %v1175 = vadd.f32 %v1106, %v1174
      %1176 = vmatmul.bf16.gmra.mxu0 %v339
      %v1177 = vpop.f32.mrf.mxu0
      %v1178 = vadd.f32 %v1109, %v1177
      %v1179 = vpop.f32.mrf.mxu0
      %v1180 = vadd.f32 %v1111, %v1179
      %1181 = vmatmul.bf16.gmra.mxu0 %v342
      %v1182 = vpop.f32.mrf.mxu0
      %v1183 = vadd.f32 %v1114, %v1182
      %v1184 = vpop.f32.mrf.mxu0
      %v1185 = vadd.f32 %v1116, %v1184
      %1186 = vdwg.mxu0
      %v1187 = vld [vmem:[%s224 + $0x90] sm:$0xff]
      %v1188 = vld [vmem:[%s224 + $0x98] sm:$0xff]
      %v1189 = vld [vmem:[%s224 + $0xa0] sm:$0xff]
      %v1190 = vld [vmem:[%s224 + $0xa8] sm:$0xff]
      %v1191 = vld [vmem:[%s224 + $0xb0] sm:$0xff]
      %v1192 = vld [vmem:[%s224 + $0xb8] sm:$0xff]
      %v1193 = vld [vmem:[%s224 + $0xc0] sm:$0xff]
      %v1194 = vld [vmem:[%s224 + $0xc8] sm:$0xff]
      %v1195 = vld [vmem:[%s224 + $0xd0] sm:$0xff]
      %v1196 = vld [vmem:[%s224 + $0xd8] sm:$0xff]
      %v1197 = vld [vmem:[%s224 + $0xe0] sm:$0xff]
      %v1198 = vld [vmem:[%s224 + $0xe8] sm:$0xff]
      %v1199 = vld [vmem:[%s224 + $0xf0] sm:$0xff]
      %v1200 = vld [vmem:[%s224 + $0xf8] sm:$0xff]
      %v1201 = vld [vmem:[%s224 + $0x100] sm:$0xff]
      %v1202 = vld [vmem:[%s224 + $0x108] sm:$0xff]
      %v1203 = vld [vmem:[%s224 + $0x110] sm:$0xff]
      %v1204 = vld [vmem:[%s224 + $0x118] sm:$0xff]
      %v1205 = vld [vmem:[%s224 + $0x120] sm:$0xff]
      %v1206 = vld [vmem:[%s224 + $0x128] sm:$0xff]
      %v1207 = vld [vmem:[%s224 + $0x130] sm:$0xff]
      %v1208 = vld [vmem:[%s224 + $0x138] sm:$0xff]
      %v1209 = vld [vmem:[%s224 + $0x140] sm:$0xff]
      %v1210 = vld [vmem:[%s224 + $0x148] sm:$0xff]
      %v1211 = vld [vmem:[%s224 + $0x150] sm:$0xff]
      %v1212 = vld [vmem:[%s224 + $0x158] sm:$0xff]
      %v1213 = vld [vmem:[%s224 + $0x160] sm:$0xff]
      %v1214 = vld [vmem:[%s224 + $0x168] sm:$0xff]
      %v1215 = vld [vmem:[%s224 + $0x170] sm:$0xff]
      %v1216 = vld [vmem:[%s224 + $0x178] sm:$0xff]
      %v1217 = vld [vmem:[%s224 + $0x180] sm:$0xff]
      %v1218 = vld [vmem:[%s224 + $0x188] sm:$0xff]
      %v1219 = vld [vmem:[%s224 + $0x190] sm:$0xff]
      %v1220 = vld [vmem:[%s224 + $0x198] sm:$0xff]
      %v1221 = vld [vmem:[%s224 + $0x1a0] sm:$0xff]
      %v1222 = vld [vmem:[%s224 + $0x1a8] sm:$0xff]
      %v1223 = vld [vmem:[%s224 + $0x1b0] sm:$0xff]
      %v1224 = vld [vmem:[%s224 + $0x1b8] sm:$0xff]
      %v1225 = vld [vmem:[%s224 + $0x1c0] sm:$0xff]
      %v1226 = vld [vmem:[%s224 + $0x1c8] sm:$0xff]
      %v1227 = vld [vmem:[%s224 + $0x1d0] sm:$0xff]
      %v1228 = vld [vmem:[%s224 + $0x1d8] sm:$0xff]
      %v1229 = vld [vmem:[%s224 + $0x1e0] sm:$0xff]
      %v1230 = vld [vmem:[%s224 + $0x1e8] sm:$0xff]
      %v1231 = vld [vmem:[%s224 + $0x1f0] sm:$0xff]
      %v1232 = vld [vmem:[%s224 + $0x1f8] sm:$0xff]
      %v1233 = vld [vmem:[%s224 + $0x200] sm:$0xff]
      %v1234 = vld [vmem:[%s224 + $0x208] sm:$0xff]
      %v1235 = vld [vmem:[%s224 + $0x210] sm:$0xff]
      %v1236 = vld [vmem:[%s224 + $0x218] sm:$0xff]
      %v1237 = vld [vmem:[%s224 + $0x220] sm:$0xff]
      %v1238 = vld [vmem:[%s224 + $0x228] sm:$0xff]
      %v1239 = vld [vmem:[%s224 + $0x230] sm:$0xff]
      %v1240 = vld [vmem:[%s224 + $0x238] sm:$0xff]
      %v1241 = vld [vmem:[%s224 + $0x240] sm:$0xff]
      %v1242 = vld [vmem:[%s224 + $0x248] sm:$0xff]
      %v1243 = vld [vmem:[%s224 + $0x250] sm:$0xff]
      %v1244 = vld [vmem:[%s224 + $0x258] sm:$0xff]
      %v1245 = vld [vmem:[%s224 + $0x260] sm:$0xff]
      %v1246 = vld [vmem:[%s224 + $0x268] sm:$0xff]
      %v1247 = vld [vmem:[%s224 + $0x270] sm:$0xff]
      %v1248 = vld [vmem:[%s224 + $0x278] sm:$0xff]
      %v1249 = vld [vmem:[%s224 + $0x280] sm:$0xff]
      %v1250 = vld [vmem:[%s224 + $0x288] sm:$0xff]
      %v1251 = vld [vmem:[%s224 + $0x290] sm:$0xff]
      %v1252 = vld [vmem:[%s224 + $0x298] sm:$0xff]
      %v1253 = vld [vmem:[%s224 + $0x2a0] sm:$0xff]
      %v1254 = vld [vmem:[%s224 + $0x2a8] sm:$0xff]
      %v1255 = vld [vmem:[%s224 + $0x2b0] sm:$0xff]
      %v1256 = vld [vmem:[%s224 + $0x2b8] sm:$0xff]
      %v1257 = vld [vmem:[%s224 + $0x2c0] sm:$0xff]
      %v1258 = vld [vmem:[%s224 + $0x2c8] sm:$0xff]
      %v1259 = vpack.c.bf16 %v1190, %v1187
      %v1260 = vpack.c.bf16 %v1191, %v1188
      %v1261 = vpack.c.bf16 %v1192, %v1189
      %v1262 = vpack.c.bf16 %v1196, %v1193
      %v1263 = vpack.c.bf16 %v1197, %v1194
      %v1264 = vpack.c.bf16 %v1198, %v1195
      %v1265 = vpack.c.bf16 %v1202, %v1199
      %v1266 = vpack.c.bf16 %v1203, %v1200
      %v1267 = vpack.c.bf16 %v1204, %v1201
      %v1268 = vpack.c.bf16 %v1208, %v1205
      %v1269 = vpack.c.bf16 %v1209, %v1206
      %v1270 = vpack.c.bf16 %v1210, %v1207
      %v1271 = vpack.c.bf16 %v1214, %v1211
      %v1272 = vpack.c.bf16 %v1215, %v1212
      %v1273 = vpack.c.bf16 %v1216, %v1213
      %v1274 = vpack.c.bf16 %v1220, %v1217
      %v1275 = vpack.c.bf16 %v1221, %v1218
      %v1276 = vpack.c.bf16 %v1222, %v1219
      %v1277 = vpack.c.bf16 %v1226, %v1223
      %v1278 = vpack.c.bf16 %v1227, %v1224
      %v1279 = vpack.c.bf16 %v1228, %v1225
      %v1280 = vpack.c.bf16 %v1232, %v1229
      %v1281 = vpack.c.bf16 %v1233, %v1230
      %v1282 = vpack.c.bf16 %v1234, %v1231
      %v1283 = vpack.c.bf16 %v1238, %v1235
      %v1284 = vpack.c.bf16 %v1239, %v1236
      %v1285 = vpack.c.bf16 %v1240, %v1237
      %v1286 = vpack.c.bf16 %v1244, %v1241
      %v1287 = vpack.c.bf16 %v1245, %v1242
      %v1288 = vpack.c.bf16 %v1246, %v1243
      %v1289 = vpack.c.bf16 %v1250, %v1247
      %v1290 = vpack.c.bf16 %v1251, %v1248
      %v1291 = vpack.c.bf16 %v1252, %v1249
      %v1292 = vpack.c.bf16 %v1256, %v1253
      %v1293 = vpack.c.bf16 %v1257, %v1254
      %v1294 = vpack.c.bf16 %v1258, %v1255
      %s1295 = scalar_lea.vmem %s1, 384
      %v1296 = vld [vmem:[%s1295] sm:$0xf]
      %v1297 = vld [vmem:[%s1295 + $0x4] sm:$0xf]
      %v1298 = vld [vmem:[%s1295 + $0x8] sm:$0xf]
      %v1299 = vld [vmem:[%s1295 + $0xc] sm:$0xf]
      %v1300 = vld [vmem:[%s1295 + $0x10] sm:$0xf]
      %v1301 = vld [vmem:[%s1295 + $0x14] sm:$0xf]
      %v1302 = vld [vmem:[%s1295 + $0x18] sm:$0xf]
      %v1303 = vld [vmem:[%s1295 + $0x1c] sm:$0xf]
      %v1304 = vld [vmem:[%s1295 + $0x20] sm:$0xf]
      %v1305 = vld [vmem:[%s1295 + $0x24] sm:$0xf]
      %v1306 = vld [vmem:[%s1295 + $0x28] sm:$0xf]
      %v1307 = vld [vmem:[%s1295 + $0x2c] sm:$0xf]
      %v1308 = vld [vmem:[%s1295 + $0x30] sm:$0xf]
      %v1309 = vld [vmem:[%s1295 + $0x34] sm:$0xf]
      %v1310 = vld [vmem:[%s1295 + $0x38] sm:$0xf]
      %v1311 = vld [vmem:[%s1295 + $0x3c] sm:$0xf]
      %v1312 = vld [vmem:[%s1295 + $0x40] sm:$0xf]
      %v1313 = vld [vmem:[%s1295 + $0x44] sm:$0xf]
      %v1314 = vld [vmem:[%s1295 + $0x48] sm:$0xf]
      %v1315 = vld [vmem:[%s1295 + $0x4c] sm:$0xf]
      %v1316 = vld [vmem:[%s1295 + $0x50] sm:$0xf]
      %v1317 = vld [vmem:[%s1295 + $0x54] sm:$0xf]
      %v1318 = vld [vmem:[%s1295 + $0x58] sm:$0xf]
      %v1319 = vld [vmem:[%s1295 + $0x5c] sm:$0xf]
      %v1320 = vld [vmem:[%s1295 + $0x60] sm:$0xf]
      %v1321 = vld [vmem:[%s1295 + $0x64] sm:$0xf]
      %v1322 = vld [vmem:[%s1295 + $0x68] sm:$0xf]
      %v1323 = vld [vmem:[%s1295 + $0x6c] sm:$0xf]
      %v1324 = vld [vmem:[%s1295 + $0x70] sm:$0xf]
      %v1325 = vld [vmem:[%s1295 + $0x74] sm:$0xf]
      %v1326 = vld [vmem:[%s1295 + $0x78] sm:$0xf]
      %v1327 = vld [vmem:[%s1295 + $0x7c] sm:$0xf]
      %v1328 = vld [vmem:[%s1295 + $0x80] sm:$0xf]
      %v1329 = vld [vmem:[%s1295 + $0x84] sm:$0xf]
      %v1330 = vld [vmem:[%s1295 + $0x88] sm:$0xf]
      %v1331 = vld [vmem:[%s1295 + $0x8c] sm:$0xf]
      %v1332 = vld [vmem:[%s1295 + $0x90] sm:$0xf]
      %v1333 = vld [vmem:[%s1295 + $0x94] sm:$0xf]
      %v1334 = vld [vmem:[%s1295 + $0x98] sm:$0xf]
      %v1335 = vld [vmem:[%s1295 + $0x9c] sm:$0xf]
      %v1336 = vld [vmem:[%s1295 + $0xa0] sm:$0xf]
      %v1337 = vld [vmem:[%s1295 + $0xa4] sm:$0xf]
      %v1338 = vld [vmem:[%s1295 + $0xa8] sm:$0xf]
      %v1339 = vld [vmem:[%s1295 + $0xac] sm:$0xf]
      %v1340 = vld [vmem:[%s1295 + $0xb0] sm:$0xf]
      %v1341 = vld [vmem:[%s1295 + $0xb4] sm:$0xf]
      %v1342 = vld [vmem:[%s1295 + $0xb8] sm:$0xf]
      %v1343 = vld [vmem:[%s1295 + $0xbc] sm:$0xf]
      %v1392 = vunpack.c.l.b16 %v1296
      %v1393 = vunpack.c.l.b16 %v1297
      %v1394 = vunpack.c.l.b16 %v1298
      %v1395 = vunpack.c.l.b16 %v1299
      %v1396 = vunpack.c.l.b16 %v1300
      %v1397 = vunpack.c.l.b16 %v1301
      %v1398 = vunpack.c.l.b16 %v1302
      %v1399 = vunpack.c.l.b16 %v1303
      %v1400 = vunpack.c.l.b16 %v1304
      %v1401 = vunpack.c.l.b16 %v1305
      %v1402 = vunpack.c.l.b16 %v1306
      %v1403 = vunpack.c.l.b16 %v1307
      %v1404 = vunpack.c.l.b16 %v1308
      %v1405 = vunpack.c.l.b16 %v1309
      %v1406 = vunpack.c.l.b16 %v1310
      %v1407 = vunpack.c.l.b16 %v1311
      %v1408 = vunpack.c.l.b16 %v1312
      %v1409 = vunpack.c.l.b16 %v1313
      %v1410 = vunpack.c.l.b16 %v1314
      %v1411 = vunpack.c.l.b16 %v1315
      %v1412 = vunpack.c.l.b16 %v1316
      %v1413 = vunpack.c.l.b16 %v1317
      %v1414 = vunpack.c.l.b16 %v1318
      %v1415 = vunpack.c.l.b16 %v1319
      %v1416 = vunpack.c.l.b16 %v1320
      %v1417 = vunpack.c.l.b16 %v1321
      %v1418 = vunpack.c.l.b16 %v1322
      %v1419 = vunpack.c.l.b16 %v1323
      %v1420 = vunpack.c.l.b16 %v1324
      %v1421 = vunpack.c.l.b16 %v1325
      %v1422 = vunpack.c.l.b16 %v1326
      %v1423 = vunpack.c.l.b16 %v1327
      %v1424 = vunpack.c.l.b16 %v1328
      %v1425 = vunpack.c.l.b16 %v1329
      %v1426 = vunpack.c.l.b16 %v1330
      %v1427 = vunpack.c.l.b16 %v1331
      %v1428 = vunpack.c.l.b16 %v1332
      %v1429 = vunpack.c.l.b16 %v1333
      %v1430 = vunpack.c.l.b16 %v1334
      %v1431 = vunpack.c.l.b16 %v1335
      %v1432 = vunpack.c.l.b16 %v1336
      %v1433 = vunpack.c.l.b16 %v1337
      %v1434 = vunpack.c.l.b16 %v1338
      %v1435 = vunpack.c.l.b16 %v1339
      %v1436 = vunpack.c.l.b16 %v1340
      %v1437 = vunpack.c.l.b16 %v1341
      %v1438 = vunpack.c.l.b16 %v1342
      %v1439 = vunpack.c.l.b16 %v1343
      %v1440 = vpack.c.b16 %v1393, %v1392
      %v1441 = vpack.c.b16 %v1395, %v1394
      %v1442 = vpack.c.b16 %v1397, %v1396
      %v1443 = vpack.c.b16 %v1399, %v1398
      %v1444 = vpack.c.b16 %v1401, %v1400
      %v1445 = vpack.c.b16 %v1403, %v1402
      %v1446 = vpack.c.b16 %v1405, %v1404
      %v1447 = vpack.c.b16 %v1407, %v1406
      %v1448 = vpack.c.b16 %v1409, %v1408
      %v1449 = vpack.c.b16 %v1411, %v1410
      %v1450 = vpack.c.b16 %v1413, %v1412
      %v1451 = vpack.c.b16 %v1415, %v1414
      %v1452 = vpack.c.b16 %v1417, %v1416
      %v1453 = vpack.c.b16 %v1419, %v1418
      %v1454 = vpack.c.b16 %v1421, %v1420
      %v1455 = vpack.c.b16 %v1423, %v1422
      %v1456 = vpack.c.b16 %v1425, %v1424
      %v1457 = vpack.c.b16 %v1427, %v1426
      %v1458 = vpack.c.b16 %v1429, %v1428
      %v1459 = vpack.c.b16 %v1431, %v1430
      %v1460 = vpack.c.b16 %v1433, %v1432
      %v1461 = vpack.c.b16 %v1435, %v1434
      %v1462 = vpack.c.b16 %v1437, %v1436
      %v1463 = vpack.c.b16 %v1439, %v1438
      %1488 = vmatpush.bf16.msra.mxu0 %v1447
      %1489 = vmatpush.bf16.msra.mxu0 %v1446
      %1490 = vmatpush.bf16.msra.mxu0 %v1445
      %1491 = vmatpush.bf16.msra.mxu0 %v1444
      %1492 = vmatpush.bf16.msra.mxu0 %v1443
      %1493 = vmatpush.bf16.msra.mxu0 %v1442
      %1494 = vmatpush.bf16.msra.mxu0 %v1441
      %1495 = vmatpush.bf16.msra.mxu0 %v1440
      %1496 = vmatmul.bf16.gmra.mxu0 %v1259
      %v1497 = vpop.f32.mrf.mxu0
      %v1498 = vadd.f32 0.0, %v1497
      %v1499 = vpop.f32.mrf.mxu0
      %v1500 = vadd.f32 0.0, %v1499
      %1501 = vmatmul.bf16.gmra.mxu0 %v1262
      %v1502 = vpop.f32.mrf.mxu0
      %v1503 = vadd.f32 0.0, %v1502
      %v1504 = vpop.f32.mrf.mxu0
      %v1505 = vadd.f32 0.0, %v1504
      %1506 = vmatmul.bf16.gmra.mxu0 %v1265
      %v1507 = vpop.f32.mrf.mxu0
      %v1508 = vadd.f32 0.0, %v1507
      %v1509 = vpop.f32.mrf.mxu0
      %v1510 = vadd.f32 0.0, %v1509
      %1511 = vmatmul.bf16.gmra.mxu0 %v1268
      %v1512 = vpop.f32.mrf.mxu0
      %v1513 = vadd.f32 0.0, %v1512
      %v1514 = vpop.f32.mrf.mxu0
      %v1515 = vadd.f32 0.0, %v1514
      %1516 = vmatmul.bf16.gmra.mxu0 %v1271
      %v1517 = vpop.f32.mrf.mxu0
      %v1518 = vadd.f32 0.0, %v1517
      %v1519 = vpop.f32.mrf.mxu0
      %v1520 = vadd.f32 0.0, %v1519
      %1521 = vmatmul.bf16.gmra.mxu0 %v1274
      %v1522 = vpop.f32.mrf.mxu0
      %v1523 = vadd.f32 0.0, %v1522
      %v1524 = vpop.f32.mrf.mxu0
      %v1525 = vadd.f32 0.0, %v1524
      %1526 = vmatmul.bf16.gmra.mxu0 %v1277
      %v1527 = vpop.f32.mrf.mxu0
      %v1528 = vadd.f32 0.0, %v1527
      %v1529 = vpop.f32.mrf.mxu0
      %v1530 = vadd.f32 0.0, %v1529
      %1531 = vmatmul.bf16.gmra.mxu0 %v1280
      %v1532 = vpop.f32.mrf.mxu0
      %v1533 = vadd.f32 0.0, %v1532
      %v1534 = vpop.f32.mrf.mxu0
      %v1535 = vadd.f32 0.0, %v1534
      %1536 = vmatmul.bf16.gmra.mxu0 %v1283
      %v1537 = vpop.f32.mrf.mxu0
      %v1538 = vadd.f32 0.0, %v1537
      %v1539 = vpop.f32.mrf.mxu0
      %v1540 = vadd.f32 0.0, %v1539
      %1541 = vmatmul.bf16.gmra.mxu0 %v1286
      %v1542 = vpop.f32.mrf.mxu0
      %v1543 = vadd.f32 0.0, %v1542
      %v1544 = vpop.f32.mrf.mxu0
      %v1545 = vadd.f32 0.0, %v1544
      %1546 = vmatmul.bf16.gmra.mxu0 %v1289
      %v1547 = vpop.f32.mrf.mxu0
      %v1548 = vadd.f32 0.0, %v1547
      %v1549 = vpop.f32.mrf.mxu0
      %v1550 = vadd.f32 0.0, %v1549
      %1551 = vmatmul.bf16.gmra.mxu0 %v1292
      %v1552 = vpop.f32.mrf.mxu0
      %v1553 = vadd.f32 0.0, %v1552
      %v1554 = vpop.f32.mrf.mxu0
      %v1555 = vadd.f32 0.0, %v1554
      %1556 = vdwg.mxu0
      %1557 = vmatpush.bf16.msra.mxu0 %v1455
      %1558 = vmatpush.bf16.msra.mxu0 %v1454
      %1559 = vmatpush.bf16.msra.mxu0 %v1453
      %1560 = vmatpush.bf16.msra.mxu0 %v1452
      %1561 = vmatpush.bf16.msra.mxu0 %v1451
      %1562 = vmatpush.bf16.msra.mxu0 %v1450
      %1563 = vmatpush.bf16.msra.mxu0 %v1449
      %1564 = vmatpush.bf16.msra.mxu0 %v1448
      %1565 = vmatmul.bf16.gmra.mxu0 %v1260
      %v1566 = vpop.f32.mrf.mxu0
      %v1567 = vadd.f32 %v1498, %v1566
      %v1568 = vpop.f32.mrf.mxu0
      %v1569 = vadd.f32 %v1500, %v1568
      %1570 = vmatmul.bf16.gmra.mxu0 %v1263
      %v1571 = vpop.f32.mrf.mxu0
      %v1572 = vadd.f32 %v1503, %v1571
      %v1573 = vpop.f32.mrf.mxu0
      %v1574 = vadd.f32 %v1505, %v1573
      %1575 = vmatmul.bf16.gmra.mxu0 %v1266
      %v1576 = vpop.f32.mrf.mxu0
      %v1577 = vadd.f32 %v1508, %v1576
      %v1578 = vpop.f32.mrf.mxu0
      %v1579 = vadd.f32 %v1510, %v1578
      %1580 = vmatmul.bf16.gmra.mxu0 %v1269
      %v1581 = vpop.f32.mrf.mxu0
      %v1582 = vadd.f32 %v1513, %v1581
      %v1583 = vpop.f32.mrf.mxu0
      %v1584 = vadd.f32 %v1515, %v1583
      %1585 = vmatmul.bf16.gmra.mxu0 %v1272
      %v1586 = vpop.f32.mrf.mxu0
      %v1587 = vadd.f32 %v1518, %v1586
      %v1588 = vpop.f32.mrf.mxu0
      %v1589 = vadd.f32 %v1520, %v1588
      %1590 = vmatmul.bf16.gmra.mxu0 %v1275
      %v1591 = vpop.f32.mrf.mxu0
      %v1592 = vadd.f32 %v1523, %v1591
      %v1593 = vpop.f32.mrf.mxu0
      %v1594 = vadd.f32 %v1525, %v1593
      %1595 = vmatmul.bf16.gmra.mxu0 %v1278
      %v1596 = vpop.f32.mrf.mxu0
      %v1597 = vadd.f32 %v1528, %v1596
      %v1598 = vpop.f32.mrf.mxu0
      %v1599 = vadd.f32 %v1530, %v1598
      %1600 = vmatmul.bf16.gmra.mxu0 %v1281
      %v1601 = vpop.f32.mrf.mxu0
      %v1602 = vadd.f32 %v1533, %v1601
      %v1603 = vpop.f32.mrf.mxu0
      %v1604 = vadd.f32 %v1535, %v1603
      %1605 = vmatmul.bf16.gmra.mxu0 %v1284
      %v1606 = vpop.f32.mrf.mxu0
      %v1607 = vadd.f32 %v1538, %v1606
      %v1608 = vpop.f32.mrf.mxu0
      %v1609 = vadd.f32 %v1540, %v1608
      %1610 = vmatmul.bf16.gmra.mxu0 %v1287
      %v1611 = vpop.f32.mrf.mxu0
      %v1612 = vadd.f32 %v1543, %v1611
      %v1613 = vpop.f32.mrf.mxu0
      %v1614 = vadd.f32 %v1545, %v1613
      %1615 = vmatmul.bf16.gmra.mxu0 %v1290
      %v1616 = vpop.f32.mrf.mxu0
      %v1617 = vadd.f32 %v1548, %v1616
      %v1618 = vpop.f32.mrf.mxu0
      %v1619 = vadd.f32 %v1550, %v1618
      %1620 = vmatmul.bf16.gmra.mxu0 %v1293
      %v1621 = vpop.f32.mrf.mxu0
      %v1622 = vadd.f32 %v1553, %v1621
      %v1623 = vpop.f32.mrf.mxu0
      %v1624 = vadd.f32 %v1555, %v1623
      %1625 = vdwg.mxu0
      %1626 = vmatpush.bf16.msra.mxu0 %v1463
      %1627 = vmatpush.bf16.msra.mxu0 %v1462
      %1628 = vmatpush.bf16.msra.mxu0 %v1461
      %1629 = vmatpush.bf16.msra.mxu0 %v1460
      %1630 = vmatpush.bf16.msra.mxu0 %v1459
      %1631 = vmatpush.bf16.msra.mxu0 %v1458
      %1632 = vmatpush.bf16.msra.mxu0 %v1457
      %1633 = vmatpush.bf16.msra.mxu0 %v1456
      %1634 = vmatmul.bf16.gmra.mxu0 %v1261
      %v1635 = vpop.f32.mrf.mxu0
      %v1636 = vadd.f32 %v1567, %v1635
      %v1637 = vpop.f32.mrf.mxu0
      %v1638 = vadd.f32 %v1569, %v1637
      %1639 = vmatmul.bf16.gmra.mxu0 %v1264
      %v1640 = vpop.f32.mrf.mxu0
      %v1641 = vadd.f32 %v1572, %v1640
      %v1642 = vpop.f32.mrf.mxu0
      %v1643 = vadd.f32 %v1574, %v1642
      %1644 = vmatmul.bf16.gmra.mxu0 %v1267
      %v1645 = vpop.f32.mrf.mxu0
      %v1646 = vadd.f32 %v1577, %v1645
      %v1647 = vpop.f32.mrf.mxu0
      %v1648 = vadd.f32 %v1579, %v1647
      %1649 = vmatmul.bf16.gmra.mxu0 %v1270
      %v1650 = vpop.f32.mrf.mxu0
      %v1651 = vadd.f32 %v1582, %v1650
      %v1652 = vpop.f32.mrf.mxu0
      %v1653 = vadd.f32 %v1584, %v1652
      %1654 = vmatmul.bf16.gmra.mxu0 %v1273
      %v1655 = vpop.f32.mrf.mxu0
      %v1656 = vadd.f32 %v1587, %v1655
      %v1657 = vpop.f32.mrf.mxu0
      %v1658 = vadd.f32 %v1589, %v1657
      %1659 = vmatmul.bf16.gmra.mxu0 %v1276
      %v1660 = vpop.f32.mrf.mxu0
      %v1661 = vadd.f32 %v1592, %v1660
      %v1662 = vpop.f32.mrf.mxu0
      %v1663 = vadd.f32 %v1594, %v1662
      %1664 = vmatmul.bf16.gmra.mxu0 %v1279
      %v1665 = vpop.f32.mrf.mxu0
      %v1666 = vadd.f32 %v1597, %v1665
      %v1667 = vpop.f32.mrf.mxu0
      %v1668 = vadd.f32 %v1599, %v1667
      %1669 = vmatmul.bf16.gmra.mxu0 %v1282
      %v1670 = vpop.f32.mrf.mxu0
      %v1671 = vadd.f32 %v1602, %v1670
      %v1672 = vpop.f32.mrf.mxu0
      %v1673 = vadd.f32 %v1604, %v1672
      %1674 = vmatmul.bf16.gmra.mxu0 %v1285
      %v1675 = vpop.f32.mrf.mxu0
      %v1676 = vadd.f32 %v1607, %v1675
      %v1677 = vpop.f32.mrf.mxu0
      %v1678 = vadd.f32 %v1609, %v1677
      %1679 = vmatmul.bf16.gmra.mxu0 %v1288
      %v1680 = vpop.f32.mrf.mxu0
      %v1681 = vadd.f32 %v1612, %v1680
      %v1682 = vpop.f32.mrf.mxu0
      %v1683 = vadd.f32 %v1614, %v1682
      %1684 = vmatmul.bf16.gmra.mxu0 %v1291
      %v1685 = vpop.f32.mrf.mxu0
      %v1686 = vadd.f32 %v1617, %v1685
      %v1687 = vpop.f32.mrf.mxu0
      %v1688 = vadd.f32 %v1619, %v1687
      %1689 = vmatmul.bf16.gmra.mxu0 %v1294
      %v1690 = vpop.f32.mrf.mxu0
      %v1691 = vadd.f32 %v1622, %v1690
      %v1692 = vpop.f32.mrf.mxu0
      %v1693 = vadd.f32 %v1624, %v1692
      %1694 = vdwg.mxu0
      %v1695 = vadd.f32 %v1128, %v1636
      %v1696 = vadd.f32 %v1130, %v1638
      %v1697 = vadd.f32 %v1133, %v1641
      %v1698 = vadd.f32 %v1135, %v1643
      %v1699 = vadd.f32 %v1138, %v1646
      %v1700 = vadd.f32 %v1140, %v1648
      %v1701 = vadd.f32 %v1143, %v1651
      %v1702 = vadd.f32 %v1145, %v1653
      %v1703 = vadd.f32 %v1148, %v1656
      %v1704 = vadd.f32 %v1150, %v1658
      %v1705 = vadd.f32 %v1153, %v1661
      %v1706 = vadd.f32 %v1155, %v1663
      %v1707 = vadd.f32 %v1158, %v1666
      %v1708 = vadd.f32 %v1160, %v1668
      %v1709 = vadd.f32 %v1163, %v1671
      %v1710 = vadd.f32 %v1165, %v1673
      %v1711 = vadd.f32 %v1168, %v1676
      %v1712 = vadd.f32 %v1170, %v1678
      %v1713 = vadd.f32 %v1173, %v1681
      %v1714 = vadd.f32 %v1175, %v1683
      %v1715 = vadd.f32 %v1178, %v1686
      %v1716 = vadd.f32 %v1180, %v1688
      %v1717 = vadd.f32 %v1183, %v1691
      %v1718 = vadd.f32 %v1185, %v1693
      %v1719 = vld [vmem:[%s2] sm:$0x1]
      %v1721 = vperm.slane %v1719, 0
      %v1723 = vmul.f32 %v1695, %v1721
      %v1724 = vmul.f32 %v1696, %v1721
      %v1725 = vmul.f32 %v1697, %v1721
      %v1726 = vmul.f32 %v1698, %v1721
      %v1727 = vmul.f32 %v1699, %v1721
      %v1728 = vmul.f32 %v1700, %v1721
      %v1729 = vmul.f32 %v1701, %v1721
      %v1730 = vmul.f32 %v1702, %v1721
      %v1731 = vmul.f32 %v1703, %v1721
      %v1732 = vmul.f32 %v1704, %v1721
      %v1733 = vmul.f32 %v1705, %v1721
      %v1734 = vmul.f32 %v1706, %v1721
      %v1735 = vmul.f32 %v1707, %v1721
      %v1736 = vmul.f32 %v1708, %v1721
      %v1737 = vmul.f32 %v1709, %v1721
      %v1738 = vmul.f32 %v1710, %v1721
      %v1739 = vmul.f32 %v1711, %v1721
      %v1740 = vmul.f32 %v1712, %v1721
      %v1741 = vmul.f32 %v1713, %v1721
      %v1742 = vmul.f32 %v1714, %v1721
      %v1743 = vmul.f32 %v1715, %v1721
      %v1744 = vmul.f32 %v1716, %v1721
      %v1745 = vmul.f32 %v1717, %v1721
      %v1746 = vmul.f32 %v1718, %v1721
      %v1747 = vld [vmem:[%s3] sm:$0x1]
      %v1749 = vperm.slane %v1747, 0
      %v1751 = vadd.f32 %v1723, %v1749
      %v1752 = vadd.f32 %v1724, %v1749
      %v1753 = vadd.f32 %v1725, %v1749
      %v1754 = vadd.f32 %v1726, %v1749
      %v1755 = vadd.f32 %v1727, %v1749
      %v1756 = vadd.f32 %v1728, %v1749
      %v1757 = vadd.f32 %v1729, %v1749
      %v1758 = vadd.f32 %v1730, %v1749
      %v1759 = vadd.f32 %v1731, %v1749
      %v1760 = vadd.f32 %v1732, %v1749
      %v1761 = vadd.f32 %v1733, %v1749
      %v1762 = vadd.f32 %v1734, %v1749
      %v1763 = vadd.f32 %v1735, %v1749
      %v1764 = vadd.f32 %v1736, %v1749
      %v1765 = vadd.f32 %v1737, %v1749
      %v1766 = vadd.f32 %v1738, %v1749
      %v1767 = vadd.f32 %v1739, %v1749
      %v1768 = vadd.f32 %v1740, %v1749
      %v1769 = vadd.f32 %v1741, %v1749
      %v1770 = vadd.f32 %v1742, %v1749
      %v1771 = vadd.f32 %v1743, %v1749
      %v1772 = vadd.f32 %v1744, %v1749
      %v1773 = vadd.f32 %v1745, %v1749
      %v1774 = vadd.f32 %v1746, %v1749
      %v1775 = vld [vmem:[%s224 + $0x50] sm:$0xff]
      %v1776 = vld [vmem:[%s224 + $0x68] sm:$0xff]
      %v1777 = vld [vmem:[%s224 + $0x80] sm:$0xff]
      %v1778 = vld [vmem:[%s224 + $0x98] sm:$0xff]
      %v1779 = vld [vmem:[%s224 + $0xb0] sm:$0xff]
      %v1780 = vld [vmem:[%s224 + $0xc8] sm:$0xff]
      %v1781 = vld [vmem:[%s224 + $0xe0] sm:$0xff]
      %v1782 = vld [vmem:[%s224 + $0xf8] sm:$0xff]
      %v1783 = vld [vmem:[%s224 + $0x110] sm:$0xff]
      %v1784 = vld [vmem:[%s224 + $0x128] sm:$0xff]
      %v1785 = vld [vmem:[%s224 + $0x140] sm:$0xff]
      %v1786 = vld [vmem:[%s224 + $0x158] sm:$0xff]
      %v1787 = vld [vmem:[%s224 + $0x170] sm:$0xff]
      %v1788 = vld [vmem:[%s224 + $0x188] sm:$0xff]
      %v1789 = vld [vmem:[%s224 + $0x1a0] sm:$0xff]
      %v1790 = vld [vmem:[%s224 + $0x1b8] sm:$0xff]
      %v1791 = vld [vmem:[%s224 + $0x1d0] sm:$0xff]
      %v1792 = vld [vmem:[%s224 + $0x1e8] sm:$0xff]
      %v1793 = vld [vmem:[%s224 + $0x200] sm:$0xff]
      %v1794 = vld [vmem:[%s224 + $0x218] sm:$0xff]
      %v1795 = vld [vmem:[%s224 + $0x230] sm:$0xff]
      %v1796 = vld [vmem:[%s224 + $0x248] sm:$0xff]
      %v1797 = vld [vmem:[%s224 + $0x260] sm:$0xff]
      %v1798 = vld [vmem:[%s224 + $0x278] sm:$0xff]
      %v1799 = vadd.f32 %v1751, %v1775
      %v1800 = vadd.f32 %v1752, %v1776
      %v1801 = vadd.f32 %v1753, %v1777
      %v1802 = vadd.f32 %v1754, %v1778
      %v1803 = vadd.f32 %v1755, %v1779
      %v1804 = vadd.f32 %v1756, %v1780
      %v1805 = vadd.f32 %v1757, %v1781
      %v1806 = vadd.f32 %v1758, %v1782
      %v1807 = vadd.f32 %v1759, %v1783
      %v1808 = vadd.f32 %v1760, %v1784
      %v1809 = vadd.f32 %v1761, %v1785
      %v1810 = vadd.f32 %v1762, %v1786
      %v1811 = vadd.f32 %v1763, %v1787
      %v1812 = vadd.f32 %v1764, %v1788
      %v1813 = vadd.f32 %v1765, %v1789
      %v1814 = vadd.f32 %v1766, %v1790
      %v1815 = vadd.f32 %v1767, %v1791
      %v1816 = vadd.f32 %v1768, %v1792
      %v1817 = vadd.f32 %v1769, %v1793
      %v1818 = vadd.f32 %v1770, %v1794
      %v1819 = vadd.f32 %v1771, %v1795
      %v1820 = vadd.f32 %v1772, %v1796
      %v1821 = vadd.f32 %v1773, %v1797
      %v1822 = vadd.f32 %v1774, %v1798
      %v1823 = vmax.f32 %v1799, 0.0
      %v1824 = vmax.f32 %v1800, 0.0
      %v1825 = vmax.f32 %v1801, 0.0
      %v1826 = vmax.f32 %v1802, 0.0
      %v1827 = vmax.f32 %v1803, 0.0
      %v1828 = vmax.f32 %v1804, 0.0
      %v1829 = vmax.f32 %v1805, 0.0
      %v1830 = vmax.f32 %v1806, 0.0
      %v1831 = vmax.f32 %v1807, 0.0
      %v1832 = vmax.f32 %v1808, 0.0
      %v1833 = vmax.f32 %v1809, 0.0
      %v1834 = vmax.f32 %v1810, 0.0
      %v1835 = vmax.f32 %v1811, 0.0
      %v1836 = vmax.f32 %v1812, 0.0
      %v1837 = vmax.f32 %v1813, 0.0
      %v1838 = vmax.f32 %v1814, 0.0
      %v1839 = vmax.f32 %v1815, 0.0
      %v1840 = vmax.f32 %v1816, 0.0
      %v1841 = vmax.f32 %v1817, 0.0
      %v1842 = vmax.f32 %v1818, 0.0
      %v1843 = vmax.f32 %v1819, 0.0
      %v1844 = vmax.f32 %v1820, 0.0
      %v1845 = vmax.f32 %v1821, 0.0
      %v1846 = vmax.f32 %v1822, 0.0
      %v1847 = vpack.c.bf16 %v1823, %v1823
      %v1848 = vpack.c.bf16 %v1824, %v1824
      %v1849 = vpack.c.bf16 %v1825, %v1825
      %v1850 = vpack.c.bf16 %v1826, %v1826
      %v1851 = vpack.c.bf16 %v1827, %v1827
      %v1852 = vpack.c.bf16 %v1828, %v1828
      %v1853 = vpack.c.bf16 %v1829, %v1829
      %v1854 = vpack.c.bf16 %v1830, %v1830
      %v1855 = vpack.c.bf16 %v1831, %v1831
      %v1856 = vpack.c.bf16 %v1832, %v1832
      %v1857 = vpack.c.bf16 %v1833, %v1833
      %v1858 = vpack.c.bf16 %v1834, %v1834
      %v1859 = vpack.c.bf16 %v1835, %v1835
      %v1860 = vpack.c.bf16 %v1836, %v1836
      %v1861 = vpack.c.bf16 %v1837, %v1837
      %v1862 = vpack.c.bf16 %v1838, %v1838
      %v1863 = vpack.c.bf16 %v1839, %v1839
      %v1864 = vpack.c.bf16 %v1840, %v1840
      %v1865 = vpack.c.bf16 %v1841, %v1841
      %v1866 = vpack.c.bf16 %v1842, %v1842
      %v1867 = vpack.c.bf16 %v1843, %v1843
      %v1868 = vpack.c.bf16 %v1844, %v1844
      %v1869 = vpack.c.bf16 %v1845, %v1845
      %v1870 = vpack.c.bf16 %v1846, %v1846
      %1871 = vst [vmem:[%s233] sm:$0xf] %v1847
      %1872 = vst [vmem:[%s233 + $0x4] sm:$0xf] %v1848
      %1873 = vst [vmem:[%s233 + $0x8] sm:$0xf] %v1849
      %1874 = vst [vmem:[%s233 + $0xc] sm:$0xf] %v1850
      %1875 = vst [vmem:[%s233 + $0x10] sm:$0xf] %v1851
      %1876 = vst [vmem:[%s233 + $0x14] sm:$0xf] %v1852
      %1877 = vst [vmem:[%s233 + $0x18] sm:$0xf] %v1853
      %1878 = vst [vmem:[%s233 + $0x1c] sm:$0xf] %v1854
      %1879 = vst [vmem:[%s233 + $0x20] sm:$0xf] %v1855
      %1880 = vst [vmem:[%s233 + $0x24] sm:$0xf] %v1856
      %1881 = vst [vmem:[%s233 + $0x28] sm:$0xf] %v1857
      %1882 = vst [vmem:[%s233 + $0x2c] sm:$0xf] %v1858
      %1883 = vst [vmem:[%s233 + $0x30] sm:$0xf] %v1859
      %1884 = vst [vmem:[%s233 + $0x34] sm:$0xf] %v1860
      %1885 = vst [vmem:[%s233 + $0x38] sm:$0xf] %v1861
      %1886 = vst [vmem:[%s233 + $0x3c] sm:$0xf] %v1862
      %1887 = vst [vmem:[%s233 + $0x40] sm:$0xf] %v1863
      %1888 = vst [vmem:[%s233 + $0x44] sm:$0xf] %v1864
      %1889 = vst [vmem:[%s233 + $0x48] sm:$0xf] %v1865
      %1890 = vst [vmem:[%s233 + $0x4c] sm:$0xf] %v1866
      %1891 = vst [vmem:[%s233 + $0x50] sm:$0xf] %v1867
      %1892 = vst [vmem:[%s233 + $0x54] sm:$0xf] %v1868
      %1893 = vst [vmem:[%s233 + $0x58] sm:$0xf] %v1869
      %1894 = vst [vmem:[%s233 + $0x5c] sm:$0xf] %v1870
      %s1895 = smul.u32 24, %s20
      %p1896 = scmp.lt.s32.totalorder %s19, 3
      %s1897 = scalar_select %p1896, %s19, 3
      %p1898 = scmp.lt.s32.totalorder %s1895, 71
      %s1899 = scalar_select %p1898, %s1895, 71
      %s1900 = smul.addr %s1897, 72
      %s1901 = sadd.s32 %s1899, %s1900
      %s1902 = smul.addr %s1901, 4
      %s1903 = scalar_lea.vmem %s4, %s1902
      // Predicated region
      $region37: #{_lambda_.5} parent=35 // pred_check
        %p1904 = pneg %p138
      $region38: #{_lambda_.5} parent=35 // pred_check_branch
        %1906 = sbr.rel (%p1904) target = $region40
      $region39: #{_lambda_.5} parent=35 // pred_region
        %s1907 = smul.u32 24, %s20
      $region40: #{_lambda_.5} parent=35 // pred_fallthru
        _
    $region36: #{_lambda_.5} parent=5 // pred_fallthru
      _
    %p1908 = scmp.le.s32.totalorder 2, %s10
    // Predicated region
    $region41: #{_lambda_.5} parent=5 // pred_check
      %p1909 = pneg %p1908
    $region42: #{_lambda_.5} parent=5 // pred_check_branch
      %1911 = sbr.rel (%p1909) target = $region44
    $region43: #{_lambda_.5} parent=5 // pred_region
      %s1912 = ssub.s32 %s10, 2
      // Predicated region
      $region45: #{_lambda_.5} parent=43 // pred_check
        %p1913 = pneg %p144
      $region46: #{_lambda_.5} parent=43 // pred_check_branch
        %1915 = sbr.rel (%p1913) target = $region48
      $region47: #{_lambda_.5} parent=43 // pred_region
        %s1916 = smul.u32 24, %s22
        %p1917 = scmp.lt.s32.totalorder %s21, 3
        %s1918 = scalar_select %p1917, %s21, 3
        %p1919 = scmp.lt.s32.totalorder %s1916, 71
        %s1920 = scalar_select %p1919, %s1916, 71
        %s1921 = smul.addr %s1918, 72
        %s1922 = sadd.s32 %s1920, %s1921
        %s1923 = smul.addr %s1922, 4
        %s1924 = scalar_lea.vmem %s4, %s1923
      $region48: #{_lambda_.5} parent=43 // pred_fallthru
        _
    $region44: #{_lambda_.5} parent=5 // pred_fallthru
      _
  $region6: #{_lambda_.5} parent=0 // loop_footer
    %s14 = sadd.s32 1, %s10
  $region7: #{_lambda_.5} parent=0 // loop_footer_branch
    %9 = sbr.rel target = $region3
  $region8: #{_lambda_.5} parent=0 // loop_exit
    _

</llo_original>
